<compile_context>
chip_gen: v5e
topology: v5e:2x2
jax: 0.10.0
libtpu: 0.0.40
codegen_flags: <defaults>
</compile_context>

<pallas_src>
import functools
import math

import jax
import jax.numpy as jnp
from jax.experimental import pallas as pl
from jax.experimental.pallas import tpu as pltpu


VMEM_LIMIT = 32 * 1024 * 1024   # explicit scoped-VMEM budget, safe on v5e/v6e/v7x


# ----------------------------------------------------------------------------
# Tile-size helpers
# ----------------------------------------------------------------------------
def _pick_row_tile(m, max_tile=256):
    """Largest multiple of 8 that divides m (capped), preferring >=2 blocks."""
    best = m
    t = min(max_tile, m)
    t -= t % 8
    while t >= 8:
        if m % t == 0:
            if m // t >= 2:
                return t
            best = t
        t -= 8
    return best


def _pick_lane_tile(n, max_tile=512):
    """Largest multiple of 128 that divides n (capped); else the full dim."""
    t = min(max_tile, (n // 128) * 128)
    while t >= 128:
        if n % t == 0:
            return t
        t -= 128
    return n


# ----------------------------------------------------------------------------
# Fused Linear kernel:  (optional LayerNorm prologue) -> bf16 matmul (f32 acc)
#                       -> bias (+ReLU) (+residual) epilogue in f32
# ----------------------------------------------------------------------------
def _linear_kernel(x_ref, w_ref, b_ref, *rest, relu, has_ln, has_res, eps):
    pos = 0
    if has_ln:
        g_ref, beta_ref = rest[pos], rest[pos + 1]
        pos += 2
    if has_res:
        r_ref = rest[pos]
        pos += 1
    o_ref = rest[pos]

    x = x_ref[...]                                           # (tm, K) f32
    if has_ln:
        # Annotated-transformer LayerNorm: unbiased std, eps added to std.
        mean = jnp.mean(x, axis=-1, keepdims=True)
        d = x - mean
        var = jnp.sum(d * d, axis=-1, keepdims=True) * (1.0 / (x.shape[-1] - 1))
        x = g_ref[...] * d / (jnp.sqrt(var) + eps) + beta_ref[...]

    y = jnp.dot(x.astype(jnp.bfloat16), w_ref[...],
                preferred_element_type=jnp.float32)          # (tm, tn) f32 acc
    y = y + b_ref[...]
    if relu:
        y = jnp.maximum(y, 0.0)
    if has_res:
        y = y + r_ref[...]
    o_ref[...] = y.astype(o_ref.dtype)


def linear_pallas(x2d, w, b, *, relu=False, residual=None, ln=None, eps=1e-6):
    """x2d: (M, K) f32, w: (K, N) bf16, b: (N,) f32 -> (M, N) f32.

    ln = (gamma, beta) fuses a row-wise LayerNorm on x before the matmul.
    residual = (M, N) f32 array added after bias/ReLU (fused residual add).
    """
    M, K = x2d.shape
    K2, N = w.shape
    assert K == K2
    tm = _pick_row_tile(M)
    tn = _pick_lane_tile(N)
    grid = (M // tm, N // tn)

    in_specs = [
        pl.BlockSpec((tm, K), lambda i, j: (i, 0)),
        pl.BlockSpec((K, tn), lambda i, j: (0, j)),
        pl.BlockSpec((1, tn), lambda i, j: (0, j)),
    ]
    args = [x2d, w, b.reshape(1, N)]
    if ln is not None:
        gamma, beta = ln
        in_specs += [pl.BlockSpec((1, K), lambda i, j: (0, 0)),
                     pl.BlockSpec((1, K), lambda i, j: (0, 0))]
        args += [gamma.reshape(1, K), beta.reshape(1, K)]
    if residual is not None:
        in_specs.append(pl.BlockSpec((tm, tn), lambda i, j: (i, j)))
        args.append(residual)

    kernel = functools.partial(_linear_kernel, relu=relu,
                               has_ln=ln is not None,
                               has_res=residual is not None, eps=eps)
    return pl.pallas_call(
        kernel,
        out_shape=jax.ShapeDtypeStruct((M, N), jnp.float32),
        grid=grid,
        in_specs=in_specs,
        out_specs=pl.BlockSpec((tm, tn), lambda i, j: (i, j)),
        compiler_params=pltpu.CompilerParams(
            dimension_semantics=("parallel", "parallel"),
            vmem_limit_bytes=VMEM_LIMIT),
    )(*args)


# ----------------------------------------------------------------------------
# Multi-head attention kernel: one batch element (all heads) per grid step.
# Mask is block-mapped per batch (never replicated over heads) and broadcast
# in-kernel; output is written lane-dense in (B, Lq, D) layout.
# ----------------------------------------------------------------------------
def _attn_kernel(q_ref, k_ref, v_ref, m_ref, o_ref, *, num_heads, scale):
    D = q_ref.shape[-1]
    dk = D // num_heads
    q = q_ref[0].astype(jnp.bfloat16)       # (Lq, D)
    k = k_ref[0].astype(jnp.bfloat16)       # (Lk, D)
    v = v_ref[0].astype(jnp.bfloat16)       # (Lk, D)
    mask = m_ref[0]                          # (Lm, Lk), Lm in {1, Lq}
    neg = jnp.float32(-1e9)

    outs = []
    for head in range(num_heads):            # static unroll over heads
        lo, hi = head * dk, (head + 1) * dk
        # scores = q_h @ k_h^T, bf16 inputs, f32 accumulation
        s = jax.lax.dot_general(q[:, lo:hi], k[:, lo:hi],
                                (((1,), (1,)), ((), ())),
                                preferred_element_type=jnp.float32) * scale
        s = jnp.where(mask < 0.5, neg, s)
        s = s - jnp.max(s, axis=-1, keepdims=True)
        p = jnp.exp(s)
        p = p * pl.reciprocal(jnp.sum(p, axis=-1, keepdims=True), approx=True)
        outs.append(jnp.dot(p.astype(jnp.bfloat16), v[:, lo:hi],
                            preferred_element_type=jnp.float32))   # (Lq, dk)
    o_ref[0] = jnp.concatenate(outs, axis=-1).astype(o_ref.dtype)  # (Lq, D)


def attention_pallas(q, k, v, mask, num_heads):
    """q: (B, Lq, D), k/v: (B, Lk, D), mask: (B, 1|Lq, Lk) -> (B, Lq, D)."""
    # TODO(synk): for long Lk this should become a flash-style kernel with an
    # "arbitrary" Lk grid axis + running max/denominator scratch; at these
    # sequence lengths the full (Lq, Lk) score tile fits comfortably in VMEM.
    B, Lq, D = q.shape
    Lk = k.shape[1]
    Lm = mask.shape[1]
    scale = 1.0 / math.sqrt(D // num_heads)
    return pl.pallas_call(
        functools.partial(_attn_kernel, num_heads=num_heads, scale=scale),
        out_shape=jax.ShapeDtypeStruct((B, Lq, D), jnp.float32),
        grid=(B,),
        in_specs=[
            pl.BlockSpec((1, Lq, D), lambda b: (b, 0, 0)),
            pl.BlockSpec((1, Lk, D), lambda b: (b, 0, 0)),
            pl.BlockSpec((1, Lk, D), lambda b: (b, 0, 0)),
            pl.BlockSpec((1, Lm, Lk), lambda b: (b, 0, 0)),
        ],
        out_specs=pl.BlockSpec((1, Lq, D), lambda b: (b, 0, 0)),
        compiler_params=pltpu.CompilerParams(
            dimension_semantics=("parallel",),
            vmem_limit_bytes=VMEM_LIMIT),
    )(q, k, v, mask)


# ----------------------------------------------------------------------------
# Standalone LayerNorm (used only for the final encoder/decoder norm), row-tiled
# ----------------------------------------------------------------------------
def _ln_kernel(x_ref, g_ref, b_ref, o_ref, *, eps):
    x = x_ref[...]
    mean = jnp.mean(x, axis=-1, keepdims=True)
    d = x - mean
    var = jnp.sum(d * d, axis=-1, keepdims=True) * (1.0 / (x.shape[-1] - 1))
    o_ref[...] = (g_ref[...] * d / (jnp.sqrt(var) + eps) + b_ref[...]).astype(o_ref.dtype)


def layernorm_pallas(x3d, gamma, beta, eps=1e-6):
    B, L, D = x3d.shape
    M = B * L
    x2d = x3d.reshape(M, D)
    tm = _pick_row_tile(M)
    out = pl.pallas_call(
        functools.partial(_ln_kernel, eps=eps),
        out_shape=jax.ShapeDtypeStruct((M, D), jnp.float32),
        grid=(M // tm,),
        in_specs=[
            pl.BlockSpec((tm, D), lambda i: (i, 0)),
            pl.BlockSpec((1, D), lambda i: (0, 0)),
            pl.BlockSpec((1, D), lambda i: (0, 0)),
        ],
        out_specs=pl.BlockSpec((tm, D), lambda i: (i, 0)),
        compiler_params=pltpu.CompilerParams(
            dimension_semantics=("parallel",),
            vmem_limit_bytes=VMEM_LIMIT),
    )(x2d, gamma.reshape(1, D), beta.reshape(1, D))
    return out.reshape(B, L, D)


# ----------------------------------------------------------------------------
# Transformer sublayers (pre-norm + residual, dropout = identity)
# ----------------------------------------------------------------------------
def self_attn_sublayer(p, norm_p, x, mask, num_heads):
    """x + SelfAttn(LayerNorm(x)); LN fused into the QKV projection kernel,
    residual fused into the output-projection kernel."""
    B, L, D = x.shape
    x2d = x.reshape(B * L, D)
    qkv = linear_pallas(x2d, p["w_qkv"], p["b_qkv"],
                        ln=(norm_p["g"], norm_p["b"])).reshape(B, L, 3 * D)
    q, k, v = qkv[..., :D], qkv[..., D:2 * D], qkv[..., 2 * D:]
    o = attention_pallas(q, k, v, mask.astype(jnp.float32), num_heads)
    out = linear_pallas(o.reshape(B * L, D), p["w_o"], p["b_o"], residual=x2d)
    return out.reshape(B, L, D)


def cross_attn_sublayer(p, norm_p, x, memory, mask, num_heads):
    """x + CrossAttn(LayerNorm(x), memory, memory)."""
    B, Lq, D = x.shape
    Lk = memory.shape[1]
    x2d = x.reshape(B * Lq, D)
    q = linear_pallas(x2d, p["w_q"], p["b_q"],
                      ln=(norm_p["g"], norm_p["b"])).reshape(B, Lq, D)
    kv = linear_pallas(memory.reshape(B * Lk, D), p["w_kv"], p["b_kv"]).reshape(B, Lk, 2 * D)
    k, v = kv[..., :D], kv[..., D:]
    o = attention_pallas(q, k, v, mask.astype(jnp.float32), num_heads)
    out = linear_pallas(o.reshape(B * Lq, D), p["w_o"], p["b_o"], residual=x2d)
    return out.reshape(B, Lq, D)


def ff_sublayer(p, norm_p, x):
    """x + W2(ReLU(W1(LayerNorm(x))))."""
    B, L, D = x.shape
    x2d = x.reshape(B * L, D)
    h1 = linear_pallas(x2d, p["w1"], p["b1"], relu=True,
                       ln=(norm_p["g"], norm_p["b"]))
    out = linear_pallas(h1, p["w2"], p["b2"], residual=x2d)
    return out.reshape(B, L, D)


def encoder(params, x, mask, num_heads):
    for lp in params["layers"]:
        x = self_attn_sublayer(lp["self_attn"], lp["norm1"], x, mask, num_heads)
        x = ff_sublayer(lp["ff"], lp["norm2"], x)
    return layernorm_pallas(x, params["norm"]["g"], params["norm"]["b"])


def decoder(params, x, memory, src_mask, tgt_mask, num_heads):
    for lp in params["layers"]:
        x = self_attn_sublayer(lp["self_attn"], lp["norm1"], x, tgt_mask, num_heads)
        x = cross_attn_sublayer(lp["src_attn"], lp["norm2"], x, memory, src_mask, num_heads)
        x = ff_sublayer(lp["ff"], lp["norm3"], x)
    return layernorm_pallas(x, params["norm"]["g"], params["norm"]["b"])


# ----------------------------------------------------------------------------
# Embedding + positional encoding (gather + sin/cos stay in plain JAX glue)
# ----------------------------------------------------------------------------
def positional_encoding(max_len, d_model):
    pos = jnp.arange(max_len, dtype=jnp.float32)[:, None]
    div = jnp.exp(jnp.arange(0, d_model, 2, dtype=jnp.float32)
                  * (-math.log(10000.0) / d_model))
    pe = jnp.zeros((max_len, d_model), jnp.float32)
    pe = pe.at[:, 0::2].set(jnp.sin(pos * div))
    pe = pe.at[:, 1::2].set(jnp.cos(pos * div))
    return pe[None]              # (1, max_len, d_model)


def embed(table, tokens, d_model, pe):
    x = jnp.take(table, tokens, axis=0) * math.sqrt(d_model)
    return x + pe[:, : tokens.shape[1]]


@functools.partial(jax.jit, static_argnames=("d_model", "num_heads"))
def encoder_decoder_forward(params, source, target, source_mask, target_mask,
                            *, d_model, num_heads):
    pe = params["pe"]
    src_x = embed(params["src_emb"], source, d_model, pe)
    tgt_x = embed(params["tgt_emb"], target, d_model, pe)
    memory = encoder(params["encoder"], src_x, source_mask, num_heads)
    return decoder(params["decoder"], tgt_x, memory, source_mask, target_mask, num_heads)


# ----------------------------------------------------------------------------
# Deterministic parameter construction (weights stored bf16 for the MXU)
# ----------------------------------------------------------------------------
def init_params(key, *, d_model, d_ff, h, n_layers, vocab, max_len):
    keys = iter(jax.random.split(key, 512))

    def lin(din, dout):
        w = (jax.random.normal(next(keys), (din, dout), jnp.float32)
             * (1.0 / math.sqrt(din))).astype(jnp.bfloat16)
        b = jnp.zeros((dout,), jnp.float32)
        return w, b

    def self_attn_params():
        w_qkv, b_qkv = lin(d_model, 3 * d_model)      # fused Q|K|V projection
        w_o, b_o = lin(d_model, d_model)
        return dict(w_qkv=w_qkv, b_qkv=b_qkv, w_o=w_o, b_o=b_o)

    def cross_attn_params():
        w_q, b_q = lin(d_model, d_model)
        w_kv, b_kv = lin(d_model, 2 * d_model)        # fused K|V projection
        w_o, b_o = lin(d_model, d_model)
        return dict(w_q=w_q, b_q=b_q, w_kv=w_kv, b_kv=b_kv, w_o=w_o, b_o=b_o)

    def ff_params():
        w1, b1 = lin(d_model, d_ff)
        w2, b2 = lin(d_ff, d_model)
        return dict(w1=w1, b1=b1, w2=w2, b2=b2)

    def norm_params():
        return dict(g=jnp.ones((d_model,), jnp.float32),
                    b=jnp.zeros((d_model,), jnp.float32))

    enc_layers = [dict(self_attn=self_attn_params(), ff=ff_params(),
                       norm1=norm_params(), norm2=norm_params())
                  for _ in range(n_layers)]
    dec_layers = [dict(self_attn=self_attn_params(), src_attn=cross_attn_params(),
                       ff=ff_params(), norm1=norm_params(), norm2=norm_params(),
                       norm3=norm_params())
                  for _ in range(n_layers)]

    src_emb = jax.random.normal(next(keys), (vocab, d_model), jnp.float32) * 0.1
    tgt_emb = jax.random.normal(next(keys), (vocab, d_model), jnp.float32) * 0.1

    # TODO(synk): the generator (final linear + log_softmax) exists in __init__
    # of the reference module but is not applied in forward(), so it is not
    # instantiated here.
    return dict(
        pe=positional_encoding(max_len, d_model),
        src_emb=src_emb, tgt_emb=tgt_emb,
        encoder=dict(layers=enc_layers, norm=norm_params()),
        decoder=dict(layers=dec_layers, norm=norm_params()),
    )


# ----------------------------------------------------------------------------
# Demo
# ----------------------------------------------------------------------------
if __name__ == "__main__":
    B, Ls, Lt = 2, 8, 8
    d_model, d_ff, h, n_layers, vocab = 32, 64, 4, 2, 16

    key = jax.random.PRNGKey(0)
    k_param, k_src, k_tgt = jax.random.split(key, 3)

    params = init_params(k_param, d_model=d_model, d_ff=d_ff, h=h,
                         n_layers=n_layers, vocab=vocab, max_len=64)

    source = jax.random.randint(k_src, (B, Ls), 0, vocab, dtype=jnp.int32)
    target = jax.random.randint(k_tgt, (B, Lt), 0, vocab, dtype=jnp.int32)
    source_mask = jnp.ones((B, 1, Ls), jnp.float32)
    target_mask = jnp.broadcast_to(
        jnp.tril(jnp.ones((Lt, Lt), jnp.float32))[None], (B, Lt, Lt))

    out = encoder_decoder_forward(params, source, target, source_mask, target_mask,
                                  d_model=d_model, num_heads=h)
    out = jax.block_until_ready(out)
    assert out.shape == (B, Lt, d_model)
    assert bool(jnp.all(jnp.isfinite(out)))
    print("KERNEL_OK")
</pallas_src>

<mosaic_0001>
module attributes {stable_mosaic.version = 11 : i64} {
  func.func @_attn_kernel(%arg0: i32, %arg1: memref<1x8x32xf32, #tpu.memory_space<vmem>>, %arg2: memref<1x8x32xf32, #tpu.memory_space<vmem>>, %arg3: memref<1x8x32xf32, #tpu.memory_space<vmem>>, %arg4: memref<1x8x8xf32, #tpu.memory_space<vmem>>, %arg5: memref<1x8x32xf32, #tpu.memory_space<vmem>>) attributes {dimension_semantics = [#tpu.dimension_semantics<parallel>], iteration_bounds = array<i64: 2>, scalar_prefetch = 0 : i64, scratch_operands = 0 : i64, tpu.core_type = #tpu.core_type<tc>, window_params = [{transform_indices = @transform_0, window_bounds = array<i64: 1, 8, 32>}, {transform_indices = @transform_1, window_bounds = array<i64: 1, 8, 32>}, {transform_indices = @transform_2, window_bounds = array<i64: 1, 8, 32>}, {transform_indices = @transform_3, window_bounds = array<i64: 1, 8, 8>}, {transform_indices = @transform_4, window_bounds = array<i64: 1, 8, 32>}]} {
    %c0 = arith.constant 0 : index
    %c0_0 = arith.constant 0 : index
    %c0_1 = arith.constant 0 : index
    %0 = vector.load %arg1[%c0, %c0_0, %c0_1] : memref<1x8x32xf32, #tpu.memory_space<vmem>>, vector<1x8x32xf32>
    %1 = vector.shape_cast %0 : vector<1x8x32xf32> to vector<8x32xf32>
    %2 = arith.truncf %1 : vector<8x32xf32> to vector<8x32xbf16>
    %c0_2 = arith.constant 0 : index
    %c0_3 = arith.constant 0 : index
    %c0_4 = arith.constant 0 : index
    %3 = vector.load %arg2[%c0_2, %c0_3, %c0_4] : memref<1x8x32xf32, #tpu.memory_space<vmem>>, vector<1x8x32xf32>
    %4 = vector.shape_cast %3 : vector<1x8x32xf32> to vector<8x32xf32>
    %5 = arith.truncf %4 : vector<8x32xf32> to vector<8x32xbf16>
    %c0_5 = arith.constant 0 : index
    %c0_6 = arith.constant 0 : index
    %c0_7 = arith.constant 0 : index
    %6 = vector.load %arg3[%c0_5, %c0_6, %c0_7] : memref<1x8x32xf32, #tpu.memory_space<vmem>>, vector<1x8x32xf32>
    %7 = vector.shape_cast %6 : vector<1x8x32xf32> to vector<8x32xf32>
    %8 = arith.truncf %7 : vector<8x32xf32> to vector<8x32xbf16>
    %c0_8 = arith.constant 0 : index
    %c0_9 = arith.constant 0 : index
    %c0_10 = arith.constant 0 : index
    %9 = vector.load %arg4[%c0_8, %c0_9, %c0_10] : memref<1x8x8xf32, #tpu.memory_space<vmem>>, vector<1x8x8xf32>
    %10 = vector.shape_cast %9 : vector<1x8x8xf32> to vector<8x8xf32>
    %11 = vector.extract_strided_slice %2 {offsets = [0, 0], sizes = [8, 8], strides = [1, 1]} : vector<8x32xbf16> to vector<8x8xbf16>
    %12 = vector.extract_strided_slice %5 {offsets = [0, 0], sizes = [8, 8], strides = [1, 1]} : vector<8x32xbf16> to vector<8x8xbf16>
    %cst = arith.constant dense<0.000000e+00> : vector<8x8xf32>
    %13 = tpu.matmul %11, %12, %cst {dimension_numbers = #tpu.dot_dimension_numbers<[1], [1], [0], [0], [0, 0, 1, 0], [], []>} : vector<8x8xbf16>, vector<8x8xbf16>, vector<8x8xf32> -> vector<8x8xf32>
    %cst_11 = arith.constant 0.353553385 : f32
    %14 = vector.broadcast %cst_11 : f32 to vector<8x8xf32>
    %15 = arith.mulf %13, %14 : vector<8x8xf32>
    %cst_12 = arith.constant 5.000000e-01 : f32
    %16 = vector.broadcast %cst_12 : f32 to vector<8x8xf32>
    %17 = arith.cmpf olt, %10, %16 : vector<8x8xf32>
    %cst_13 = arith.constant -1.000000e+09 : f32
    %18 = vector.broadcast %cst_13 : f32 to vector<8x8xf32>
    %19 = arith.select %17, %18, %15 : vector<8x8xi1>, vector<8x8xf32>
    %cst_14 = arith.constant dense<0xFF800000> : vector<8xf32>
    %20 = vector.multi_reduction <maximumf>, %19, %cst_14 [1] : vector<8x8xf32> to vector<8xf32>
    %21 = vector.shape_cast %20 : vector<8xf32> to vector<8x1xf32>
    %22 = vector.broadcast %21 : vector<8x1xf32> to vector<8x8xf32>
    %23 = arith.subf %19, %22 : vector<8x8xf32>
    %24 = math.exp %23 : vector<8x8xf32>
    %cst_15 = arith.constant dense<0.000000e+00> : vector<8xf32>
    %25 = vector.multi_reduction <add>, %24, %cst_15 [1] : vector<8x8xf32> to vector<8xf32>
    %26 = vector.shape_cast %25 : vector<8xf32> to vector<8x1xf32>
    %27 = tpu.reciprocal %26 {approx = true} : vector<8x1xf32> -> vector<8x1xf32>
    %28 = vector.broadcast %27 : vector<8x1xf32> to vector<8x8xf32>
    %29 = arith.mulf %24, %28 : vector<8x8xf32>
    %30 = arith.truncf %29 : vector<8x8xf32> to vector<8x8xbf16>
    %31 = vector.extract_strided_slice %8 {offsets = [0, 0], sizes = [8, 8], strides = [1, 1]} : vector<8x32xbf16> to vector<8x8xbf16>
    %cst_16 = arith.constant dense<0.000000e+00> : vector<8x8xf32>
    %32 = tpu.matmul %30, %31, %cst_16 {dimension_numbers = #tpu.dot_dimension_numbers<[1], [0], [0], [1], [0, 0, 1, 1], [], []>} : vector<8x8xbf16>, vector<8x8xbf16>, vector<8x8xf32> -> vector<8x8xf32>
    %33 = vector.extract_strided_slice %2 {offsets = [0, 8], sizes = [8, 8], strides = [1, 1]} : vector<8x32xbf16> to vector<8x8xbf16>
    %34 = vector.extract_strided_slice %5 {offsets = [0, 8], sizes = [8, 8], strides = [1, 1]} : vector<8x32xbf16> to vector<8x8xbf16>
    %cst_17 = arith.constant dense<0.000000e+00> : vector<8x8xf32>
    %35 = tpu.matmul %33, %34, %cst_17 {dimension_numbers = #tpu.dot_dimension_numbers<[1], [1], [0], [0], [0, 0, 1, 0], [], []>} : vector<8x8xbf16>, vector<8x8xbf16>, vector<8x8xf32> -> vector<8x8xf32>
    %cst_18 = arith.constant 0.353553385 : f32
    %36 = vector.broadcast %cst_18 : f32 to vector<8x8xf32>
    %37 = arith.mulf %35, %36 : vector<8x8xf32>
    %cst_19 = arith.constant 5.000000e-01 : f32
    %38 = vector.broadcast %cst_19 : f32 to vector<8x8xf32>
    %39 = arith.cmpf olt, %10, %38 : vector<8x8xf32>
    %cst_20 = arith.constant -1.000000e+09 : f32
    %40 = vector.broadcast %cst_20 : f32 to vector<8x8xf32>
    %41 = arith.select %39, %40, %37 : vector<8x8xi1>, vector<8x8xf32>
    %cst_21 = arith.constant dense<0xFF800000> : vector<8xf32>
    %42 = vector.multi_reduction <maximumf>, %41, %cst_21 [1] : vector<8x8xf32> to vector<8xf32>
    %43 = vector.shape_cast %42 : vector<8xf32> to vector<8x1xf32>
    %44 = vector.broadcast %43 : vector<8x1xf32> to vector<8x8xf32>
    %45 = arith.subf %41, %44 : vector<8x8xf32>
    %46 = math.exp %45 : vector<8x8xf32>
    %cst_22 = arith.constant dense<0.000000e+00> : vector<8xf32>
    %47 = vector.multi_reduction <add>, %46, %cst_22 [1] : vector<8x8xf32> to vector<8xf32>
    %48 = vector.shape_cast %47 : vector<8xf32> to vector<8x1xf32>
    %49 = tpu.reciprocal %48 {approx = true} : vector<8x1xf32> -> vector<8x1xf32>
    %50 = vector.broadcast %49 : vector<8x1xf32> to vector<8x8xf32>
    %51 = arith.mulf %46, %50 : vector<8x8xf32>
    %52 = arith.truncf %51 : vector<8x8xf32> to vector<8x8xbf16>
    %53 = vector.extract_strided_slice %8 {offsets = [0, 8], sizes = [8, 8], strides = [1, 1]} : vector<8x32xbf16> to vector<8x8xbf16>
    %cst_23 = arith.constant dense<0.000000e+00> : vector<8x8xf32>
    %54 = tpu.matmul %52, %53, %cst_23 {dimension_numbers = #tpu.dot_dimension_numbers<[1], [0], [0], [1], [0, 0, 1, 1], [], []>} : vector<8x8xbf16>, vector<8x8xbf16>, vector<8x8xf32> -> vector<8x8xf32>
    %55 = vector.extract_strided_slice %2 {offsets = [0, 16], sizes = [8, 8], strides = [1, 1]} : vector<8x32xbf16> to vector<8x8xbf16>
    %56 = vector.extract_strided_slice %5 {offsets = [0, 16], sizes = [8, 8], strides = [1, 1]} : vector<8x32xbf16> to vector<8x8xbf16>
    %cst_24 = arith.constant dense<0.000000e+00> : vector<8x8xf32>
    %57 = tpu.matmul %55, %56, %cst_24 {dimension_numbers = #tpu.dot_dimension_numbers<[1], [1], [0], [0], [0, 0, 1, 0], [], []>} : vector<8x8xbf16>, vector<8x8xbf16>, vector<8x8xf32> -> vector<8x8xf32>
    %cst_25 = arith.constant 0.353553385 : f32
    %58 = vector.broadcast %cst_25 : f32 to vector<8x8xf32>
    %59 = arith.mulf %57, %58 : vector<8x8xf32>
    %cst_26 = arith.constant 5.000000e-01 : f32
    %60 = vector.broadcast %cst_26 : f32 to vector<8x8xf32>
    %61 = arith.cmpf olt, %10, %60 : vector<8x8xf32>
    %cst_27 = arith.constant -1.000000e+09 : f32
    %62 = vector.broadcast %cst_27 : f32 to vector<8x8xf32>
    %63 = arith.select %61, %62, %59 : vector<8x8xi1>, vector<8x8xf32>
    %cst_28 = arith.constant dense<0xFF800000> : vector<8xf32>
    %64 = vector.multi_reduction <maximumf>, %63, %cst_28 [1] : vector<8x8xf32> to vector<8xf32>
    %65 = vector.shape_cast %64 : vector<8xf32> to vector<8x1xf32>
    %66 = vector.broadcast %65 : vector<8x1xf32> to vector<8x8xf32>
    %67 = arith.subf %63, %66 : vector<8x8xf32>
    %68 = math.exp %67 : vector<8x8xf32>
    %cst_29 = arith.constant dense<0.000000e+00> : vector<8xf32>
    %69 = vector.multi_reduction <add>, %68, %cst_29 [1] : vector<8x8xf32> to vector<8xf32>
    %70 = vector.shape_cast %69 : vector<8xf32> to vector<8x1xf32>
    %71 = tpu.reciprocal %70 {approx = true} : vector<8x1xf32> -> vector<8x1xf32>
    %72 = vector.broadcast %71 : vector<8x1xf32> to vector<8x8xf32>
    %73 = arith.mulf %68, %72 : vector<8x8xf32>
    %74 = arith.truncf %73 : vector<8x8xf32> to vector<8x8xbf16>
    %75 = vector.extract_strided_slice %8 {offsets = [0, 16], sizes = [8, 8], strides = [1, 1]} : vector<8x32xbf16> to vector<8x8xbf16>
    %cst_30 = arith.constant dense<0.000000e+00> : vector<8x8xf32>
    %76 = tpu.matmul %74, %75, %cst_30 {dimension_numbers = #tpu.dot_dimension_numbers<[1], [0], [0], [1], [0, 0, 1, 1], [], []>} : vector<8x8xbf16>, vector<8x8xbf16>, vector<8x8xf32> -> vector<8x8xf32>
    %77 = vector.extract_strided_slice %2 {offsets = [0, 24], sizes = [8, 8], strides = [1, 1]} : vector<8x32xbf16> to vector<8x8xbf16>
    %78 = vector.extract_strided_slice %5 {offsets = [0, 24], sizes = [8, 8], strides = [1, 1]} : vector<8x32xbf16> to vector<8x8xbf16>
    %cst_31 = arith.constant dense<0.000000e+00> : vector<8x8xf32>
    %79 = tpu.matmul %77, %78, %cst_31 {dimension_numbers = #tpu.dot_dimension_numbers<[1], [1], [0], [0], [0, 0, 1, 0], [], []>} : vector<8x8xbf16>, vector<8x8xbf16>, vector<8x8xf32> -> vector<8x8xf32>
    %cst_32 = arith.constant 0.353553385 : f32
    %80 = vector.broadcast %cst_32 : f32 to vector<8x8xf32>
    %81 = arith.mulf %79, %80 : vector<8x8xf32>
    %cst_33 = arith.constant 5.000000e-01 : f32
    %82 = vector.broadcast %cst_33 : f32 to vector<8x8xf32>
    %83 = arith.cmpf olt, %10, %82 : vector<8x8xf32>
    %cst_34 = arith.constant -1.000000e+09 : f32
    %84 = vector.broadcast %cst_34 : f32 to vector<8x8xf32>
    %85 = arith.select %83, %84, %81 : vector<8x8xi1>, vector<8x8xf32>
    %cst_35 = arith.constant dense<0xFF800000> : vector<8xf32>
    %86 = vector.multi_reduction <maximumf>, %85, %cst_35 [1] : vector<8x8xf32> to vector<8xf32>
    %87 = vector.shape_cast %86 : vector<8xf32> to vector<8x1xf32>
    %88 = vector.broadcast %87 : vector<8x1xf32> to vector<8x8xf32>
    %89 = arith.subf %85, %88 : vector<8x8xf32>
    %90 = math.exp %89 : vector<8x8xf32>
    %cst_36 = arith.constant dense<0.000000e+00> : vector<8xf32>
    %91 = vector.multi_reduction <add>, %90, %cst_36 [1] : vector<8x8xf32> to vector<8xf32>
    %92 = vector.shape_cast %91 : vector<8xf32> to vector<8x1xf32>
    %93 = tpu.reciprocal %92 {approx = true} : vector<8x1xf32> -> vector<8x1xf32>
    %94 = vector.broadcast %93 : vector<8x1xf32> to vector<8x8xf32>
    %95 = arith.mulf %90, %94 : vector<8x8xf32>
    %96 = arith.truncf %95 : vector<8x8xf32> to vector<8x8xbf16>
    %97 = vector.extract_strided_slice %8 {offsets = [0, 24], sizes = [8, 8], strides = [1, 1]} : vector<8x32xbf16> to vector<8x8xbf16>
    %cst_37 = arith.constant dense<0.000000e+00> : vector<8x8xf32>
    %98 = tpu.matmul %96, %97, %cst_37 {dimension_numbers = #tpu.dot_dimension_numbers<[1], [0], [0], [1], [0, 0, 1, 1], [], []>} : vector<8x8xbf16>, vector<8x8xbf16>, vector<8x8xf32> -> vector<8x8xf32>
    %99 = tpu.concatenate %32, %54, %76, %98 in 1 : vector<8x8xf32>, vector<8x8xf32>, vector<8x8xf32>, vector<8x8xf32> -> vector<8x32xf32>
    %c0_38 = arith.constant 0 : index
    %c0_39 = arith.constant 0 : index
    %c0_40 = arith.constant 0 : index
    %100 = vector.load %arg5[%c0_38, %c0_39, %c0_40] : memref<1x8x32xf32, #tpu.memory_space<vmem>>, vector<1x8x32xf32>
    %101 = vector.shape_cast %100 : vector<1x8x32xf32> to vector<8x32xf32>
    %102 = vector.shape_cast %99 : vector<8x32xf32> to vector<1x8x32xf32>
    tpu.vector_store %arg5[%c0_38, %c0_39, %c0_40], %102 {strides = array<i32>} : memref<1x8x32xf32, #tpu.memory_space<vmem>>, vector<1x8x32xf32>,
    return
  }
  func.func @transform_0(%arg0: i32) -> (i32, i32, i32) {
    %c0_i32 = arith.constant 0 : i32
    %c0_i32_0 = arith.constant 0 : i32
    %c0_i32_1 = arith.constant 0 : i32
    return %arg0, %c0_i32, %c0_i32_0 : i32, i32, i32
  }
  func.func @transform_1(%arg0: i32) -> (i32, i32, i32) {
    %c0_i32 = arith.constant 0 : i32
    %c0_i32_0 = arith.constant 0 : i32
    %c0_i32_1 = arith.constant 0 : i32
    return %arg0, %c0_i32, %c0_i32_0 : i32, i32, i32
  }
  func.func @transform_2(%arg0: i32) -> (i32, i32, i32) {
    %c0_i32 = arith.constant 0 : i32
    %c0_i32_0 = arith.constant 0 : i32
    %c0_i32_1 = arith.constant 0 : i32
    return %arg0, %c0_i32, %c0_i32_0 : i32, i32, i32
  }
  func.func @transform_3(%arg0: i32) -> (i32, i32, i32) {
    %c0_i32 = arith.constant 0 : i32
    %c0_i32_0 = arith.constant 0 : i32
    %c0_i32_1 = arith.constant 0 : i32
    return %arg0, %c0_i32, %c0_i32_0 : i32, i32, i32
  }
  func.func @transform_4(%arg0: i32) -> (i32, i32, i32) {
    %c0_i32 = arith.constant 0 : i32
    %c0_i32_0 = arith.constant 0 : i32
    %c0_i32_1 = arith.constant 0 : i32
    return %arg0, %c0_i32, %c0_i32_0 : i32, i32, i32
  }
}

module attributes {stable_mosaic.version = 11 : i64} {
  func.func @_linear_kernel(%arg0: i32, %arg1: i32, %arg2: memref<8x32xf32, #tpu.memory_space<vmem>>, %arg3: memref<32x32xbf16, #tpu.memory_space<vmem>>, %arg4: memref<1x32xf32, #tpu.memory_space<vmem>>, %arg5: memref<8x32xf32, #tpu.memory_space<vmem>>, %arg6: memref<8x32xf32, #tpu.memory_space<vmem>>) attributes {dimension_semantics = [#tpu.dimension_semantics<parallel>, #tpu.dimension_semantics<parallel>], iteration_bounds = array<i64: 2, 1>, scalar_prefetch = 0 : i64, scratch_operands = 0 : i64, tpu.core_type = #tpu.core_type<tc>, window_params = [{transform_indices = @transform_0, window_bounds = array<i64: 8, 32>}, {transform_indices = @transform_1, window_bounds = array<i64: 32, 32>}, {transform_indices = @transform_2, window_bounds = array<i64: 1, 32>}, {transform_indices = @transform_3, window_bounds = array<i64: 8, 32>}, {transform_indices = @transform_4, window_bounds = array<i64: 8, 32>}]} {
    %c0 = arith.constant 0 : index
    %c0_0 = arith.constant 0 : index
    %0 = vector.load %arg2[%c0, %c0_0] : memref<8x32xf32, #tpu.memory_space<vmem>>, vector<8x32xf32>
    %1 = arith.truncf %0 : vector<8x32xf32> to vector<8x32xbf16>
    %c0_1 = arith.constant 0 : index
    %c0_2 = arith.constant 0 : index
    %2 = vector.load %arg3[%c0_1, %c0_2] : memref<32x32xbf16, #tpu.memory_space<vmem>>, vector<32x32xbf16>
    %cst = arith.constant dense<0.000000e+00> : vector<8x32xf32>
    %3 = tpu.matmul %1, %2, %cst {dimension_numbers = #tpu.dot_dimension_numbers<[1], [0], [0], [1], [0, 0, 1, 1], [], []>} : vector<8x32xbf16>, vector<32x32xbf16>, vector<8x32xf32> -> vector<8x32xf32>
    %c0_3 = arith.constant 0 : index
    %c0_4 = arith.constant 0 : index
    %4 = vector.load %arg4[%c0_3, %c0_4] : memref<1x32xf32, #tpu.memory_space<vmem>>, vector<1x32xf32>
    %5 = vector.broadcast %4 : vector<1x32xf32> to vector<8x32xf32>
    %6 = arith.addf %3, %5 : vector<8x32xf32>
    %c0_5 = arith.constant 0 : index
    %c0_6 = arith.constant 0 : index
    %7 = vector.load %arg5[%c0_5, %c0_6] : memref<8x32xf32, #tpu.memory_space<vmem>>, vector<8x32xf32>
    %8 = arith.addf %6, %7 : vector<8x32xf32>
    %c0_7 = arith.constant 0 : index
    %c0_8 = arith.constant 0 : index
    %9 = vector.load %arg6[%c0_7, %c0_8] : memref<8x32xf32, #tpu.memory_space<vmem>>, vector<8x32xf32>
    tpu.vector_store %arg6[%c0_7, %c0_8], %8 {strides = array<i32>} : memref<8x32xf32, #tpu.memory_space<vmem>>, vector<8x32xf32>,
    return
  }
  func.func @transform_0(%arg0: i32, %arg1: i32) -> (i32, i32) {
    %c0_i32 = arith.constant 0 : i32
    %c0_i32_0 = arith.constant 0 : i32
    return %arg0, %c0_i32 : i32, i32
  }
  func.func @transform_1(%arg0: i32, %arg1: i32) -> (i32, i32) {
    %c0_i32 = arith.constant 0 : i32
    %c0_i32_0 = arith.constant 0 : i32
    return %c0_i32, %arg1 : i32, i32
  }
  func.func @transform_2(%arg0: i32, %arg1: i32) -> (i32, i32) {
    %c0_i32 = arith.constant 0 : i32
    %c0_i32_0 = arith.constant 0 : i32
    return %c0_i32, %arg1 : i32, i32
  }
  func.func @transform_3(%arg0: i32, %arg1: i32) -> (i32, i32) {
    %c0_i32 = arith.constant 0 : i32
    return %arg0, %arg1 : i32, i32
  }
  func.func @transform_4(%arg0: i32, %arg1: i32) -> (i32, i32) {
    %c0_i32 = arith.constant 0 : i32
    return %arg0, %arg1 : i32, i32
  }
}

module attributes {stable_mosaic.version = 11 : i64} {
  func.func @_linear_kernel(%arg0: i32, %arg1: i32, %arg2: memref<8x32xf32, #tpu.memory_space<vmem>>, %arg3: memref<32x96xbf16, #tpu.memory_space<vmem>>, %arg4: memref<1x96xf32, #tpu.memory_space<vmem>>, %arg5: memref<1x32xf32, #tpu.memory_space<vmem>>, %arg6: memref<1x32xf32, #tpu.memory_space<vmem>>, %arg7: memref<8x96xf32, #tpu.memory_space<vmem>>) attributes {dimension_semantics = [#tpu.dimension_semantics<parallel>, #tpu.dimension_semantics<parallel>], iteration_bounds = array<i64: 2, 1>, scalar_prefetch = 0 : i64, scratch_operands = 0 : i64, tpu.core_type = #tpu.core_type<tc>, window_params = [{transform_indices = @transform_0, window_bounds = array<i64: 8, 32>}, {transform_indices = @transform_1, window_bounds = array<i64: 32, 96>}, {transform_indices = @transform_2, window_bounds = array<i64: 1, 96>}, {pipeline_mode = #tpu.pipeline_mode<synchronous>, transform_indices = @transform_3, window_bounds = array<i64: 1, 32>}, {pipeline_mode = #tpu.pipeline_mode<synchronous>, transform_indices = @transform_4, window_bounds = array<i64: 1, 32>}, {transform_indices = @transform_5, window_bounds = array<i64: 8, 96>}]} {
    %c0 = arith.constant 0 : index
    %c0_0 = arith.constant 0 : index
    %0 = vector.load %arg2[%c0, %c0_0] : memref<8x32xf32, #tpu.memory_space<vmem>>, vector<8x32xf32>
    %cst = arith.constant dense<0.000000e+00> : vector<8xf32>
    %1 = vector.multi_reduction <add>, %0, %cst [1] : vector<8x32xf32> to vector<8xf32>
    %2 = vector.shape_cast %1 : vector<8xf32> to vector<8x1xf32>
    %cst_1 = arith.constant 3.200000e+01 : f32
    %3 = vector.broadcast %cst_1 : f32 to vector<8x1xf32>
    %4 = arith.divf %2, %3 : vector<8x1xf32>
    %5 = vector.broadcast %4 : vector<8x1xf32> to vector<8x32xf32>
    %6 = arith.subf %0, %5 : vector<8x32xf32>
    %7 = arith.mulf %6, %6 : vector<8x32xf32>
    %cst_2 = arith.constant dense<0.000000e+00> : vector<8xf32>
    %8 = vector.multi_reduction <add>, %7, %cst_2 [1] : vector<8x32xf32> to vector<8xf32>
    %9 = vector.shape_cast %8 : vector<8xf32> to vector<8x1xf32>
    %cst_3 = arith.constant 0.0322580636 : f32
    %10 = vector.broadcast %cst_3 : f32 to vector<8x1xf32>
    %11 = arith.mulf %9, %10 : vector<8x1xf32>
    %c0_4 = arith.constant 0 : index
    %c0_5 = arith.constant 0 : index
    %12 = vector.load %arg5[%c0_4, %c0_5] : memref<1x32xf32, #tpu.memory_space<vmem>>, vector<1x32xf32>
    %13 = vector.broadcast %12 : vector<1x32xf32> to vector<8x32xf32>
    %14 = arith.mulf %13, %6 : vector<8x32xf32>
    %15 = math.sqrt %11 : vector<8x1xf32>
    %cst_6 = arith.constant 9.99999997E-7 : f32
    %16 = vector.broadcast %cst_6 : f32 to vector<8x1xf32>
    %17 = arith.addf %15, %16 : vector<8x1xf32>
    %18 = vector.broadcast %17 : vector<8x1xf32> to vector<8x32xf32>
    %19 = arith.divf %14, %18 : vector<8x32xf32>
    %c0_7 = arith.constant 0 : index
    %c0_8 = arith.constant 0 : index
    %20 = vector.load %arg6[%c0_7, %c0_8] : memref<1x32xf32, #tpu.memory_space<vmem>>, vector<1x32xf32>
    %21 = vector.broadcast %20 : vector<1x32xf32> to vector<8x32xf32>
    %22 = arith.addf %19, %21 : vector<8x32xf32>
    %23 = arith.truncf %22 : vector<8x32xf32> to vector<8x32xbf16>
    %c0_9 = arith.constant 0 : index
    %c0_10 = arith.constant 0 : index
    %24 = vector.load %arg3[%c0_9, %c0_10] : memref<32x96xbf16, #tpu.memory_space<vmem>>, vector<32x96xbf16>
    %cst_11 = arith.constant dense<0.000000e+00> : vector<8x96xf32>
    %25 = tpu.matmul %23, %24, %cst_11 {dimension_numbers = #tpu.dot_dimension_numbers<[1], [0], [0], [1], [0, 0, 1, 1], [], []>} : vector<8x32xbf16>, vector<32x96xbf16>, vector<8x96xf32> -> vector<8x96xf32>
    %c0_12 = arith.constant 0 : index
    %c0_13 = arith.constant 0 : index
    %26 = vector.load %arg4[%c0_12, %c0_13] : memref<1x96xf32, #tpu.memory_space<vmem>>, vector<1x96xf32>
    %27 = vector.broadcast %26 : vector<1x96xf32> to vector<8x96xf32>
    %28 = arith.addf %25, %27 : vector<8x96xf32>
    %c0_14 = arith.constant 0 : index
    %c0_15 = arith.constant 0 : index
    %29 = vector.load %arg7[%c0_14, %c0_15] : memref<8x96xf32, #tpu.memory_space<vmem>>, vector<8x96xf32>
    tpu.vector_store %arg7[%c0_14, %c0_15], %28 {strides = array<i32>} : memref<8x96xf32, #tpu.memory_space<vmem>>, vector<8x96xf32>,
    return
  }
  func.func @transform_0(%arg0: i32, %arg1: i32) -> (i32, i32) {
    %c0_i32 = arith.constant 0 : i32
    %c0_i32_0 = arith.constant 0 : i32
    return %arg0, %c0_i32 : i32, i32
  }
  func.func @transform_1(%arg0: i32, %arg1: i32) -> (i32, i32) {
    %c0_i32 = arith.constant 0 : i32
    %c0_i32_0 = arith.constant 0 : i32
    return %c0_i32, %arg1 : i32, i32
  }
  func.func @transform_2(%arg0: i32, %arg1: i32) -> (i32, i32) {
    %c0_i32 = arith.constant 0 : i32
    %c0_i32_0 = arith.constant 0 : i32
    return %c0_i32, %arg1 : i32, i32
  }
  func.func @transform_3(%arg0: i32, %arg1: i32) -> (i32, i32) {
    %c0_i32 = arith.constant 0 : i32
    %c0_i32_0 = arith.constant 0 : i32
    %c0_i32_1 = arith.constant 0 : i32
    return %c0_i32, %c0_i32_0 : i32, i32
  }
  func.func @transform_4(%arg0: i32, %arg1: i32) -> (i32, i32) {
    %c0_i32 = arith.constant 0 : i32
    %c0_i32_0 = arith.constant 0 : i32
    %c0_i32_1 = arith.constant 0 : i32
    return %c0_i32, %c0_i32_0 : i32, i32
  }
  func.func @transform_5(%arg0: i32, %arg1: i32) -> (i32, i32) {
    %c0_i32 = arith.constant 0 : i32
    return %arg0, %arg1 : i32, i32
  }
}

module attributes {stable_mosaic.version = 11 : i64} {
  func.func @_linear_kernel(%arg0: i32, %arg1: i32, %arg2: memref<8x32xf32, #tpu.memory_space<vmem>>, %arg3: memref<32x32xbf16, #tpu.memory_space<vmem>>, %arg4: memref<1x32xf32, #tpu.memory_space<vmem>>, %arg5: memref<1x32xf32, #tpu.memory_space<vmem>>, %arg6: memref<1x32xf32, #tpu.memory_space<vmem>>, %arg7: memref<8x32xf32, #tpu.memory_space<vmem>>) attributes {dimension_semantics = [#tpu.dimension_semantics<parallel>, #tpu.dimension_semantics<parallel>], iteration_bounds = array<i64: 2, 1>, scalar_prefetch = 0 : i64, scratch_operands = 0 : i64, tpu.core_type = #tpu.core_type<tc>, window_params = [{transform_indices = @transform_0, window_bounds = array<i64: 8, 32>}, {transform_indices = @transform_1, window_bounds = array<i64: 32, 32>}, {transform_indices = @transform_2, window_bounds = array<i64: 1, 32>}, {pipeline_mode = #tpu.pipeline_mode<synchronous>, transform_indices = @transform_3, window_bounds = array<i64: 1, 32>}, {pipeline_mode = #tpu.pipeline_mode<synchronous>, transform_indices = @transform_4, window_bounds = array<i64: 1, 32>}, {transform_indices = @transform_5, window_bounds = array<i64: 8, 32>}]} {
    %c0 = arith.constant 0 : index
    %c0_0 = arith.constant 0 : index
    %0 = vector.load %arg2[%c0, %c0_0] : memref<8x32xf32, #tpu.memory_space<vmem>>, vector<8x32xf32>
    %cst = arith.constant dense<0.000000e+00> : vector<8xf32>
    %1 = vector.multi_reduction <add>, %0, %cst [1] : vector<8x32xf32> to vector<8xf32>
    %2 = vector.shape_cast %1 : vector<8xf32> to vector<8x1xf32>
    %cst_1 = arith.constant 3.200000e+01 : f32
    %3 = vector.broadcast %cst_1 : f32 to vector<8x1xf32>
    %4 = arith.divf %2, %3 : vector<8x1xf32>
    %5 = vector.broadcast %4 : vector<8x1xf32> to vector<8x32xf32>
    %6 = arith.subf %0, %5 : vector<8x32xf32>
    %7 = arith.mulf %6, %6 : vector<8x32xf32>
    %cst_2 = arith.constant dense<0.000000e+00> : vector<8xf32>
    %8 = vector.multi_reduction <add>, %7, %cst_2 [1] : vector<8x32xf32> to vector<8xf32>
    %9 = vector.shape_cast %8 : vector<8xf32> to vector<8x1xf32>
    %cst_3 = arith.constant 0.0322580636 : f32
    %10 = vector.broadcast %cst_3 : f32 to vector<8x1xf32>
    %11 = arith.mulf %9, %10 : vector<8x1xf32>
    %c0_4 = arith.constant 0 : index
    %c0_5 = arith.constant 0 : index
    %12 = vector.load %arg5[%c0_4, %c0_5] : memref<1x32xf32, #tpu.memory_space<vmem>>, vector<1x32xf32>
    %13 = vector.broadcast %12 : vector<1x32xf32> to vector<8x32xf32>
    %14 = arith.mulf %13, %6 : vector<8x32xf32>
    %15 = math.sqrt %11 : vector<8x1xf32>
    %cst_6 = arith.constant 9.99999997E-7 : f32
    %16 = vector.broadcast %cst_6 : f32 to vector<8x1xf32>
    %17 = arith.addf %15, %16 : vector<8x1xf32>
    %18 = vector.broadcast %17 : vector<8x1xf32> to vector<8x32xf32>
    %19 = arith.divf %14, %18 : vector<8x32xf32>
    %c0_7 = arith.constant 0 : index
    %c0_8 = arith.constant 0 : index
    %20 = vector.load %arg6[%c0_7, %c0_8] : memref<1x32xf32, #tpu.memory_space<vmem>>, vector<1x32xf32>
    %21 = vector.broadcast %20 : vector<1x32xf32> to vector<8x32xf32>
    %22 = arith.addf %19, %21 : vector<8x32xf32>
    %23 = arith.truncf %22 : vector<8x32xf32> to vector<8x32xbf16>
    %c0_9 = arith.constant 0 : index
    %c0_10 = arith.constant 0 : index
    %24 = vector.load %arg3[%c0_9, %c0_10] : memref<32x32xbf16, #tpu.memory_space<vmem>>, vector<32x32xbf16>
    %cst_11 = arith.constant dense<0.000000e+00> : vector<8x32xf32>
    %25 = tpu.matmul %23, %24, %cst_11 {dimension_numbers = #tpu.dot_dimension_numbers<[1], [0], [0], [1], [0, 0, 1, 1], [], []>} : vector<8x32xbf16>, vector<32x32xbf16>, vector<8x32xf32> -> vector<8x32xf32>
    %c0_12 = arith.constant 0 : index
    %c0_13 = arith.constant 0 : index
    %26 = vector.load %arg4[%c0_12, %c0_13] : memref<1x32xf32, #tpu.memory_space<vmem>>, vector<1x32xf32>
    %27 = vector.broadcast %26 : vector<1x32xf32> to vector<8x32xf32>
    %28 = arith.addf %25, %27 : vector<8x32xf32>
    %c0_14 = arith.constant 0 : index
    %c0_15 = arith.constant 0 : index
    %29 = vector.load %arg7[%c0_14, %c0_15] : memref<8x32xf32, #tpu.memory_space<vmem>>, vector<8x32xf32>
    tpu.vector_store %arg7[%c0_14, %c0_15], %28 {strides = array<i32>} : memref<8x32xf32, #tpu.memory_space<vmem>>, vector<8x32xf32>,
    return
  }
  func.func @transform_0(%arg0: i32, %arg1: i32) -> (i32, i32) {
    %c0_i32 = arith.constant 0 : i32
    %c0_i32_0 = arith.constant 0 : i32
    return %arg0, %c0_i32 : i32, i32
  }
  func.func @transform_1(%arg0: i32, %arg1: i32) -> (i32, i32) {
    %c0_i32 = arith.constant 0 : i32
    %c0_i32_0 = arith.constant 0 : i32
    return %c0_i32, %arg1 : i32, i32
  }
  func.func @transform_2(%arg0: i32, %arg1: i32) -> (i32, i32) {
    %c0_i32 = arith.constant 0 : i32
    %c0_i32_0 = arith.constant 0 : i32
    return %c0_i32, %arg1 : i32, i32
  }
  func.func @transform_3(%arg0: i32, %arg1: i32) -> (i32, i32) {
    %c0_i32 = arith.constant 0 : i32
    %c0_i32_0 = arith.constant 0 : i32
    %c0_i32_1 = arith.constant 0 : i32
    return %c0_i32, %c0_i32_0 : i32, i32
  }
  func.func @transform_4(%arg0: i32, %arg1: i32) -> (i32, i32) {
    %c0_i32 = arith.constant 0 : i32
    %c0_i32_0 = arith.constant 0 : i32
    %c0_i32_1 = arith.constant 0 : i32
    return %c0_i32, %c0_i32_0 : i32, i32
  }
  func.func @transform_5(%arg0: i32, %arg1: i32) -> (i32, i32) {
    %c0_i32 = arith.constant 0 : i32
    return %arg0, %arg1 : i32, i32
  }
}

module attributes {stable_mosaic.version = 11 : i64} {
  func.func @_linear_kernel(%arg0: i32, %arg1: i32, %arg2: memref<8x32xf32, #tpu.memory_space<vmem>>, %arg3: memref<32x64xbf16, #tpu.memory_space<vmem>>, %arg4: memref<1x64xf32, #tpu.memory_space<vmem>>, %arg5: memref<1x32xf32, #tpu.memory_space<vmem>>, %arg6: memref<1x32xf32, #tpu.memory_space<vmem>>, %arg7: memref<8x64xf32, #tpu.memory_space<vmem>>) attributes {dimension_semantics = [#tpu.dimension_semantics<parallel>, #tpu.dimension_semantics<parallel>], iteration_bounds = array<i64: 2, 1>, scalar_prefetch = 0 : i64, scratch_operands = 0 : i64, tpu.core_type = #tpu.core_type<tc>, window_params = [{transform_indices = @transform_0, window_bounds = array<i64: 8, 32>}, {transform_indices = @transform_1, window_bounds = array<i64: 32, 64>}, {transform_indices = @transform_2, window_bounds = array<i64: 1, 64>}, {pipeline_mode = #tpu.pipeline_mode<synchronous>, transform_indices = @transform_3, window_bounds = array<i64: 1, 32>}, {pipeline_mode = #tpu.pipeline_mode<synchronous>, transform_indices = @transform_4, window_bounds = array<i64: 1, 32>}, {transform_indices = @transform_5, window_bounds = array<i64: 8, 64>}]} {
    %c0 = arith.constant 0 : index
    %c0_0 = arith.constant 0 : index
    %0 = vector.load %arg2[%c0, %c0_0] : memref<8x32xf32, #tpu.memory_space<vmem>>, vector<8x32xf32>
    %cst = arith.constant dense<0.000000e+00> : vector<8xf32>
    %1 = vector.multi_reduction <add>, %0, %cst [1] : vector<8x32xf32> to vector<8xf32>
    %2 = vector.shape_cast %1 : vector<8xf32> to vector<8x1xf32>
    %cst_1 = arith.constant 3.200000e+01 : f32
    %3 = vector.broadcast %cst_1 : f32 to vector<8x1xf32>
    %4 = arith.divf %2, %3 : vector<8x1xf32>
    %5 = vector.broadcast %4 : vector<8x1xf32> to vector<8x32xf32>
    %6 = arith.subf %0, %5 : vector<8x32xf32>
    %7 = arith.mulf %6, %6 : vector<8x32xf32>
    %cst_2 = arith.constant dense<0.000000e+00> : vector<8xf32>
    %8 = vector.multi_reduction <add>, %7, %cst_2 [1] : vector<8x32xf32> to vector<8xf32>
    %9 = vector.shape_cast %8 : vector<8xf32> to vector<8x1xf32>
    %cst_3 = arith.constant 0.0322580636 : f32
    %10 = vector.broadcast %cst_3 : f32 to vector<8x1xf32>
    %11 = arith.mulf %9, %10 : vector<8x1xf32>
    %c0_4 = arith.constant 0 : index
    %c0_5 = arith.constant 0 : index
    %12 = vector.load %arg5[%c0_4, %c0_5] : memref<1x32xf32, #tpu.memory_space<vmem>>, vector<1x32xf32>
    %13 = vector.broadcast %12 : vector<1x32xf32> to vector<8x32xf32>
    %14 = arith.mulf %13, %6 : vector<8x32xf32>
    %15 = math.sqrt %11 : vector<8x1xf32>
    %cst_6 = arith.constant 9.99999997E-7 : f32
    %16 = vector.broadcast %cst_6 : f32 to vector<8x1xf32>
    %17 = arith.addf %15, %16 : vector<8x1xf32>
    %18 = vector.broadcast %17 : vector<8x1xf32> to vector<8x32xf32>
    %19 = arith.divf %14, %18 : vector<8x32xf32>
    %c0_7 = arith.constant 0 : index
    %c0_8 = arith.constant 0 : index
    %20 = vector.load %arg6[%c0_7, %c0_8] : memref<1x32xf32, #tpu.memory_space<vmem>>, vector<1x32xf32>
    %21 = vector.broadcast %20 : vector<1x32xf32> to vector<8x32xf32>
    %22 = arith.addf %19, %21 : vector<8x32xf32>
    %23 = arith.truncf %22 : vector<8x32xf32> to vector<8x32xbf16>
    %c0_9 = arith.constant 0 : index
    %c0_10 = arith.constant 0 : index
    %24 = vector.load %arg3[%c0_9, %c0_10] : memref<32x64xbf16, #tpu.memory_space<vmem>>, vector<32x64xbf16>
    %cst_11 = arith.constant dense<0.000000e+00> : vector<8x64xf32>
    %25 = tpu.matmul %23, %24, %cst_11 {dimension_numbers = #tpu.dot_dimension_numbers<[1], [0], [0], [1], [0, 0, 1, 1], [], []>} : vector<8x32xbf16>, vector<32x64xbf16>, vector<8x64xf32> -> vector<8x64xf32>
    %c0_12 = arith.constant 0 : index
    %c0_13 = arith.constant 0 : index
    %26 = vector.load %arg4[%c0_12, %c0_13] : memref<1x64xf32, #tpu.memory_space<vmem>>, vector<1x64xf32>
    %27 = vector.broadcast %26 : vector<1x64xf32> to vector<8x64xf32>
    %28 = arith.addf %25, %27 : vector<8x64xf32>
    %cst_14 = arith.constant 0.000000e+00 : f32
    %29 = vector.broadcast %cst_14 : f32 to vector<8x64xf32>
    %30 = arith.maximumf %28, %29 : vector<8x64xf32>
    %c0_15 = arith.constant 0 : index
    %c0_16 = arith.constant 0 : index
    %31 = vector.load %arg7[%c0_15, %c0_16] : memref<8x64xf32, #tpu.memory_space<vmem>>, vector<8x64xf32>
    tpu.vector_store %arg7[%c0_15, %c0_16], %30 {strides = array<i32>} : memref<8x64xf32, #tpu.memory_space<vmem>>, vector<8x64xf32>,
    return
  }
  func.func @transform_0(%arg0: i32, %arg1: i32) -> (i32, i32) {
    %c0_i32 = arith.constant 0 : i32
    %c0_i32_0 = arith.constant 0 : i32
    return %arg0, %c0_i32 : i32, i32
  }
  func.func @transform_1(%arg0: i32, %arg1: i32) -> (i32, i32) {
    %c0_i32 = arith.constant 0 : i32
    %c0_i32_0 = arith.constant 0 : i32
    return %c0_i32, %arg1 : i32, i32
  }
  func.func @transform_2(%arg0: i32, %arg1: i32) -> (i32, i32) {
    %c0_i32 = arith.constant 0 : i32
    %c0_i32_0 = arith.constant 0 : i32
    return %c0_i32, %arg1 : i32, i32
  }
  func.func @transform_3(%arg0: i32, %arg1: i32) -> (i32, i32) {
    %c0_i32 = arith.constant 0 : i32
    %c0_i32_0 = arith.constant 0 : i32
    %c0_i32_1 = arith.constant 0 : i32
    return %c0_i32, %c0_i32_0 : i32, i32
  }
  func.func @transform_4(%arg0: i32, %arg1: i32) -> (i32, i32) {
    %c0_i32 = arith.constant 0 : i32
    %c0_i32_0 = arith.constant 0 : i32
    %c0_i32_1 = arith.constant 0 : i32
    return %c0_i32, %c0_i32_0 : i32, i32
  }
  func.func @transform_5(%arg0: i32, %arg1: i32) -> (i32, i32) {
    %c0_i32 = arith.constant 0 : i32
    return %arg0, %arg1 : i32, i32
  }
}

module attributes {stable_mosaic.version = 11 : i64} {
  func.func @_linear_kernel(%arg0: i32, %arg1: i32, %arg2: memref<8x64xf32, #tpu.memory_space<vmem>>, %arg3: memref<64x32xbf16, #tpu.memory_space<vmem>>, %arg4: memref<1x32xf32, #tpu.memory_space<vmem>>, %arg5: memref<8x32xf32, #tpu.memory_space<vmem>>, %arg6: memref<8x32xf32, #tpu.memory_space<vmem>>) attributes {dimension_semantics = [#tpu.dimension_semantics<parallel>, #tpu.dimension_semantics<parallel>], iteration_bounds = array<i64: 2, 1>, scalar_prefetch = 0 : i64, scratch_operands = 0 : i64, tpu.core_type = #tpu.core_type<tc>, window_params = [{transform_indices = @transform_0, window_bounds = array<i64: 8, 64>}, {transform_indices = @transform_1, window_bounds = array<i64: 64, 32>}, {transform_indices = @transform_2, window_bounds = array<i64: 1, 32>}, {transform_indices = @transform_3, window_bounds = array<i64: 8, 32>}, {transform_indices = @transform_4, window_bounds = array<i64: 8, 32>}]} {
    %c0 = arith.constant 0 : index
    %c0_0 = arith.constant 0 : index
    %0 = vector.load %arg2[%c0, %c0_0] : memref<8x64xf32, #tpu.memory_space<vmem>>, vector<8x64xf32>
    %1 = arith.truncf %0 : vector<8x64xf32> to vector<8x64xbf16>
    %c0_1 = arith.constant 0 : index
    %c0_2 = arith.constant 0 : index
    %2 = vector.load %arg3[%c0_1, %c0_2] : memref<64x32xbf16, #tpu.memory_space<vmem>>, vector<64x32xbf16>
    %cst = arith.constant dense<0.000000e+00> : vector<8x32xf32>
    %3 = tpu.matmul %1, %2, %cst {dimension_numbers = #tpu.dot_dimension_numbers<[1], [0], [0], [1], [0, 0, 1, 1], [], []>} : vector<8x64xbf16>, vector<64x32xbf16>, vector<8x32xf32> -> vector<8x32xf32>
    %c0_3 = arith.constant 0 : index
    %c0_4 = arith.constant 0 : index
    %4 = vector.load %arg4[%c0_3, %c0_4] : memref<1x32xf32, #tpu.memory_space<vmem>>, vector<1x32xf32>
    %5 = vector.broadcast %4 : vector<1x32xf32> to vector<8x32xf32>
    %6 = arith.addf %3, %5 : vector<8x32xf32>
    %c0_5 = arith.constant 0 : index
    %c0_6 = arith.constant 0 : index
    %7 = vector.load %arg5[%c0_5, %c0_6] : memref<8x32xf32, #tpu.memory_space<vmem>>, vector<8x32xf32>
    %8 = arith.addf %6, %7 : vector<8x32xf32>
    %c0_7 = arith.constant 0 : index
    %c0_8 = arith.constant 0 : index
    %9 = vector.load %arg6[%c0_7, %c0_8] : memref<8x32xf32, #tpu.memory_space<vmem>>, vector<8x32xf32>
    tpu.vector_store %arg6[%c0_7, %c0_8], %8 {strides = array<i32>} : memref<8x32xf32, #tpu.memory_space<vmem>>, vector<8x32xf32>,
    return
  }
  func.func @transform_0(%arg0: i32, %arg1: i32) -> (i32, i32) {
    %c0_i32 = arith.constant 0 : i32
    %c0_i32_0 = arith.constant 0 : i32
    return %arg0, %c0_i32 : i32, i32
  }
  func.func @transform_1(%arg0: i32, %arg1: i32) -> (i32, i32) {
    %c0_i32 = arith.constant 0 : i32
    %c0_i32_0 = arith.constant 0 : i32
    return %c0_i32, %arg1 : i32, i32
  }
  func.func @transform_2(%arg0: i32, %arg1: i32) -> (i32, i32) {
    %c0_i32 = arith.constant 0 : i32
    %c0_i32_0 = arith.constant 0 : i32
    return %c0_i32, %arg1 : i32, i32
  }
  func.func @transform_3(%arg0: i32, %arg1: i32) -> (i32, i32) {
    %c0_i32 = arith.constant 0 : i32
    return %arg0, %arg1 : i32, i32
  }
  func.func @transform_4(%arg0: i32, %arg1: i32) -> (i32, i32) {
    %c0_i32 = arith.constant 0 : i32
    return %arg0, %arg1 : i32, i32
  }
}

module attributes {stable_mosaic.version = 11 : i64} {
  func.func @_ln_kernel(%arg0: i32, %arg1: memref<8x32xf32, #tpu.memory_space<vmem>>, %arg2: memref<1x32xf32, #tpu.memory_space<vmem>>, %arg3: memref<1x32xf32, #tpu.memory_space<vmem>>, %arg4: memref<8x32xf32, #tpu.memory_space<vmem>>) attributes {dimension_semantics = [#tpu.dimension_semantics<parallel>], iteration_bounds = array<i64: 2>, scalar_prefetch = 0 : i64, scratch_operands = 0 : i64, tpu.core_type = #tpu.core_type<tc>, window_params = [{transform_indices = @transform_0, window_bounds = array<i64: 8, 32>}, {pipeline_mode = #tpu.pipeline_mode<synchronous>, transform_indices = @transform_1, window_bounds = array<i64: 1, 32>}, {pipeline_mode = #tpu.pipeline_mode<synchronous>, transform_indices = @transform_2, window_bounds = array<i64: 1, 32>}, {transform_indices = @transform_3, window_bounds = array<i64: 8, 32>}]} {
    %c0 = arith.constant 0 : index
    %c0_0 = arith.constant 0 : index
    %0 = vector.load %arg1[%c0, %c0_0] : memref<8x32xf32, #tpu.memory_space<vmem>>, vector<8x32xf32>
    %cst = arith.constant dense<0.000000e+00> : vector<8xf32>
    %1 = vector.multi_reduction <add>, %0, %cst [1] : vector<8x32xf32> to vector<8xf32>
    %2 = vector.shape_cast %1 : vector<8xf32> to vector<8x1xf32>
    %cst_1 = arith.constant 3.200000e+01 : f32
    %3 = vector.broadcast %cst_1 : f32 to vector<8x1xf32>
    %4 = arith.divf %2, %3 : vector<8x1xf32>
    %5 = vector.broadcast %4 : vector<8x1xf32> to vector<8x32xf32>
    %6 = arith.subf %0, %5 : vector<8x32xf32>
    %7 = arith.mulf %6, %6 : vector<8x32xf32>
    %cst_2 = arith.constant dense<0.000000e+00> : vector<8xf32>
    %8 = vector.multi_reduction <add>, %7, %cst_2 [1] : vector<8x32xf32> to vector<8xf32>
    %9 = vector.shape_cast %8 : vector<8xf32> to vector<8x1xf32>
    %cst_3 = arith.constant 0.0322580636 : f32
    %10 = vector.broadcast %cst_3 : f32 to vector<8x1xf32>
    %11 = arith.mulf %9, %10 : vector<8x1xf32>
    %c0_4 = arith.constant 0 : index
    %c0_5 = arith.constant 0 : index
    %12 = vector.load %arg2[%c0_4, %c0_5] : memref<1x32xf32, #tpu.memory_space<vmem>>, vector<1x32xf32>
    %13 = vector.broadcast %12 : vector<1x32xf32> to vector<8x32xf32>
    %14 = arith.mulf %13, %6 : vector<8x32xf32>
    %15 = math.sqrt %11 : vector<8x1xf32>
    %cst_6 = arith.constant 9.99999997E-7 : f32
    %16 = vector.broadcast %cst_6 : f32 to vector<8x1xf32>
    %17 = arith.addf %15, %16 : vector<8x1xf32>
    %18 = vector.broadcast %17 : vector<8x1xf32> to vector<8x32xf32>
    %19 = arith.divf %14, %18 : vector<8x32xf32>
    %c0_7 = arith.constant 0 : index
    %c0_8 = arith.constant 0 : index
    %20 = vector.load %arg3[%c0_7, %c0_8] : memref<1x32xf32, #tpu.memory_space<vmem>>, vector<1x32xf32>
    %21 = vector.broadcast %20 : vector<1x32xf32> to vector<8x32xf32>
    %22 = arith.addf %19, %21 : vector<8x32xf32>
    %c0_9 = arith.constant 0 : index
    %c0_10 = arith.constant 0 : index
    %23 = vector.load %arg4[%c0_9, %c0_10] : memref<8x32xf32, #tpu.memory_space<vmem>>, vector<8x32xf32>
    tpu.vector_store %arg4[%c0_9, %c0_10], %22 {strides = array<i32>} : memref<8x32xf32, #tpu.memory_space<vmem>>, vector<8x32xf32>,
    return
  }
  func.func @transform_0(%arg0: i32) -> (i32, i32) {
    %c0_i32 = arith.constant 0 : i32
    %c0_i32_0 = arith.constant 0 : i32
    return %arg0, %c0_i32 : i32, i32
  }
  func.func @transform_1(%arg0: i32) -> (i32, i32) {
    %c0_i32 = arith.constant 0 : i32
    %c0_i32_0 = arith.constant 0 : i32
    %c0_i32_1 = arith.constant 0 : i32
    return %c0_i32, %c0_i32_0 : i32, i32
  }
  func.func @transform_2(%arg0: i32) -> (i32, i32) {
    %c0_i32 = arith.constant 0 : i32
    %c0_i32_0 = arith.constant 0 : i32
    %c0_i32_1 = arith.constant 0 : i32
    return %c0_i32, %c0_i32_0 : i32, i32
  }
  func.func @transform_3(%arg0: i32) -> (i32, i32) {
    %c0_i32 = arith.constant 0 : i32
    %c0_i32_0 = arith.constant 0 : i32
    return %arg0, %c0_i32 : i32, i32
  }
}

module attributes {stable_mosaic.version = 11 : i64} {
  func.func @_attn_kernel(%arg0: i32, %arg1: memref<1x8x32xf32, #tpu.memory_space<vmem>>, %arg2: memref<1x8x32xf32, #tpu.memory_space<vmem>>, %arg3: memref<1x8x32xf32, #tpu.memory_space<vmem>>, %arg4: memref<1x1x8xf32, #tpu.memory_space<vmem>>, %arg5: memref<1x8x32xf32, #tpu.memory_space<vmem>>) attributes {dimension_semantics = [#tpu.dimension_semantics<parallel>], iteration_bounds = array<i64: 2>, scalar_prefetch = 0 : i64, scratch_operands = 0 : i64, tpu.core_type = #tpu.core_type<tc>, window_params = [{transform_indices = @transform_0, window_bounds = array<i64: 1, 8, 32>}, {transform_indices = @transform_1, window_bounds = array<i64: 1, 8, 32>}, {transform_indices = @transform_2, window_bounds = array<i64: 1, 8, 32>}, {transform_indices = @transform_3, window_bounds = array<i64: 1, 1, 8>}, {transform_indices = @transform_4, window_bounds = array<i64: 1, 8, 32>}]} {
    %c0 = arith.constant 0 : index
    %c0_0 = arith.constant 0 : index
    %c0_1 = arith.constant 0 : index
    %0 = vector.load %arg1[%c0, %c0_0, %c0_1] : memref<1x8x32xf32, #tpu.memory_space<vmem>>, vector<1x8x32xf32>
    %1 = vector.shape_cast %0 : vector<1x8x32xf32> to vector<8x32xf32>
    %2 = arith.truncf %1 : vector<8x32xf32> to vector<8x32xbf16>
    %c0_2 = arith.constant 0 : index
    %c0_3 = arith.constant 0 : index
    %c0_4 = arith.constant 0 : index
    %3 = vector.load %arg2[%c0_2, %c0_3, %c0_4] : memref<1x8x32xf32, #tpu.memory_space<vmem>>, vector<1x8x32xf32>
    %4 = vector.shape_cast %3 : vector<1x8x32xf32> to vector<8x32xf32>
    %5 = arith.truncf %4 : vector<8x32xf32> to vector<8x32xbf16>
    %c0_5 = arith.constant 0 : index
    %c0_6 = arith.constant 0 : index
    %c0_7 = arith.constant 0 : index
    %6 = vector.load %arg3[%c0_5, %c0_6, %c0_7] : memref<1x8x32xf32, #tpu.memory_space<vmem>>, vector<1x8x32xf32>
    %7 = vector.shape_cast %6 : vector<1x8x32xf32> to vector<8x32xf32>
    %8 = arith.truncf %7 : vector<8x32xf32> to vector<8x32xbf16>
    %c0_8 = arith.constant 0 : index
    %c0_9 = arith.constant 0 : index
    %c0_10 = arith.constant 0 : index
    %9 = vector.load %arg4[%c0_8, %c0_9, %c0_10] : memref<1x1x8xf32, #tpu.memory_space<vmem>>, vector<1x1x8xf32>
    %10 = vector.shape_cast %9 : vector<1x1x8xf32> to vector<1x8xf32>
    %11 = vector.extract_strided_slice %2 {offsets = [0, 0], sizes = [8, 8], strides = [1, 1]} : vector<8x32xbf16> to vector<8x8xbf16>
    %12 = vector.extract_strided_slice %5 {offsets = [0, 0], sizes = [8, 8], strides = [1, 1]} : vector<8x32xbf16> to vector<8x8xbf16>
    %cst = arith.constant dense<0.000000e+00> : vector<8x8xf32>
    %13 = tpu.matmul %11, %12, %cst {dimension_numbers = #tpu.dot_dimension_numbers<[1], [1], [0], [0], [0, 0, 1, 0], [], []>} : vector<8x8xbf16>, vector<8x8xbf16>, vector<8x8xf32> -> vector<8x8xf32>
    %cst_11 = arith.constant 0.353553385 : f32
    %14 = vector.broadcast %cst_11 : f32 to vector<8x8xf32>
    %15 = arith.mulf %13, %14 : vector<8x8xf32>
    %cst_12 = arith.constant 5.000000e-01 : f32
    %16 = vector.broadcast %cst_12 : f32 to vector<1x8xf32>
    %17 = arith.cmpf olt, %10, %16 : vector<1x8xf32>
    %cst_13 = arith.constant -1.000000e+09 : f32
    %18 = vector.shape_cast %17 : vector<1x8xi1> to vector<1x8xi1>
    %19 = vector.broadcast %18 : vector<1x8xi1> to vector<8x8xi1>
    %20 = vector.broadcast %cst_13 : f32 to vector<8x8xf32>
    %21 = arith.select %19, %20, %15 : vector<8x8xi1>, vector<8x8xf32>
    %cst_14 = arith.constant dense<0xFF800000> : vector<8xf32>
    %22 = vector.multi_reduction <maximumf>, %21, %cst_14 [1] : vector<8x8xf32> to vector<8xf32>
    %23 = vector.shape_cast %22 : vector<8xf32> to vector<8x1xf32>
    %24 = vector.broadcast %23 : vector<8x1xf32> to vector<8x8xf32>
    %25 = arith.subf %21, %24 : vector<8x8xf32>
    %26 = math.exp %25 : vector<8x8xf32>
    %cst_15 = arith.constant dense<0.000000e+00> : vector<8xf32>
    %27 = vector.multi_reduction <add>, %26, %cst_15 [1] : vector<8x8xf32> to vector<8xf32>
    %28 = vector.shape_cast %27 : vector<8xf32> to vector<8x1xf32>
    %29 = tpu.reciprocal %28 {approx = true} : vector<8x1xf32> -> vector<8x1xf32>
    %30 = vector.broadcast %29 : vector<8x1xf32> to vector<8x8xf32>
    %31 = arith.mulf %26, %30 : vector<8x8xf32>
    %32 = arith.truncf %31 : vector<8x8xf32> to vector<8x8xbf16>
    %33 = vector.extract_strided_slice %8 {offsets = [0, 0], sizes = [8, 8], strides = [1, 1]} : vector<8x32xbf16> to vector<8x8xbf16>
    %cst_16 = arith.constant dense<0.000000e+00> : vector<8x8xf32>
    %34 = tpu.matmul %32, %33, %cst_16 {dimension_numbers = #tpu.dot_dimension_numbers<[1], [0], [0], [1], [0, 0, 1, 1], [], []>} : vector<8x8xbf16>, vector<8x8xbf16>, vector<8x8xf32> -> vector<8x8xf32>
    %35 = vector.extract_strided_slice %2 {offsets = [0, 8], sizes = [8, 8], strides = [1, 1]} : vector<8x32xbf16> to vector<8x8xbf16>
    %36 = vector.extract_strided_slice %5 {offsets = [0, 8], sizes = [8, 8], strides = [1, 1]} : vector<8x32xbf16> to vector<8x8xbf16>
    %cst_17 = arith.constant dense<0.000000e+00> : vector<8x8xf32>
    %37 = tpu.matmul %35, %36, %cst_17 {dimension_numbers = #tpu.dot_dimension_numbers<[1], [1], [0], [0], [0, 0, 1, 0], [], []>} : vector<8x8xbf16>, vector<8x8xbf16>, vector<8x8xf32> -> vector<8x8xf32>
    %cst_18 = arith.constant 0.353553385 : f32
    %38 = vector.broadcast %cst_18 : f32 to vector<8x8xf32>
    %39 = arith.mulf %37, %38 : vector<8x8xf32>
    %cst_19 = arith.constant 5.000000e-01 : f32
    %40 = vector.broadcast %cst_19 : f32 to vector<1x8xf32>
    %41 = arith.cmpf olt, %10, %40 : vector<1x8xf32>
    %cst_20 = arith.constant -1.000000e+09 : f32
    %42 = vector.shape_cast %41 : vector<1x8xi1> to vector<1x8xi1>
    %43 = vector.broadcast %42 : vector<1x8xi1> to vector<8x8xi1>
    %44 = vector.broadcast %cst_20 : f32 to vector<8x8xf32>
    %45 = arith.select %43, %44, %39 : vector<8x8xi1>, vector<8x8xf32>
    %cst_21 = arith.constant dense<0xFF800000> : vector<8xf32>
    %46 = vector.multi_reduction <maximumf>, %45, %cst_21 [1] : vector<8x8xf32> to vector<8xf32>
    %47 = vector.shape_cast %46 : vector<8xf32> to vector<8x1xf32>
    %48 = vector.broadcast %47 : vector<8x1xf32> to vector<8x8xf32>
    %49 = arith.subf %45, %48 : vector<8x8xf32>
    %50 = math.exp %49 : vector<8x8xf32>
    %cst_22 = arith.constant dense<0.000000e+00> : vector<8xf32>
    %51 = vector.multi_reduction <add>, %50, %cst_22 [1] : vector<8x8xf32> to vector<8xf32>
    %52 = vector.shape_cast %51 : vector<8xf32> to vector<8x1xf32>
    %53 = tpu.reciprocal %52 {approx = true} : vector<8x1xf32> -> vector<8x1xf32>
    %54 = vector.broadcast %53 : vector<8x1xf32> to vector<8x8xf32>
    %55 = arith.mulf %50, %54 : vector<8x8xf32>
    %56 = arith.truncf %55 : vector<8x8xf32> to vector<8x8xbf16>
    %57 = vector.extract_strided_slice %8 {offsets = [0, 8], sizes = [8, 8], strides = [1, 1]} : vector<8x32xbf16> to vector<8x8xbf16>
    %cst_23 = arith.constant dense<0.000000e+00> : vector<8x8xf32>
    %58 = tpu.matmul %56, %57, %cst_23 {dimension_numbers = #tpu.dot_dimension_numbers<[1], [0], [0], [1], [0, 0, 1, 1], [], []>} : vector<8x8xbf16>, vector<8x8xbf16>, vector<8x8xf32> -> vector<8x8xf32>
    %59 = vector.extract_strided_slice %2 {offsets = [0, 16], sizes = [8, 8], strides = [1, 1]} : vector<8x32xbf16> to vector<8x8xbf16>
    %60 = vector.extract_strided_slice %5 {offsets = [0, 16], sizes = [8, 8], strides = [1, 1]} : vector<8x32xbf16> to vector<8x8xbf16>
    %cst_24 = arith.constant dense<0.000000e+00> : vector<8x8xf32>
    %61 = tpu.matmul %59, %60, %cst_24 {dimension_numbers = #tpu.dot_dimension_numbers<[1], [1], [0], [0], [0, 0, 1, 0], [], []>} : vector<8x8xbf16>, vector<8x8xbf16>, vector<8x8xf32> -> vector<8x8xf32>
    %cst_25 = arith.constant 0.353553385 : f32
    %62 = vector.broadcast %cst_25 : f32 to vector<8x8xf32>
    %63 = arith.mulf %61, %62 : vector<8x8xf32>
    %cst_26 = arith.constant 5.000000e-01 : f32
    %64 = vector.broadcast %cst_26 : f32 to vector<1x8xf32>
    %65 = arith.cmpf olt, %10, %64 : vector<1x8xf32>
    %cst_27 = arith.constant -1.000000e+09 : f32
    %66 = vector.shape_cast %65 : vector<1x8xi1> to vector<1x8xi1>
    %67 = vector.broadcast %66 : vector<1x8xi1> to vector<8x8xi1>
    %68 = vector.broadcast %cst_27 : f32 to vector<8x8xf32>
    %69 = arith.select %67, %68, %63 : vector<8x8xi1>, vector<8x8xf32>
    %cst_28 = arith.constant dense<0xFF800000> : vector<8xf32>
    %70 = vector.multi_reduction <maximumf>, %69, %cst_28 [1] : vector<8x8xf32> to vector<8xf32>
    %71 = vector.shape_cast %70 : vector<8xf32> to vector<8x1xf32>
    %72 = vector.broadcast %71 : vector<8x1xf32> to vector<8x8xf32>
    %73 = arith.subf %69, %72 : vector<8x8xf32>
    %74 = math.exp %73 : vector<8x8xf32>
    %cst_29 = arith.constant dense<0.000000e+00> : vector<8xf32>
    %75 = vector.multi_reduction <add>, %74, %cst_29 [1] : vector<8x8xf32> to vector<8xf32>
    %76 = vector.shape_cast %75 : vector<8xf32> to vector<8x1xf32>
    %77 = tpu.reciprocal %76 {approx = true} : vector<8x1xf32> -> vector<8x1xf32>
    %78 = vector.broadcast %77 : vector<8x1xf32> to vector<8x8xf32>
    %79 = arith.mulf %74, %78 : vector<8x8xf32>
    %80 = arith.truncf %79 : vector<8x8xf32> to vector<8x8xbf16>
    %81 = vector.extract_strided_slice %8 {offsets = [0, 16], sizes = [8, 8], strides = [1, 1]} : vector<8x32xbf16> to vector<8x8xbf16>
    %cst_30 = arith.constant dense<0.000000e+00> : vector<8x8xf32>
    %82 = tpu.matmul %80, %81, %cst_30 {dimension_numbers = #tpu.dot_dimension_numbers<[1], [0], [0], [1], [0, 0, 1, 1], [], []>} : vector<8x8xbf16>, vector<8x8xbf16>, vector<8x8xf32> -> vector<8x8xf32>
    %83 = vector.extract_strided_slice %2 {offsets = [0, 24], sizes = [8, 8], strides = [1, 1]} : vector<8x32xbf16> to vector<8x8xbf16>
    %84 = vector.extract_strided_slice %5 {offsets = [0, 24], sizes = [8, 8], strides = [1, 1]} : vector<8x32xbf16> to vector<8x8xbf16>
    %cst_31 = arith.constant dense<0.000000e+00> : vector<8x8xf32>
    %85 = tpu.matmul %83, %84, %cst_31 {dimension_numbers = #tpu.dot_dimension_numbers<[1], [1], [0], [0], [0, 0, 1, 0], [], []>} : vector<8x8xbf16>, vector<8x8xbf16>, vector<8x8xf32> -> vector<8x8xf32>
    %cst_32 = arith.constant 0.353553385 : f32
    %86 = vector.broadcast %cst_32 : f32 to vector<8x8xf32>
    %87 = arith.mulf %85, %86 : vector<8x8xf32>
    %cst_33 = arith.constant 5.000000e-01 : f32
    %88 = vector.broadcast %cst_33 : f32 to vector<1x8xf32>
    %89 = arith.cmpf olt, %10, %88 : vector<1x8xf32>
    %cst_34 = arith.constant -1.000000e+09 : f32
    %90 = vector.shape_cast %89 : vector<1x8xi1> to vector<1x8xi1>
    %91 = vector.broadcast %90 : vector<1x8xi1> to vector<8x8xi1>
    %92 = vector.broadcast %cst_34 : f32 to vector<8x8xf32>
    %93 = arith.select %91, %92, %87 : vector<8x8xi1>, vector<8x8xf32>
    %cst_35 = arith.constant dense<0xFF800000> : vector<8xf32>
    %94 = vector.multi_reduction <maximumf>, %93, %cst_35 [1] : vector<8x8xf32> to vector<8xf32>
    %95 = vector.shape_cast %94 : vector<8xf32> to vector<8x1xf32>
    %96 = vector.broadcast %95 : vector<8x1xf32> to vector<8x8xf32>
    %97 = arith.subf %93, %96 : vector<8x8xf32>
    %98 = math.exp %97 : vector<8x8xf32>
    %cst_36 = arith.constant dense<0.000000e+00> : vector<8xf32>
    %99 = vector.multi_reduction <add>, %98, %cst_36 [1] : vector<8x8xf32> to vector<8xf32>
    %100 = vector.shape_cast %99 : vector<8xf32> to vector<8x1xf32>
    %101 = tpu.reciprocal %100 {approx = true} : vector<8x1xf32> -> vector<8x1xf32>
    %102 = vector.broadcast %101 : vector<8x1xf32> to vector<8x8xf32>
    %103 = arith.mulf %98, %102 : vector<8x8xf32>
    %104 = arith.truncf %103 : vector<8x8xf32> to vector<8x8xbf16>
    %105 = vector.extract_strided_slice %8 {offsets = [0, 24], sizes = [8, 8], strides = [1, 1]} : vector<8x32xbf16> to vector<8x8xbf16>
    %cst_37 = arith.constant dense<0.000000e+00> : vector<8x8xf32>
    %106 = tpu.matmul %104, %105, %cst_37 {dimension_numbers = #tpu.dot_dimension_numbers<[1], [0], [0], [1], [0, 0, 1, 1], [], []>} : vector<8x8xbf16>, vector<8x8xbf16>, vector<8x8xf32> -> vector<8x8xf32>
    %107 = tpu.concatenate %34, %58, %82, %106 in 1 : vector<8x8xf32>, vector<8x8xf32>, vector<8x8xf32>, vector<8x8xf32> -> vector<8x32xf32>
    %c0_38 = arith.constant 0 : index
    %c0_39 = arith.constant 0 : index
    %c0_40 = arith.constant 0 : index
    %108 = vector.load %arg5[%c0_38, %c0_39, %c0_40] : memref<1x8x32xf32, #tpu.memory_space<vmem>>, vector<1x8x32xf32>
    %109 = vector.shape_cast %108 : vector<1x8x32xf32> to vector<8x32xf32>
    %110 = vector.shape_cast %107 : vector<8x32xf32> to vector<1x8x32xf32>
    tpu.vector_store %arg5[%c0_38, %c0_39, %c0_40], %110 {strides = array<i32>} : memref<1x8x32xf32, #tpu.memory_space<vmem>>, vector<1x8x32xf32>,
    return
  }
  func.func @transform_0(%arg0: i32) -> (i32, i32, i32) {
    %c0_i32 = arith.constant 0 : i32
    %c0_i32_0 = arith.constant 0 : i32
    %c0_i32_1 = arith.constant 0 : i32
    return %arg0, %c0_i32, %c0_i32_0 : i32, i32, i32
  }
  func.func @transform_1(%arg0: i32) -> (i32, i32, i32) {
    %c0_i32 = arith.constant 0 : i32
    %c0_i32_0 = arith.constant 0 : i32
    %c0_i32_1 = arith.constant 0 : i32
    return %arg0, %c0_i32, %c0_i32_0 : i32, i32, i32
  }
  func.func @transform_2(%arg0: i32) -> (i32, i32, i32) {
    %c0_i32 = arith.constant 0 : i32
    %c0_i32_0 = arith.constant 0 : i32
    %c0_i32_1 = arith.constant 0 : i32
    return %arg0, %c0_i32, %c0_i32_0 : i32, i32, i32
  }
  func.func @transform_3(%arg0: i32) -> (i32, i32, i32) {
    %c0_i32 = arith.constant 0 : i32
    %c0_i32_0 = arith.constant 0 : i32
    %c0_i32_1 = arith.constant 0 : i32
    return %arg0, %c0_i32, %c0_i32_0 : i32, i32, i32
  }
  func.func @transform_4(%arg0: i32) -> (i32, i32, i32) {
    %c0_i32 = arith.constant 0 : i32
    %c0_i32_0 = arith.constant 0 : i32
    %c0_i32_1 = arith.constant 0 : i32
    return %arg0, %c0_i32, %c0_i32_0 : i32, i32, i32
  }
}

module attributes {stable_mosaic.version = 11 : i64} {
  func.func @_linear_kernel(%arg0: i32, %arg1: i32, %arg2: memref<8x32xf32, #tpu.memory_space<vmem>>, %arg3: memref<32x64xbf16, #tpu.memory_space<vmem>>, %arg4: memref<1x64xf32, #tpu.memory_space<vmem>>, %arg5: memref<8x64xf32, #tpu.memory_space<vmem>>) attributes {dimension_semantics = [#tpu.dimension_semantics<parallel>, #tpu.dimension_semantics<parallel>], iteration_bounds = array<i64: 2, 1>, scalar_prefetch = 0 : i64, scratch_operands = 0 : i64, tpu.core_type = #tpu.core_type<tc>, window_params = [{transform_indices = @transform_0, window_bounds = array<i64: 8, 32>}, {transform_indices = @transform_1, window_bounds = array<i64: 32, 64>}, {transform_indices = @transform_2, window_bounds = array<i64: 1, 64>}, {transform_indices = @transform_3, window_bounds = array<i64: 8, 64>}]} {
    %c0 = arith.constant 0 : index
    %c0_0 = arith.constant 0 : index
    %0 = vector.load %arg2[%c0, %c0_0] : memref<8x32xf32, #tpu.memory_space<vmem>>, vector<8x32xf32>
    %1 = arith.truncf %0 : vector<8x32xf32> to vector<8x32xbf16>
    %c0_1 = arith.constant 0 : index
    %c0_2 = arith.constant 0 : index
    %2 = vector.load %arg3[%c0_1, %c0_2] : memref<32x64xbf16, #tpu.memory_space<vmem>>, vector<32x64xbf16>
    %cst = arith.constant dense<0.000000e+00> : vector<8x64xf32>
    %3 = tpu.matmul %1, %2, %cst {dimension_numbers = #tpu.dot_dimension_numbers<[1], [0], [0], [1], [0, 0, 1, 1], [], []>} : vector<8x32xbf16>, vector<32x64xbf16>, vector<8x64xf32> -> vector<8x64xf32>
    %c0_3 = arith.constant 0 : index
    %c0_4 = arith.constant 0 : index
    %4 = vector.load %arg4[%c0_3, %c0_4] : memref<1x64xf32, #tpu.memory_space<vmem>>, vector<1x64xf32>
    %5 = vector.broadcast %4 : vector<1x64xf32> to vector<8x64xf32>
    %6 = arith.addf %3, %5 : vector<8x64xf32>
    %c0_5 = arith.constant 0 : index
    %c0_6 = arith.constant 0 : index
    %7 = vector.load %arg5[%c0_5, %c0_6] : memref<8x64xf32, #tpu.memory_space<vmem>>, vector<8x64xf32>
    tpu.vector_store %arg5[%c0_5, %c0_6], %6 {strides = array<i32>} : memref<8x64xf32, #tpu.memory_space<vmem>>, vector<8x64xf32>,
    return
  }
  func.func @transform_0(%arg0: i32, %arg1: i32) -> (i32, i32) {
    %c0_i32 = arith.constant 0 : i32
    %c0_i32_0 = arith.constant 0 : i32
    return %arg0, %c0_i32 : i32, i32
  }
  func.func @transform_1(%arg0: i32, %arg1: i32) -> (i32, i32) {
    %c0_i32 = arith.constant 0 : i32
    %c0_i32_0 = arith.constant 0 : i32
    return %c0_i32, %arg1 : i32, i32
  }
  func.func @transform_2(%arg0: i32, %arg1: i32) -> (i32, i32) {
    %c0_i32 = arith.constant 0 : i32
    %c0_i32_0 = arith.constant 0 : i32
    return %c0_i32, %arg1 : i32, i32
  }
  func.func @transform_3(%arg0: i32, %arg1: i32) -> (i32, i32) {
    %c0_i32 = arith.constant 0 : i32
    return %arg0, %arg1 : i32, i32
  }
}

module attributes {stable_mosaic.version = 11 : i64} {
  func.func @_ln_kernel(%arg0: i32, %arg1: memref<8x32xf32, #tpu.memory_space<vmem>>, %arg2: memref<1x32xf32, #tpu.memory_space<vmem>>, %arg3: memref<1x32xf32, #tpu.memory_space<vmem>>, %arg4: memref<8x32xf32, #tpu.memory_space<vmem>>) attributes {dimension_semantics = [#tpu.dimension_semantics<parallel>], iteration_bounds = array<i64: 2>, scalar_prefetch = 0 : i64, scratch_operands = 0 : i64, tpu.core_type = #tpu.core_type<tc>, window_params = [{transform_indices = @transform_0, window_bounds = array<i64: 8, 32>}, {pipeline_mode = #tpu.pipeline_mode<synchronous>, transform_indices = @transform_1, window_bounds = array<i64: 1, 32>}, {pipeline_mode = #tpu.pipeline_mode<synchronous>, transform_indices = @transform_2, window_bounds = array<i64: 1, 32>}, {transform_indices = @transform_3, window_bounds = array<i64: 8, 32>}]} {
    %c0 = arith.constant 0 : index
    %c0_0 = arith.constant 0 : index
    %0 = vector.load %arg1[%c0, %c0_0] : memref<8x32xf32, #tpu.memory_space<vmem>>, vector<8x32xf32>
    %cst = arith.constant dense<0.000000e+00> : vector<8xf32>
    %1 = vector.multi_reduction <add>, %0, %cst [1] : vector<8x32xf32> to vector<8xf32>
    %2 = vector.shape_cast %1 : vector<8xf32> to vector<8x1xf32>
    %cst_1 = arith.constant 3.200000e+01 : f32
    %3 = vector.broadcast %cst_1 : f32 to vector<8x1xf32>
    %4 = arith.divf %2, %3 : vector<8x1xf32>
    %5 = vector.broadcast %4 : vector<8x1xf32> to vector<8x32xf32>
    %6 = arith.subf %0, %5 : vector<8x32xf32>
    %7 = arith.mulf %6, %6 : vector<8x32xf32>
    %cst_2 = arith.constant dense<0.000000e+00> : vector<8xf32>
    %8 = vector.multi_reduction <add>, %7, %cst_2 [1] : vector<8x32xf32> to vector<8xf32>
    %9 = vector.shape_cast %8 : vector<8xf32> to vector<8x1xf32>
    %cst_3 = arith.constant 0.0322580636 : f32
    %10 = vector.broadcast %cst_3 : f32 to vector<8x1xf32>
    %11 = arith.mulf %9, %10 : vector<8x1xf32>
    %c0_4 = arith.constant 0 : index
    %c0_5 = arith.constant 0 : index
    %12 = vector.load %arg2[%c0_4, %c0_5] : memref<1x32xf32, #tpu.memory_space<vmem>>, vector<1x32xf32>
    %13 = vector.broadcast %12 : vector<1x32xf32> to vector<8x32xf32>
    %14 = arith.mulf %13, %6 : vector<8x32xf32>
    %15 = math.sqrt %11 : vector<8x1xf32>
    %cst_6 = arith.constant 9.99999997E-7 : f32
    %16 = vector.broadcast %cst_6 : f32 to vector<8x1xf32>
    %17 = arith.addf %15, %16 : vector<8x1xf32>
    %18 = vector.broadcast %17 : vector<8x1xf32> to vector<8x32xf32>
    %19 = arith.divf %14, %18 : vector<8x32xf32>
    %c0_7 = arith.constant 0 : index
    %c0_8 = arith.constant 0 : index
    %20 = vector.load %arg3[%c0_7, %c0_8] : memref<1x32xf32, #tpu.memory_space<vmem>>, vector<1x32xf32>
    %21 = vector.broadcast %20 : vector<1x32xf32> to vector<8x32xf32>
    %22 = arith.addf %19, %21 : vector<8x32xf32>
    %c0_9 = arith.constant 0 : index
    %c0_10 = arith.constant 0 : index
    %23 = vector.load %arg4[%c0_9, %c0_10] : memref<8x32xf32, #tpu.memory_space<vmem>>, vector<8x32xf32>
    tpu.vector_store %arg4[%c0_9, %c0_10], %22 {strides = array<i32>} : memref<8x32xf32, #tpu.memory_space<vmem>>, vector<8x32xf32>,
    return
  }
  func.func @transform_0(%arg0: i32) -> (i32, i32) {
    %c0_i32 = arith.constant 0 : i32
    %c0_i32_0 = arith.constant 0 : i32
    return %arg0, %c0_i32 : i32, i32
  }
  func.func @transform_1(%arg0: i32) -> (i32, i32) {
    %c0_i32 = arith.constant 0 : i32
    %c0_i32_0 = arith.constant 0 : i32
    %c0_i32_1 = arith.constant 0 : i32
    return %c0_i32, %c0_i32_0 : i32, i32
  }
  func.func @transform_2(%arg0: i32) -> (i32, i32) {
    %c0_i32 = arith.constant 0 : i32
    %c0_i32_0 = arith.constant 0 : i32
    %c0_i32_1 = arith.constant 0 : i32
    return %c0_i32, %c0_i32_0 : i32, i32
  }
  func.func @transform_3(%arg0: i32) -> (i32, i32) {
    %c0_i32 = arith.constant 0 : i32
    %c0_i32_0 = arith.constant 0 : i32
    return %arg0, %c0_i32 : i32, i32
  }
}

</mosaic_0001>

<llo_original>
// kernel: encoder_decoder_forward.41
$region0: #{encoder_decoder_forward.41}
  #allocation0 [shape = 'u32[]', space=smem, size = 0x4, offset = 0x4, fixed_abs, tag = 'smem constant byte address 0x4 - core index']
  #allocation1 [shape = 'u32[72,128]{1,0:T(1,128)}', space=vmem, size = 0x9000, scoped, tag = 'internal scratch']
  %s0 = inlined_call_operand.vmem [shape: f32[16,32], index: 0, kind: input, shape index: {}]
  %s1 = inlined_call_operand.vmem [shape: bf16[32,96], index: 1, kind: input, shape index: {}]
  %s2 = inlined_call_operand.vmem [shape: f32[1,96], index: 2, kind: input, shape index: {}]
  %s3 = inlined_call_operand.vmem [shape: f32[1,32], index: 3, kind: input, shape index: {}]
  %s4 = inlined_call_operand.vmem [shape: f32[1,32], index: 4, kind: input, shape index: {}]
  %s5 = inlined_call_operand.vmem [shape: f32[16,96], index: 5, kind: output, shape index: {}]
  %s6 = sld [smem:[#allocation0]]
  $region53: #{encoder_decoder_forward.41} parent=0
    _
  %s8 = ssub.s32 1, %s6
  %s9 = scalar_select 0, %s8, %s6
  loop: start=0, step=1, limit=4
  $region2: #{encoder_decoder_forward.41} parent=0 // loop_pre_header
    _
  $region3: #{encoder_decoder_forward.41} parent=0 // loop_header
    %s11 = sphi 0, %s15
    %p12 = scmp.ge.s32.totalorder %s11, 4
    %s18 = sphi 0, %s30
    %s19 = sphi 0, %s26
    %s20 = sphi 0, %s18
    %s21 = sphi 0, %s19
    %s22 = sphi 0, %s20
    %s23 = sphi 0, %s21
    %s33 = sphi 0, %s35
    %s36 = sphi 0, %s33
    %s37 = sphi 0, %s36
    %s53 = sphi 0, %s37
    %s59 = sphi 0, %s61
    %s62 = sphi 0, %s59
    %s63 = sphi 0, %s62
    %s79 = sphi 0, %s63
    %s85 = sphi 0, %s87
    %s88 = sphi 0, %s85
    %s89 = sphi 0, %s88
    %s105 = sphi 0, %s89
    %s109 = sphi 0, %s109
    %s111 = sphi 0, %s109
    %s112 = sphi 0, %s111
    %s126 = sphi 0, %s112
    %s130 = sphi 0, %s130
    %s132 = sphi 0, %s130
    %s133 = sphi 0, %s132
    %s147 = sphi 0, %s133
    %s155 = sphi 0, %s157
    %s158 = sphi 0, %s155
    %s159 = sphi 0, %s158
    %s175 = sphi 0, %s159
  $region4: #{encoder_decoder_forward.41} parent=0 // loop_header_branch
    %14 = sbr.rel (%p12) target = $region8
  $region5: #{encoder_decoder_forward.41} parent=0 // loop_body
    %s16 = ssub.s32 %s11, 1
    %s17 = ssub.s32 %s11, 2
    %s24 = sadd.s32 1, %s19
    %p25 = scmp.ge.s32.totalorder %s24, 1
    %s26 = scalar_select %p25, 0, %s24
    %s27 = sadd.s32 1, %s18
    %s28 = scalar_select %p25, %s27, %s18
    %p29 = scmp.ge.s32.totalorder %s28, 2
    %s30 = scalar_select %p29, 0, %s28
    %s31 = ssub.s32 %s18, %s30
    %p32 = scmp.eq.s32.totalorder %s31, 0
    %s34 = sadd.s32 %s33, 1
    %s35 = scalar_select %p32, %s33, %s34
    %p38 = pneg %p32
    %p39 = scmp.eq.s32.totalorder %s11, 1
    %p40 = por %p38, %p39
    %p41 = scmp.ne.s32.totalorder %s33, %s36
    %p42 = scmp.eq.s32.totalorder %s11, 0
    %p43 = por %p41, %p42
    %p44 = scmp.ne.s32.totalorder %s33, %s36
    %p45 = scmp.eq.s32.totalorder %s16, 1
    %p46 = por %p44, %p45
    %p47 = scmp.ne.s32.totalorder %s36, %s37
    %p48 = scmp.eq.s32.totalorder %s16, 0
    %p49 = por %p47, %p48
    %p50 = scmp.ne.s32.totalorder %s36, %s37
    %p51 = scmp.eq.s32.totalorder %s17, 1
    %p52 = por %p50, %p51
    %p54 = scmp.ne.s32.totalorder %s37, %s53
    %p55 = scmp.eq.s32.totalorder %s17, 0
    %p56 = por %p54, %p55
    %s57 = ssub.s32 %s19, %s26
    %p58 = scmp.eq.s32.totalorder %s57, 0
    %s60 = sadd.s32 %s59, 1
    %s61 = scalar_select %p58, %s59, %s60
    %p64 = pneg %p58
    %p65 = scmp.eq.s32.totalorder %s11, 1
    %p66 = por %p64, %p65
    %p67 = scmp.ne.s32.totalorder %s59, %s62
    %p68 = scmp.eq.s32.totalorder %s11, 0
    %p69 = por %p67, %p68
    %p70 = scmp.ne.s32.totalorder %s59, %s62
    %p71 = scmp.eq.s32.totalorder %s16, 1
    %p72 = por %p70, %p71
    %p73 = scmp.ne.s32.totalorder %s62, %s63
    %p74 = scmp.eq.s32.totalorder %s16, 0
    %p75 = por %p73, %p74
    %p76 = scmp.ne.s32.totalorder %s62, %s63
    %p77 = scmp.eq.s32.totalorder %s17, 1
    %p78 = por %p76, %p77
    %p80 = scmp.ne.s32.totalorder %s63, %s79
    %p81 = scmp.eq.s32.totalorder %s17, 0
    %p82 = por %p80, %p81
    %s83 = ssub.s32 %s19, %s26
    %p84 = scmp.eq.s32.totalorder %s83, 0
    %s86 = sadd.s32 %s85, 1
    %s87 = scalar_select %p84, %s85, %s86
    %p90 = pneg %p84
    %p91 = scmp.eq.s32.totalorder %s11, 1
    %p92 = por %p90, %p91
    %p93 = scmp.ne.s32.totalorder %s85, %s88
    %p94 = scmp.eq.s32.totalorder %s11, 0
    %p95 = por %p93, %p94
    %p96 = scmp.ne.s32.totalorder %s85, %s88
    %p97 = scmp.eq.s32.totalorder %s16, 1
    %p98 = por %p96, %p97
    %p99 = scmp.ne.s32.totalorder %s88, %s89
    %p100 = scmp.eq.s32.totalorder %s16, 0
    %p101 = por %p99, %p100
    %p102 = scmp.ne.s32.totalorder %s88, %s89
    %p103 = scmp.eq.s32.totalorder %s17, 1
    %p104 = por %p102, %p103
    %p106 = scmp.ne.s32.totalorder %s89, %s105
    %p107 = scmp.eq.s32.totalorder %s17, 0
    %p108 = por %p106, %p107
    %s110 = sadd.s32 %s109, 1
    %p113 = scmp.eq.s32.totalorder %s11, 1
    %p114 = scmp.ne.s32.totalorder %s109, %s111
    %p115 = scmp.eq.s32.totalorder %s11, 0
    %p116 = por %p114, %p115
    %p117 = scmp.ne.s32.totalorder %s109, %s111
    %p118 = scmp.eq.s32.totalorder %s16, 1
    %p119 = por %p117, %p118
    %p120 = scmp.ne.s32.totalorder %s111, %s112
    %p121 = scmp.eq.s32.totalorder %s16, 0
    %p122 = por %p120, %p121
    %p123 = scmp.ne.s32.totalorder %s111, %s112
    %p124 = scmp.eq.s32.totalorder %s17, 1
    %p125 = por %p123, %p124
    %p127 = scmp.ne.s32.totalorder %s112, %s126
    %p128 = scmp.eq.s32.totalorder %s17, 0
    %p129 = por %p127, %p128
    %s131 = sadd.s32 %s130, 1
    %p134 = scmp.eq.s32.totalorder %s11, 1
    %p135 = scmp.ne.s32.totalorder %s130, %s132
    %p136 = scmp.eq.s32.totalorder %s11, 0
    %p137 = por %p135, %p136
    %p138 = scmp.ne.s32.totalorder %s130, %s132
    %p139 = scmp.eq.s32.totalorder %s16, 1
    %p140 = por %p138, %p139
    %p141 = scmp.ne.s32.totalorder %s132, %s133
    %p142 = scmp.eq.s32.totalorder %s16, 0
    %p143 = por %p141, %p142
    %p144 = scmp.ne.s32.totalorder %s132, %s133
    %p145 = scmp.eq.s32.totalorder %s17, 1
    %p146 = por %p144, %p145
    %p148 = scmp.ne.s32.totalorder %s133, %s147
    %p149 = scmp.eq.s32.totalorder %s17, 0
    %p150 = por %p148, %p149
    %s151 = ssub.s32 %s18, %s30
    %s152 = ssub.s32 %s19, %s26
    %s153 = sor.u32 %s151, %s152
    %p154 = scmp.eq.s32.totalorder %s153, 0
    %s156 = sadd.s32 %s155, 1
    %s157 = scalar_select %p154, %s155, %s156
    %p160 = pneg %p154
    %p161 = scmp.eq.s32.totalorder %s11, 1
    %p162 = por %p160, %p161
    %p163 = scmp.ne.s32.totalorder %s155, %s158
    %p164 = scmp.eq.s32.totalorder %s11, 0
    %p165 = por %p163, %p164
    %p166 = scmp.ne.s32.totalorder %s155, %s158
    %p167 = scmp.eq.s32.totalorder %s16, 1
    %p168 = por %p166, %p167
    %p169 = scmp.ne.s32.totalorder %s158, %s159
    %p170 = scmp.eq.s32.totalorder %s16, 0
    %p171 = por %p169, %p170
    %p172 = scmp.ne.s32.totalorder %s158, %s159
    %p173 = scmp.eq.s32.totalorder %s17, 1
    %p174 = por %p172, %p173
    %p176 = scmp.ne.s32.totalorder %s159, %s175
    %p177 = scmp.eq.s32.totalorder %s17, 0
    %p178 = por %p176, %p177
    %p179 = scmp.le.s32.totalorder 1, %s11
    %p180 = scmp.lt.s32.totalorder %s11, 3
    %p181 = pnand %p179, %p180
    %p182 = pneg %p181
    // Predicated region
    $region9: #{encoder_decoder_forward.41} parent=5 // pred_check
      _
    $region10: #{encoder_decoder_forward.41} parent=5 // pred_check_branch
      %184 = sbr.rel (%p181) target = $region12
    $region11: #{encoder_decoder_forward.41} parent=5 // pred_region
      %s185 = ssub.s32 %s11, 1
      // Predicated region
      $region13: #{encoder_decoder_forward.41} parent=11 // pred_check
        %p186 = pneg %p75
      $region14: #{encoder_decoder_forward.41} parent=11 // pred_check_branch
        %188 = sbr.rel (%p186) target = $region16
      $region15: #{encoder_decoder_forward.41} parent=11 // pred_region
        %p189 = scmp.lt.s32.totalorder %s21, 0
        %s190 = scalar_select %p189, %s21, 0
        %s191 = smul.addr %s190, 4
        %s192 = scalar_lea.vmem %s1, %s191
      $region16: #{encoder_decoder_forward.41} parent=11 // pred_fallthru
        _
      // Predicated region
      $region17: #{encoder_decoder_forward.41} parent=11 // pred_check
        %p193 = pneg %p101
      $region18: #{encoder_decoder_forward.41} parent=11 // pred_check_branch
        %195 = sbr.rel (%p193) target = $region20
      $region19: #{encoder_decoder_forward.41} parent=11 // pred_region
        %p196 = scmp.lt.s32.totalorder %s21, 0
        %s197 = scalar_select %p196, %s21, 0
        %s198 = scalar_lea.vmem %s2, %s197
      $region20: #{encoder_decoder_forward.41} parent=11 // pred_fallthru
        _
      // Predicated region
      $region21: #{encoder_decoder_forward.41} parent=11 // pred_check
        %p199 = pneg %p122
      $region22: #{encoder_decoder_forward.41} parent=11 // pred_check_branch
        %201 = sbr.rel (%p199) target = $region24
      $region23: #{encoder_decoder_forward.41} parent=11 // pred_region
        _
      $region24: #{encoder_decoder_forward.41} parent=11 // pred_fallthru
        _
      // Predicated region
      $region25: #{encoder_decoder_forward.41} parent=11 // pred_check
        %p202 = pneg %p143
      $region26: #{encoder_decoder_forward.41} parent=11 // pred_check_branch
        %204 = sbr.rel (%p202) target = $region28
      $region27: #{encoder_decoder_forward.41} parent=11 // pred_region
        _
      $region28: #{encoder_decoder_forward.41} parent=11 // pred_fallthru
        _
    $region12: #{encoder_decoder_forward.41} parent=5 // pred_fallthru
      _
    %p205 = scmp.lt.s32.totalorder %s11, 2
    // Predicated region
    $region29: #{encoder_decoder_forward.41} parent=5 // pred_check
      %p206 = pneg %p205
    $region30: #{encoder_decoder_forward.41} parent=5 // pred_check_branch
      %208 = sbr.rel (%p206) target = $region32
    $region31: #{encoder_decoder_forward.41} parent=5 // pred_region
      // Predicated region
      $region33: #{encoder_decoder_forward.41} parent=31 // pred_check
        %p209 = pneg %p43
      $region34: #{encoder_decoder_forward.41} parent=31 // pred_check_branch
        %211 = sbr.rel (%p209) target = $region36
      $region35: #{encoder_decoder_forward.41} parent=31 // pred_region
        %p212 = scmp.lt.s32.totalorder %s18, 1
        %s213 = scalar_select %p212, %s18, 1
        %s214 = smul.addr %s213, 8
        %s215 = scalar_lea.vmem %s0, %s214
      $region36: #{encoder_decoder_forward.41} parent=31 // pred_fallthru
        _
    $region32: #{encoder_decoder_forward.41} parent=5 // pred_fallthru
      _
    %p216 = scmp.le.s32.totalorder 1, %s11
    %p217 = scmp.lt.s32.totalorder %s11, 3
    %p218 = pnand %p216, %p217
    %p219 = pneg %p218
    // Predicated region
    $region37: #{encoder_decoder_forward.41} parent=5 // pred_check
      _
    $region38: #{encoder_decoder_forward.41} parent=5 // pred_check_branch
      %221 = sbr.rel (%p218) target = $region40
    $region39: #{encoder_decoder_forward.41} parent=5 // pred_region
      %s222 = ssub.s32 %s11, 1
      %p223 = scmp.lt.s32.totalorder %s20, 1
      %s224 = scalar_select %p223, %s20, 1
      %s225 = smul.addr %s224, 8
      %s226 = scalar_lea.vmem %s0, %s225
      %p227 = pneg %p49
      %p228 = pneg %p46
      %p229 = scmp.lt.s32.totalorder %s21, 0
      %s230 = scalar_select %p229, %s21, 0
      %s231 = smul.addr %s230, 4
      %s232 = scalar_lea.vmem %s1, %s231
      %p233 = pneg %p75
      %p234 = pneg %p72
      %p235 = scmp.lt.s32.totalorder %s21, 0
      %s236 = scalar_select %p235, %s21, 0
      %s237 = scalar_lea.vmem %s2, %s236
      %p238 = pneg %p101
      %p239 = pneg %p98
      %p240 = pneg %p122
      %p241 = pneg %p119
      %p242 = pneg %p143
      %p243 = pneg %p140
      %p244 = pneg %p171
      %p245 = pneg %p168
      %p246 = scmp.lt.s32.totalorder %s20, 1
      %s247 = scalar_select %p246, %s20, 1
      %p248 = scmp.lt.s32.totalorder %s21, 0
      %s249 = scalar_select %p248, %s21, 0
      %s250 = sadd.s32 %s249, %s247
      %s251 = smul.addr %s250, 8
      %s252 = scalar_lea.vmem %s5, %s251
      %p253 = scmp.lt.s32.totalorder %s20, 1
      %s254 = scalar_select %p253, %s20, 1
      %s255 = smul.addr %s254, 8
      %s256 = scalar_lea.vmem %s0, %s255
      %p257 = scmp.lt.s32.totalorder %s21, 0
      %s258 = scalar_select %p257, %s21, 0
      %s259 = smul.addr %s258, 4
      %s260 = scalar_lea.vmem %s1, %s259
      %p261 = scmp.lt.s32.totalorder %s21, 0
      %s262 = scalar_select %p261, %s21, 0
      %s263 = scalar_lea.vmem %s2, %s262
      %p264 = scmp.lt.s32.totalorder %s20, 1
      %s265 = scalar_select %p264, %s20, 1
      %p266 = scmp.lt.s32.totalorder %s21, 0
      %s267 = scalar_select %p266, %s21, 0
      %s268 = sadd.s32 %s267, %s265
      %s269 = smul.addr %s268, 8
      %s270 = scalar_lea.vmem %s5, %s269
      %v272 = vld [vmem:[%s256] sm:$0xff]
      %vm273 = vcmask 261120
      %v274 = vsel %vm273, %v272, 0.0
      %275 = vadd.xlane.f32.xlu0 %v274
      %v276 = vpop.xlane.xlu0 %275
      %v277 = vrcp.pop 32.0
      %v278 = vmul.f32 32.0, %v277
      %v279 = vsub.f32 1.0, %v278
      %v280 = vmul.f32 %v277, %v279
      %v281 = vadd.f32 %v277, %v280
      %vm282 = vweird.f32 %v277
      %v283 = vsel %vm282, %v277, %v281
      %v284 = vmul.f32 %v276, %v283
      %v285 = vsub.f32 %v272, %v284
      %v286 = vmul.f32 %v285, %v285
      %v287 = vsel %vm273, %v286, 0.0
      %288 = vadd.xlane.f32.xlu0 %v287
      %v289 = vpop.xlane.xlu0 %288
      %v290 = vmul.f32 %v289, 0.032258064
      %v291 = vld [vmem:[%s3] sm:$0x1]
      %v293 = vperm.slane %v291, 0
      %v295 = vmul.f32 %v293, %v285
      %v296 = vrsqrt.pop %v290
      %v297 = vmul.f32 %v296, %v290
      %v298 = vmul.f32 %v297, %v296
      %v299 = vmul.f32 0.5, %v298
      %v300 = vsub.f32 1.5, %v299
      %v301 = vmul.f32 %v296, %v300
      %v302 = vmul.f32 %v290, %v301
      %vm303 = vcmp.eq.f32.partialorder %v290, inf
      %v304 = vsel %vm303, %v290, %v302
      %vm305 = vcmp.eq.f32.partialorder %v290, 0.0
      %v306 = vand.u32 %v290, 2147483648
      %v307 = vsel %vm305, %v306, %v304
      %v308 = vadd.f32 %v307, 1e-06
      %v309 = vrcp.pop %v308
      %v310 = vmul.f32 %v308, %v309
      %v311 = vsub.f32 1.0, %v310
      %v312 = vmul.f32 %v309, %v311
      %v313 = vadd.f32 %v309, %v312
      %vm314 = vweird.f32 %v308
      %vm315 = vweird.f32 %v309
      %vm316 = vmor %vm314, %vm315
      %v317 = vsel %vm316, %v309, %v313
      %v318 = vand.u32 2147483647, %v308
      %vm319 = vcmp.eq.f32.partialorder %v318, 8.507059e+37
      %v320 = vand.u32 %v308, 2147483648
      %v321 = vor.u32 1.1754944e-38, %v320
      %v322 = vsel %vm319, %v321, %v317
      %v323 = vmul.f32 %v295, %v322
      %v324 = vld [vmem:[%s4] sm:$0x1]
      %v326 = vperm.slane %v324, 0
      %v328 = vadd.f32 %v323, %v326
      %v329 = vpack.c.bf16 %v328, %v328
      %v330 = vld [vmem:[%s260] sm:$0xf]
      %v331 = vld [vmem:[%s260 + $0x4] sm:$0xf]
      %v332 = vld [vmem:[%s260 + $0x8] sm:$0xf]
      %v333 = vld [vmem:[%s260 + $0xc] sm:$0xf]
      %v334 = vld [vmem:[%s263] sm:$0x1]
      %v336 = vperm.slane %v334, 0
      %v342 = vunpack.c.l.b16 %v330
      %v343 = vunpack.c.l.b16 %v331
      %v344 = vunpack.c.l.b16 %v332
      %v345 = vunpack.c.l.b16 %v333
      %v346 = vpack.c.b16 %v343, %v342
      %v347 = vpack.c.b16 %v345, %v344
      %v351 = vsel %vm273, %v329, 0
      %353 = vmatpush.bf16.msra.mxu0 0
      %354 = vmatpush.bf16.msra.mxu0 0
      %355 = vmatpush.bf16.msra.mxu0 0
      %356 = vmatpush.bf16.msra.mxu0 0
      %357 = vmatpush.bf16.msra.mxu0 0
      %358 = vmatpush.bf16.msra.mxu0 0
      %359 = vmatpush.bf16.msra.mxu0 %v347
      %360 = vmatpush.bf16.msra.mxu0 %v346
      %361 = vmatmul.bf16.gmra.mxu0 %v351
      %v362 = vpop.f32.mrf.mxu0
      %v363 = vadd.f32 %v336, %v362
      %v364 = vpop.f32.mrf.mxu0
      %365 = vdwg.mxu0
      %vm366 = vcmask 785408
      %367 = vst.msk [vmem:[%s270] sm:$0xff] %vm366, %v363
      %p368 = scmp.lt.s32.totalorder %s20, 1
      %s369 = scalar_select %p368, %s20, 1
      %p370 = scmp.lt.s32.totalorder %s21, 0
      %s371 = scalar_select %p370, %s21, 0
      %s372 = sadd.s32 %s371, %s369
      %s373 = smul.addr %s372, 8
      %s374 = scalar_lea.vmem %s5, %s373
      // Predicated region
      $region41: #{encoder_decoder_forward.41} parent=39 // pred_check
        %p375 = pneg %p168
      $region42: #{encoder_decoder_forward.41} parent=39 // pred_check_branch
        %377 = sbr.rel (%p375) target = $region44
      $region43: #{encoder_decoder_forward.41} parent=39 // pred_region
        _
      $region44: #{encoder_decoder_forward.41} parent=39 // pred_fallthru
        _
    $region40: #{encoder_decoder_forward.41} parent=5 // pred_fallthru
      _
    %p378 = scmp.le.s32.totalorder 2, %s11
    // Predicated region
    $region45: #{encoder_decoder_forward.41} parent=5 // pred_check
      %p379 = pneg %p378
    $region46: #{encoder_decoder_forward.41} parent=5 // pred_check_branch
      %381 = sbr.rel (%p379) target = $region48
    $region47: #{encoder_decoder_forward.41} parent=5 // pred_region
      %s382 = ssub.s32 %s11, 2
      // Predicated region
      $region49: #{encoder_decoder_forward.41} parent=47 // pred_check
        %p383 = pneg %p174
      $region50: #{encoder_decoder_forward.41} parent=47 // pred_check_branch
        %385 = sbr.rel (%p383) target = $region52
      $region51: #{encoder_decoder_forward.41} parent=47 // pred_region
        %p386 = scmp.lt.s32.totalorder %s22, 1
        %s387 = scalar_select %p386, %s22, 1
        %p388 = scmp.lt.s32.totalorder %s23, 0
        %s389 = scalar_select %p388, %s23, 0
        %s390 = sadd.s32 %s389, %s387
        %s391 = smul.addr %s390, 8
        %s392 = scalar_lea.vmem %s5, %s391
      $region52: #{encoder_decoder_forward.41} parent=47 // pred_fallthru
        _
    $region48: #{encoder_decoder_forward.41} parent=5 // pred_fallthru
      _
  $region6: #{encoder_decoder_forward.41} parent=0 // loop_footer
    %s15 = sadd.s32 1, %s11
  $region7: #{encoder_decoder_forward.41} parent=0 // loop_footer_branch
    %10 = sbr.rel target = $region3
  $region8: #{encoder_decoder_forward.41} parent=0 // loop_exit
    _

// kernel: encoder_decoder_forward.43
$region0: #{encoder_decoder_forward.43}
  #allocation0 [shape = 'u32[]', space=smem, size = 0x4, offset = 0x4, fixed_abs, tag = 'smem constant byte address 0x4 - core index']
  #allocation1 [shape = 'u32[72,128]{1,0:T(1,128)}', space=vmem, size = 0x9000, scoped, tag = 'internal scratch']
  %s0 = inlined_call_operand.vmem [shape: f32[16,32], index: 0, kind: input, shape index: {}]
  %s1 = inlined_call_operand.vmem [shape: bf16[32,32], index: 1, kind: input, shape index: {}]
  %s2 = inlined_call_operand.vmem [shape: f32[1,32], index: 2, kind: input, shape index: {}]
  %s3 = inlined_call_operand.vmem [shape: f32[16,32], index: 3, kind: input, shape index: {}]
  %s4 = inlined_call_operand.vmem [shape: f32[16,32], index: 4, kind: output, shape index: {}]
  %s5 = sld [smem:[#allocation0]]
  $region49: #{encoder_decoder_forward.43} parent=0
    _
  %s7 = ssub.s32 1, %s5
  %s8 = scalar_select 0, %s7, %s5
  loop: start=0, step=1, limit=4
  $region2: #{encoder_decoder_forward.43} parent=0 // loop_pre_header
    _
  $region3: #{encoder_decoder_forward.43} parent=0 // loop_header
    %s10 = sphi 0, %s14
    %p11 = scmp.ge.s32.totalorder %s10, 4
    %s17 = sphi 0, %s29
    %s18 = sphi 0, %s25
    %s19 = sphi 0, %s17
    %s20 = sphi 0, %s18
    %s21 = sphi 0, %s19
    %s22 = sphi 0, %s20
    %s32 = sphi 0, %s34
    %s35 = sphi 0, %s32
    %s36 = sphi 0, %s35
    %s52 = sphi 0, %s36
    %s58 = sphi 0, %s60
    %s61 = sphi 0, %s58
    %s62 = sphi 0, %s61
    %s78 = sphi 0, %s62
    %s84 = sphi 0, %s86
    %s87 = sphi 0, %s84
    %s88 = sphi 0, %s87
    %s104 = sphi 0, %s88
    %s112 = sphi 0, %s114
    %s115 = sphi 0, %s112
    %s116 = sphi 0, %s115
    %s132 = sphi 0, %s116
    %s140 = sphi 0, %s142
    %s143 = sphi 0, %s140
    %s144 = sphi 0, %s143
    %s160 = sphi 0, %s144
  $region4: #{encoder_decoder_forward.43} parent=0 // loop_header_branch
    %13 = sbr.rel (%p11) target = $region8
  $region5: #{encoder_decoder_forward.43} parent=0 // loop_body
    %s15 = ssub.s32 %s10, 1
    %s16 = ssub.s32 %s10, 2
    %s23 = sadd.s32 1, %s18
    %p24 = scmp.ge.s32.totalorder %s23, 1
    %s25 = scalar_select %p24, 0, %s23
    %s26 = sadd.s32 1, %s17
    %s27 = scalar_select %p24, %s26, %s17
    %p28 = scmp.ge.s32.totalorder %s27, 2
    %s29 = scalar_select %p28, 0, %s27
    %s30 = ssub.s32 %s17, %s29
    %p31 = scmp.eq.s32.totalorder %s30, 0
    %s33 = sadd.s32 %s32, 1
    %s34 = scalar_select %p31, %s32, %s33
    %p37 = pneg %p31
    %p38 = scmp.eq.s32.totalorder %s10, 1
    %p39 = por %p37, %p38
    %p40 = scmp.ne.s32.totalorder %s32, %s35
    %p41 = scmp.eq.s32.totalorder %s10, 0
    %p42 = por %p40, %p41
    %p43 = scmp.ne.s32.totalorder %s32, %s35
    %p44 = scmp.eq.s32.totalorder %s15, 1
    %p45 = por %p43, %p44
    %p46 = scmp.ne.s32.totalorder %s35, %s36
    %p47 = scmp.eq.s32.totalorder %s15, 0
    %p48 = por %p46, %p47
    %p49 = scmp.ne.s32.totalorder %s35, %s36
    %p50 = scmp.eq.s32.totalorder %s16, 1
    %p51 = por %p49, %p50
    %p53 = scmp.ne.s32.totalorder %s36, %s52
    %p54 = scmp.eq.s32.totalorder %s16, 0
    %p55 = por %p53, %p54
    %s56 = ssub.s32 %s18, %s25
    %p57 = scmp.eq.s32.totalorder %s56, 0
    %s59 = sadd.s32 %s58, 1
    %s60 = scalar_select %p57, %s58, %s59
    %p63 = pneg %p57
    %p64 = scmp.eq.s32.totalorder %s10, 1
    %p65 = por %p63, %p64
    %p66 = scmp.ne.s32.totalorder %s58, %s61
    %p67 = scmp.eq.s32.totalorder %s10, 0
    %p68 = por %p66, %p67
    %p69 = scmp.ne.s32.totalorder %s58, %s61
    %p70 = scmp.eq.s32.totalorder %s15, 1
    %p71 = por %p69, %p70
    %p72 = scmp.ne.s32.totalorder %s61, %s62
    %p73 = scmp.eq.s32.totalorder %s15, 0
    %p74 = por %p72, %p73
    %p75 = scmp.ne.s32.totalorder %s61, %s62
    %p76 = scmp.eq.s32.totalorder %s16, 1
    %p77 = por %p75, %p76
    %p79 = scmp.ne.s32.totalorder %s62, %s78
    %p80 = scmp.eq.s32.totalorder %s16, 0
    %p81 = por %p79, %p80
    %s82 = ssub.s32 %s18, %s25
    %p83 = scmp.eq.s32.totalorder %s82, 0
    %s85 = sadd.s32 %s84, 1
    %s86 = scalar_select %p83, %s84, %s85
    %p89 = pneg %p83
    %p90 = scmp.eq.s32.totalorder %s10, 1
    %p91 = por %p89, %p90
    %p92 = scmp.ne.s32.totalorder %s84, %s87
    %p93 = scmp.eq.s32.totalorder %s10, 0
    %p94 = por %p92, %p93
    %p95 = scmp.ne.s32.totalorder %s84, %s87
    %p96 = scmp.eq.s32.totalorder %s15, 1
    %p97 = por %p95, %p96
    %p98 = scmp.ne.s32.totalorder %s87, %s88
    %p99 = scmp.eq.s32.totalorder %s15, 0
    %p100 = por %p98, %p99
    %p101 = scmp.ne.s32.totalorder %s87, %s88
    %p102 = scmp.eq.s32.totalorder %s16, 1
    %p103 = por %p101, %p102
    %p105 = scmp.ne.s32.totalorder %s88, %s104
    %p106 = scmp.eq.s32.totalorder %s16, 0
    %p107 = por %p105, %p106
    %s108 = ssub.s32 %s17, %s29
    %s109 = ssub.s32 %s18, %s25
    %s110 = sor.u32 %s108, %s109
    %p111 = scmp.eq.s32.totalorder %s110, 0
    %s113 = sadd.s32 %s112, 1
    %s114 = scalar_select %p111, %s112, %s113
    %p117 = pneg %p111
    %p118 = scmp.eq.s32.totalorder %s10, 1
    %p119 = por %p117, %p118
    %p120 = scmp.ne.s32.totalorder %s112, %s115
    %p121 = scmp.eq.s32.totalorder %s10, 0
    %p122 = por %p120, %p121
    %p123 = scmp.ne.s32.totalorder %s112, %s115
    %p124 = scmp.eq.s32.totalorder %s15, 1
    %p125 = por %p123, %p124
    %p126 = scmp.ne.s32.totalorder %s115, %s116
    %p127 = scmp.eq.s32.totalorder %s15, 0
    %p128 = por %p126, %p127
    %p129 = scmp.ne.s32.totalorder %s115, %s116
    %p130 = scmp.eq.s32.totalorder %s16, 1
    %p131 = por %p129, %p130
    %p133 = scmp.ne.s32.totalorder %s116, %s132
    %p134 = scmp.eq.s32.totalorder %s16, 0
    %p135 = por %p133, %p134
    %s136 = ssub.s32 %s17, %s29
    %s137 = ssub.s32 %s18, %s25
    %s138 = sor.u32 %s136, %s137
    %p139 = scmp.eq.s32.totalorder %s138, 0
    %s141 = sadd.s32 %s140, 1
    %s142 = scalar_select %p139, %s140, %s141
    %p145 = pneg %p139
    %p146 = scmp.eq.s32.totalorder %s10, 1
    %p147 = por %p145, %p146
    %p148 = scmp.ne.s32.totalorder %s140, %s143
    %p149 = scmp.eq.s32.totalorder %s10, 0
    %p150 = por %p148, %p149
    %p151 = scmp.ne.s32.totalorder %s140, %s143
    %p152 = scmp.eq.s32.totalorder %s15, 1
    %p153 = por %p151, %p152
    %p154 = scmp.ne.s32.totalorder %s143, %s144
    %p155 = scmp.eq.s32.totalorder %s15, 0
    %p156 = por %p154, %p155
    %p157 = scmp.ne.s32.totalorder %s143, %s144
    %p158 = scmp.eq.s32.totalorder %s16, 1
    %p159 = por %p157, %p158
    %p161 = scmp.ne.s32.totalorder %s144, %s160
    %p162 = scmp.eq.s32.totalorder %s16, 0
    %p163 = por %p161, %p162
    %p164 = scmp.le.s32.totalorder 1, %s10
    %p165 = scmp.lt.s32.totalorder %s10, 3
    %p166 = pnand %p164, %p165
    %p167 = pneg %p166
    // Predicated region
    $region9: #{encoder_decoder_forward.43} parent=5 // pred_check
      _
    $region10: #{encoder_decoder_forward.43} parent=5 // pred_check_branch
      %169 = sbr.rel (%p166) target = $region12
    $region11: #{encoder_decoder_forward.43} parent=5 // pred_region
      %s170 = ssub.s32 %s10, 1
      // Predicated region
      $region13: #{encoder_decoder_forward.43} parent=11 // pred_check
        %p171 = pneg %p74
      $region14: #{encoder_decoder_forward.43} parent=11 // pred_check_branch
        %173 = sbr.rel (%p171) target = $region16
      $region15: #{encoder_decoder_forward.43} parent=11 // pred_region
        %p174 = scmp.lt.s32.totalorder %s20, 0
        %s175 = scalar_select %p174, %s20, 0
        %s176 = smul.addr %s175, 4
        %s177 = scalar_lea.vmem %s1, %s176
      $region16: #{encoder_decoder_forward.43} parent=11 // pred_fallthru
        _
      // Predicated region
      $region17: #{encoder_decoder_forward.43} parent=11 // pred_check
        %p178 = pneg %p100
      $region18: #{encoder_decoder_forward.43} parent=11 // pred_check_branch
        %180 = sbr.rel (%p178) target = $region20
      $region19: #{encoder_decoder_forward.43} parent=11 // pred_region
        %p181 = scmp.lt.s32.totalorder %s20, 0
        %s182 = scalar_select %p181, %s20, 0
        %s183 = scalar_lea.vmem %s2, %s182
      $region20: #{encoder_decoder_forward.43} parent=11 // pred_fallthru
        _
    $region12: #{encoder_decoder_forward.43} parent=5 // pred_fallthru
      _
    %p184 = scmp.lt.s32.totalorder %s10, 2
    // Predicated region
    $region21: #{encoder_decoder_forward.43} parent=5 // pred_check
      %p185 = pneg %p184
    $region22: #{encoder_decoder_forward.43} parent=5 // pred_check_branch
      %187 = sbr.rel (%p185) target = $region24
    $region23: #{encoder_decoder_forward.43} parent=5 // pred_region
      // Predicated region
      $region25: #{encoder_decoder_forward.43} parent=23 // pred_check
        %p188 = pneg %p42
      $region26: #{encoder_decoder_forward.43} parent=23 // pred_check_branch
        %190 = sbr.rel (%p188) target = $region28
      $region27: #{encoder_decoder_forward.43} parent=23 // pred_region
        %p191 = scmp.lt.s32.totalorder %s17, 1
        %s192 = scalar_select %p191, %s17, 1
        %s193 = smul.addr %s192, 8
        %s194 = scalar_lea.vmem %s0, %s193
      $region28: #{encoder_decoder_forward.43} parent=23 // pred_fallthru
        _
      // Predicated region
      $region29: #{encoder_decoder_forward.43} parent=23 // pred_check
        %p195 = pneg %p122
      $region30: #{encoder_decoder_forward.43} parent=23 // pred_check_branch
        %197 = sbr.rel (%p195) target = $region32
      $region31: #{encoder_decoder_forward.43} parent=23 // pred_region
        %p198 = scmp.lt.s32.totalorder %s17, 1
        %s199 = scalar_select %p198, %s17, 1
        %p200 = scmp.lt.s32.totalorder %s18, 0
        %s201 = scalar_select %p200, %s18, 0
        %s202 = sadd.s32 %s201, %s199
        %s203 = smul.addr %s202, 8
        %s204 = scalar_lea.vmem %s3, %s203
      $region32: #{encoder_decoder_forward.43} parent=23 // pred_fallthru
        _
    $region24: #{encoder_decoder_forward.43} parent=5 // pred_fallthru
      _
    %p205 = scmp.le.s32.totalorder 1, %s10
    %p206 = scmp.lt.s32.totalorder %s10, 3
    %p207 = pnand %p205, %p206
    %p208 = pneg %p207
    // Predicated region
    $region33: #{encoder_decoder_forward.43} parent=5 // pred_check
      _
    $region34: #{encoder_decoder_forward.43} parent=5 // pred_check_branch
      %210 = sbr.rel (%p207) target = $region36
    $region35: #{encoder_decoder_forward.43} parent=5 // pred_region
      %s211 = ssub.s32 %s10, 1
      %p212 = scmp.lt.s32.totalorder %s19, 1
      %s213 = scalar_select %p212, %s19, 1
      %s214 = smul.addr %s213, 8
      %s215 = scalar_lea.vmem %s0, %s214
      %p216 = pneg %p48
      %p217 = pneg %p45
      %p218 = scmp.lt.s32.totalorder %s20, 0
      %s219 = scalar_select %p218, %s20, 0
      %s220 = smul.addr %s219, 4
      %s221 = scalar_lea.vmem %s1, %s220
      %p222 = pneg %p74
      %p223 = pneg %p71
      %p224 = scmp.lt.s32.totalorder %s20, 0
      %s225 = scalar_select %p224, %s20, 0
      %s226 = scalar_lea.vmem %s2, %s225
      %p227 = pneg %p100
      %p228 = pneg %p97
      %p229 = scmp.lt.s32.totalorder %s19, 1
      %s230 = scalar_select %p229, %s19, 1
      %p231 = scmp.lt.s32.totalorder %s20, 0
      %s232 = scalar_select %p231, %s20, 0
      %s233 = sadd.s32 %s232, %s230
      %s234 = smul.addr %s233, 8
      %s235 = scalar_lea.vmem %s3, %s234
      %p236 = pneg %p128
      %p237 = pneg %p125
      %p238 = pneg %p156
      %p239 = pneg %p153
      %p240 = scmp.lt.s32.totalorder %s19, 1
      %s241 = scalar_select %p240, %s19, 1
      %p242 = scmp.lt.s32.totalorder %s20, 0
      %s243 = scalar_select %p242, %s20, 0
      %s244 = sadd.s32 %s243, %s241
      %s245 = smul.addr %s244, 8
      %s246 = scalar_lea.vmem %s4, %s245
      %p247 = scmp.lt.s32.totalorder %s19, 1
      %s248 = scalar_select %p247, %s19, 1
      %s249 = smul.addr %s248, 8
      %s250 = scalar_lea.vmem %s0, %s249
      %p251 = scmp.lt.s32.totalorder %s20, 0
      %s252 = scalar_select %p251, %s20, 0
      %s253 = smul.addr %s252, 4
      %s254 = scalar_lea.vmem %s1, %s253
      %p255 = scmp.lt.s32.totalorder %s20, 0
      %s256 = scalar_select %p255, %s20, 0
      %s257 = scalar_lea.vmem %s2, %s256
      %p258 = scmp.lt.s32.totalorder %s19, 1
      %s259 = scalar_select %p258, %s19, 1
      %p260 = scmp.lt.s32.totalorder %s20, 0
      %s261 = scalar_select %p260, %s20, 0
      %s262 = sadd.s32 %s261, %s259
      %s263 = smul.addr %s262, 8
      %s264 = scalar_lea.vmem %s3, %s263
      %p265 = scmp.lt.s32.totalorder %s19, 1
      %s266 = scalar_select %p265, %s19, 1
      %p267 = scmp.lt.s32.totalorder %s20, 0
      %s268 = scalar_select %p267, %s20, 0
      %s269 = sadd.s32 %s268, %s266
      %s270 = smul.addr %s269, 8
      %s271 = scalar_lea.vmem %s4, %s270
      %v273 = vld [vmem:[%s250] sm:$0xff]
      %v274 = vpack.c.bf16 %v273, %v273
      %v275 = vld [vmem:[%s254] sm:$0xf]
      %v276 = vld [vmem:[%s254 + $0x4] sm:$0xf]
      %v277 = vld [vmem:[%s254 + $0x8] sm:$0xf]
      %v278 = vld [vmem:[%s254 + $0xc] sm:$0xf]
      %v279 = vld [vmem:[%s257] sm:$0x1]
      %v281 = vperm.slane %v279, 0
      %v287 = vunpack.c.l.b16 %v275
      %v288 = vunpack.c.l.b16 %v276
      %v289 = vunpack.c.l.b16 %v277
      %v290 = vunpack.c.l.b16 %v278
      %v291 = vpack.c.b16 %v288, %v287
      %v292 = vpack.c.b16 %v290, %v289
      %vm295 = vcmask 261120
      %v297 = vsel %vm295, %v274, 0
      %299 = vmatpush.bf16.msra.mxu0 0
      %300 = vmatpush.bf16.msra.mxu0 0
      %301 = vmatpush.bf16.msra.mxu0 0
      %302 = vmatpush.bf16.msra.mxu0 0
      %303 = vmatpush.bf16.msra.mxu0 0
      %304 = vmatpush.bf16.msra.mxu0 0
      %305 = vmatpush.bf16.msra.mxu0 %v292
      %306 = vmatpush.bf16.msra.mxu0 %v291
      %307 = vmatmul.bf16.gmra.mxu0 %v297
      %v308 = vpop.f32.mrf.mxu0
      %v309 = vadd.f32 %v281, %v308
      %v310 = vpop.f32.mrf.mxu0
      %311 = vdwg.mxu0
      %v312 = vld [vmem:[%s264] sm:$0xff]
      %v313 = vadd.f32 %v309, %v312
      %314 = vst.msk [vmem:[%s271] sm:$0xff] %vm295, %v313
      %p315 = scmp.lt.s32.totalorder %s19, 1
      %s316 = scalar_select %p315, %s19, 1
      %p317 = scmp.lt.s32.totalorder %s20, 0
      %s318 = scalar_select %p317, %s20, 0
      %s319 = sadd.s32 %s318, %s316
      %s320 = smul.addr %s319, 8
      %s321 = scalar_lea.vmem %s4, %s320
      // Predicated region
      $region37: #{encoder_decoder_forward.43} parent=35 // pred_check
        %p322 = pneg %p153
      $region38: #{encoder_decoder_forward.43} parent=35 // pred_check_branch
        %324 = sbr.rel (%p322) target = $region40
      $region39: #{encoder_decoder_forward.43} parent=35 // pred_region
        _
      $region40: #{encoder_decoder_forward.43} parent=35 // pred_fallthru
        _
    $region36: #{encoder_decoder_forward.43} parent=5 // pred_fallthru
      _
    %p325 = scmp.le.s32.totalorder 2, %s10
    // Predicated region
    $region41: #{encoder_decoder_forward.43} parent=5 // pred_check
      %p326 = pneg %p325
    $region42: #{encoder_decoder_forward.43} parent=5 // pred_check_branch
      %328 = sbr.rel (%p326) target = $region44
    $region43: #{encoder_decoder_forward.43} parent=5 // pred_region
      %s329 = ssub.s32 %s10, 2
      // Predicated region
      $region45: #{encoder_decoder_forward.43} parent=43 // pred_check
        %p330 = pneg %p159
      $region46: #{encoder_decoder_forward.43} parent=43 // pred_check_branch
        %332 = sbr.rel (%p330) target = $region48
      $region47: #{encoder_decoder_forward.43} parent=43 // pred_region
        %p333 = scmp.lt.s32.totalorder %s21, 1
        %s334 = scalar_select %p333, %s21, 1
        %p335 = scmp.lt.s32.totalorder %s22, 0
        %s336 = scalar_select %p335, %s22, 0
        %s337 = sadd.s32 %s336, %s334
        %s338 = smul.addr %s337, 8
        %s339 = scalar_lea.vmem %s4, %s338
      $region48: #{encoder_decoder_forward.43} parent=43 // pred_fallthru
        _
    $region44: #{encoder_decoder_forward.43} parent=5 // pred_fallthru
      _
  $region6: #{encoder_decoder_forward.43} parent=0 // loop_footer
    %s14 = sadd.s32 1, %s10
  $region7: #{encoder_decoder_forward.43} parent=0 // loop_footer_branch
    %9 = sbr.rel target = $region3
  $region8: #{encoder_decoder_forward.43} parent=0 // loop_exit
    _

// kernel: encoder_decoder_forward.44
$region0: #{encoder_decoder_forward.44}
  #allocation0 [shape = 'u32[]', space=smem, size = 0x4, offset = 0x4, fixed_abs, tag = 'smem constant byte address 0x4 - core index']
  #allocation1 [shape = 'u32[72,128]{1,0:T(1,128)}', space=vmem, size = 0x9000, scoped, tag = 'internal scratch']
  %s0 = inlined_call_operand.vmem [shape: f32[16,32], index: 0, kind: input, shape index: {}]
  %s1 = inlined_call_operand.vmem [shape: bf16[32,32], index: 1, kind: input, shape index: {}]
  %s2 = inlined_call_operand.vmem [shape: f32[1,32], index: 2, kind: input, shape index: {}]
  %s3 = inlined_call_operand.vmem [shape: f32[1,32], index: 3, kind: input, shape index: {}]
  %s4 = inlined_call_operand.vmem [shape: f32[1,32], index: 4, kind: input, shape index: {}]
  %s5 = inlined_call_operand.vmem [shape: f32[16,32], index: 5, kind: output, shape index: {}]
  %s6 = sld [smem:[#allocation0]]
  $region53: #{encoder_decoder_forward.44} parent=0
    _
  %s8 = ssub.s32 1, %s6
  %s9 = scalar_select 0, %s8, %s6
  loop: start=0, step=1, limit=4
  $region2: #{encoder_decoder_forward.44} parent=0 // loop_pre_header
    _
  $region3: #{encoder_decoder_forward.44} parent=0 // loop_header
    %s11 = sphi 0, %s15
    %p12 = scmp.ge.s32.totalorder %s11, 4
    %s18 = sphi 0, %s30
    %s19 = sphi 0, %s26
    %s20 = sphi 0, %s18
    %s21 = sphi 0, %s19
    %s22 = sphi 0, %s20
    %s23 = sphi 0, %s21
    %s33 = sphi 0, %s35
    %s36 = sphi 0, %s33
    %s37 = sphi 0, %s36
    %s53 = sphi 0, %s37
    %s59 = sphi 0, %s61
    %s62 = sphi 0, %s59
    %s63 = sphi 0, %s62
    %s79 = sphi 0, %s63
    %s85 = sphi 0, %s87
    %s88 = sphi 0, %s85
    %s89 = sphi 0, %s88
    %s105 = sphi 0, %s89
    %s109 = sphi 0, %s109
    %s111 = sphi 0, %s109
    %s112 = sphi 0, %s111
    %s126 = sphi 0, %s112
    %s130 = sphi 0, %s130
    %s132 = sphi 0, %s130
    %s133 = sphi 0, %s132
    %s147 = sphi 0, %s133
    %s155 = sphi 0, %s157
    %s158 = sphi 0, %s155
    %s159 = sphi 0, %s158
    %s175 = sphi 0, %s159
  $region4: #{encoder_decoder_forward.44} parent=0 // loop_header_branch
    %14 = sbr.rel (%p12) target = $region8
  $region5: #{encoder_decoder_forward.44} parent=0 // loop_body
    %s16 = ssub.s32 %s11, 1
    %s17 = ssub.s32 %s11, 2
    %s24 = sadd.s32 1, %s19
    %p25 = scmp.ge.s32.totalorder %s24, 1
    %s26 = scalar_select %p25, 0, %s24
    %s27 = sadd.s32 1, %s18
    %s28 = scalar_select %p25, %s27, %s18
    %p29 = scmp.ge.s32.totalorder %s28, 2
    %s30 = scalar_select %p29, 0, %s28
    %s31 = ssub.s32 %s18, %s30
    %p32 = scmp.eq.s32.totalorder %s31, 0
    %s34 = sadd.s32 %s33, 1
    %s35 = scalar_select %p32, %s33, %s34
    %p38 = pneg %p32
    %p39 = scmp.eq.s32.totalorder %s11, 1
    %p40 = por %p38, %p39
    %p41 = scmp.ne.s32.totalorder %s33, %s36
    %p42 = scmp.eq.s32.totalorder %s11, 0
    %p43 = por %p41, %p42
    %p44 = scmp.ne.s32.totalorder %s33, %s36
    %p45 = scmp.eq.s32.totalorder %s16, 1
    %p46 = por %p44, %p45
    %p47 = scmp.ne.s32.totalorder %s36, %s37
    %p48 = scmp.eq.s32.totalorder %s16, 0
    %p49 = por %p47, %p48
    %p50 = scmp.ne.s32.totalorder %s36, %s37
    %p51 = scmp.eq.s32.totalorder %s17, 1
    %p52 = por %p50, %p51
    %p54 = scmp.ne.s32.totalorder %s37, %s53
    %p55 = scmp.eq.s32.totalorder %s17, 0
    %p56 = por %p54, %p55
    %s57 = ssub.s32 %s19, %s26
    %p58 = scmp.eq.s32.totalorder %s57, 0
    %s60 = sadd.s32 %s59, 1
    %s61 = scalar_select %p58, %s59, %s60
    %p64 = pneg %p58
    %p65 = scmp.eq.s32.totalorder %s11, 1
    %p66 = por %p64, %p65
    %p67 = scmp.ne.s32.totalorder %s59, %s62
    %p68 = scmp.eq.s32.totalorder %s11, 0
    %p69 = por %p67, %p68
    %p70 = scmp.ne.s32.totalorder %s59, %s62
    %p71 = scmp.eq.s32.totalorder %s16, 1
    %p72 = por %p70, %p71
    %p73 = scmp.ne.s32.totalorder %s62, %s63
    %p74 = scmp.eq.s32.totalorder %s16, 0
    %p75 = por %p73, %p74
    %p76 = scmp.ne.s32.totalorder %s62, %s63
    %p77 = scmp.eq.s32.totalorder %s17, 1
    %p78 = por %p76, %p77
    %p80 = scmp.ne.s32.totalorder %s63, %s79
    %p81 = scmp.eq.s32.totalorder %s17, 0
    %p82 = por %p80, %p81
    %s83 = ssub.s32 %s19, %s26
    %p84 = scmp.eq.s32.totalorder %s83, 0
    %s86 = sadd.s32 %s85, 1
    %s87 = scalar_select %p84, %s85, %s86
    %p90 = pneg %p84
    %p91 = scmp.eq.s32.totalorder %s11, 1
    %p92 = por %p90, %p91
    %p93 = scmp.ne.s32.totalorder %s85, %s88
    %p94 = scmp.eq.s32.totalorder %s11, 0
    %p95 = por %p93, %p94
    %p96 = scmp.ne.s32.totalorder %s85, %s88
    %p97 = scmp.eq.s32.totalorder %s16, 1
    %p98 = por %p96, %p97
    %p99 = scmp.ne.s32.totalorder %s88, %s89
    %p100 = scmp.eq.s32.totalorder %s16, 0
    %p101 = por %p99, %p100
    %p102 = scmp.ne.s32.totalorder %s88, %s89
    %p103 = scmp.eq.s32.totalorder %s17, 1
    %p104 = por %p102, %p103
    %p106 = scmp.ne.s32.totalorder %s89, %s105
    %p107 = scmp.eq.s32.totalorder %s17, 0
    %p108 = por %p106, %p107
    %s110 = sadd.s32 %s109, 1
    %p113 = scmp.eq.s32.totalorder %s11, 1
    %p114 = scmp.ne.s32.totalorder %s109, %s111
    %p115 = scmp.eq.s32.totalorder %s11, 0
    %p116 = por %p114, %p115
    %p117 = scmp.ne.s32.totalorder %s109, %s111
    %p118 = scmp.eq.s32.totalorder %s16, 1
    %p119 = por %p117, %p118
    %p120 = scmp.ne.s32.totalorder %s111, %s112
    %p121 = scmp.eq.s32.totalorder %s16, 0
    %p122 = por %p120, %p121
    %p123 = scmp.ne.s32.totalorder %s111, %s112
    %p124 = scmp.eq.s32.totalorder %s17, 1
    %p125 = por %p123, %p124
    %p127 = scmp.ne.s32.totalorder %s112, %s126
    %p128 = scmp.eq.s32.totalorder %s17, 0
    %p129 = por %p127, %p128
    %s131 = sadd.s32 %s130, 1
    %p134 = scmp.eq.s32.totalorder %s11, 1
    %p135 = scmp.ne.s32.totalorder %s130, %s132
    %p136 = scmp.eq.s32.totalorder %s11, 0
    %p137 = por %p135, %p136
    %p138 = scmp.ne.s32.totalorder %s130, %s132
    %p139 = scmp.eq.s32.totalorder %s16, 1
    %p140 = por %p138, %p139
    %p141 = scmp.ne.s32.totalorder %s132, %s133
    %p142 = scmp.eq.s32.totalorder %s16, 0
    %p143 = por %p141, %p142
    %p144 = scmp.ne.s32.totalorder %s132, %s133
    %p145 = scmp.eq.s32.totalorder %s17, 1
    %p146 = por %p144, %p145
    %p148 = scmp.ne.s32.totalorder %s133, %s147
    %p149 = scmp.eq.s32.totalorder %s17, 0
    %p150 = por %p148, %p149
    %s151 = ssub.s32 %s18, %s30
    %s152 = ssub.s32 %s19, %s26
    %s153 = sor.u32 %s151, %s152
    %p154 = scmp.eq.s32.totalorder %s153, 0
    %s156 = sadd.s32 %s155, 1
    %s157 = scalar_select %p154, %s155, %s156
    %p160 = pneg %p154
    %p161 = scmp.eq.s32.totalorder %s11, 1
    %p162 = por %p160, %p161
    %p163 = scmp.ne.s32.totalorder %s155, %s158
    %p164 = scmp.eq.s32.totalorder %s11, 0
    %p165 = por %p163, %p164
    %p166 = scmp.ne.s32.totalorder %s155, %s158
    %p167 = scmp.eq.s32.totalorder %s16, 1
    %p168 = por %p166, %p167
    %p169 = scmp.ne.s32.totalorder %s158, %s159
    %p170 = scmp.eq.s32.totalorder %s16, 0
    %p171 = por %p169, %p170
    %p172 = scmp.ne.s32.totalorder %s158, %s159
    %p173 = scmp.eq.s32.totalorder %s17, 1
    %p174 = por %p172, %p173
    %p176 = scmp.ne.s32.totalorder %s159, %s175
    %p177 = scmp.eq.s32.totalorder %s17, 0
    %p178 = por %p176, %p177
    %p179 = scmp.le.s32.totalorder 1, %s11
    %p180 = scmp.lt.s32.totalorder %s11, 3
    %p181 = pnand %p179, %p180
    %p182 = pneg %p181
    // Predicated region
    $region9: #{encoder_decoder_forward.44} parent=5 // pred_check
      _
    $region10: #{encoder_decoder_forward.44} parent=5 // pred_check_branch
      %184 = sbr.rel (%p181) target = $region12
    $region11: #{encoder_decoder_forward.44} parent=5 // pred_region
      %s185 = ssub.s32 %s11, 1
      // Predicated region
      $region13: #{encoder_decoder_forward.44} parent=11 // pred_check
        %p186 = pneg %p75
      $region14: #{encoder_decoder_forward.44} parent=11 // pred_check_branch
        %188 = sbr.rel (%p186) target = $region16
      $region15: #{encoder_decoder_forward.44} parent=11 // pred_region
        %p189 = scmp.lt.s32.totalorder %s21, 0
        %s190 = scalar_select %p189, %s21, 0
        %s191 = smul.addr %s190, 4
        %s192 = scalar_lea.vmem %s1, %s191
      $region16: #{encoder_decoder_forward.44} parent=11 // pred_fallthru
        _
      // Predicated region
      $region17: #{encoder_decoder_forward.44} parent=11 // pred_check
        %p193 = pneg %p101
      $region18: #{encoder_decoder_forward.44} parent=11 // pred_check_branch
        %195 = sbr.rel (%p193) target = $region20
      $region19: #{encoder_decoder_forward.44} parent=11 // pred_region
        %p196 = scmp.lt.s32.totalorder %s21, 0
        %s197 = scalar_select %p196, %s21, 0
        %s198 = scalar_lea.vmem %s2, %s197
      $region20: #{encoder_decoder_forward.44} parent=11 // pred_fallthru
        _
      // Predicated region
      $region21: #{encoder_decoder_forward.44} parent=11 // pred_check
        %p199 = pneg %p122
      $region22: #{encoder_decoder_forward.44} parent=11 // pred_check_branch
        %201 = sbr.rel (%p199) target = $region24
      $region23: #{encoder_decoder_forward.44} parent=11 // pred_region
        _
      $region24: #{encoder_decoder_forward.44} parent=11 // pred_fallthru
        _
      // Predicated region
      $region25: #{encoder_decoder_forward.44} parent=11 // pred_check
        %p202 = pneg %p143
      $region26: #{encoder_decoder_forward.44} parent=11 // pred_check_branch
        %204 = sbr.rel (%p202) target = $region28
      $region27: #{encoder_decoder_forward.44} parent=11 // pred_region
        _
      $region28: #{encoder_decoder_forward.44} parent=11 // pred_fallthru
        _
    $region12: #{encoder_decoder_forward.44} parent=5 // pred_fallthru
      _
    %p205 = scmp.lt.s32.totalorder %s11, 2
    // Predicated region
    $region29: #{encoder_decoder_forward.44} parent=5 // pred_check
      %p206 = pneg %p205
    $region30: #{encoder_decoder_forward.44} parent=5 // pred_check_branch
      %208 = sbr.rel (%p206) target = $region32
    $region31: #{encoder_decoder_forward.44} parent=5 // pred_region
      // Predicated region
      $region33: #{encoder_decoder_forward.44} parent=31 // pred_check
        %p209 = pneg %p43
      $region34: #{encoder_decoder_forward.44} parent=31 // pred_check_branch
        %211 = sbr.rel (%p209) target = $region36
      $region35: #{encoder_decoder_forward.44} parent=31 // pred_region
        %p212 = scmp.lt.s32.totalorder %s18, 1
        %s213 = scalar_select %p212, %s18, 1
        %s214 = smul.addr %s213, 8
        %s215 = scalar_lea.vmem %s0, %s214
      $region36: #{encoder_decoder_forward.44} parent=31 // pred_fallthru
        _
    $region32: #{encoder_decoder_forward.44} parent=5 // pred_fallthru
      _
    %p216 = scmp.le.s32.totalorder 1, %s11
    %p217 = scmp.lt.s32.totalorder %s11, 3
    %p218 = pnand %p216, %p217
    %p219 = pneg %p218
    // Predicated region
    $region37: #{encoder_decoder_forward.44} parent=5 // pred_check
      _
    $region38: #{encoder_decoder_forward.44} parent=5 // pred_check_branch
      %221 = sbr.rel (%p218) target = $region40
    $region39: #{encoder_decoder_forward.44} parent=5 // pred_region
      %s222 = ssub.s32 %s11, 1
      %p223 = scmp.lt.s32.totalorder %s20, 1
      %s224 = scalar_select %p223, %s20, 1
      %s225 = smul.addr %s224, 8
      %s226 = scalar_lea.vmem %s0, %s225
      %p227 = pneg %p49
      %p228 = pneg %p46
      %p229 = scmp.lt.s32.totalorder %s21, 0
      %s230 = scalar_select %p229, %s21, 0
      %s231 = smul.addr %s230, 4
      %s232 = scalar_lea.vmem %s1, %s231
      %p233 = pneg %p75
      %p234 = pneg %p72
      %p235 = scmp.lt.s32.totalorder %s21, 0
      %s236 = scalar_select %p235, %s21, 0
      %s237 = scalar_lea.vmem %s2, %s236
      %p238 = pneg %p101
      %p239 = pneg %p98
      %p240 = pneg %p122
      %p241 = pneg %p119
      %p242 = pneg %p143
      %p243 = pneg %p140
      %p244 = pneg %p171
      %p245 = pneg %p168
      %p246 = scmp.lt.s32.totalorder %s20, 1
      %s247 = scalar_select %p246, %s20, 1
      %p248 = scmp.lt.s32.totalorder %s21, 0
      %s249 = scalar_select %p248, %s21, 0
      %s250 = sadd.s32 %s249, %s247
      %s251 = smul.addr %s250, 8
      %s252 = scalar_lea.vmem %s5, %s251
      %p253 = scmp.lt.s32.totalorder %s20, 1
      %s254 = scalar_select %p253, %s20, 1
      %s255 = smul.addr %s254, 8
      %s256 = scalar_lea.vmem %s0, %s255
      %p257 = scmp.lt.s32.totalorder %s21, 0
      %s258 = scalar_select %p257, %s21, 0
      %s259 = smul.addr %s258, 4
      %s260 = scalar_lea.vmem %s1, %s259
      %p261 = scmp.lt.s32.totalorder %s21, 0
      %s262 = scalar_select %p261, %s21, 0
      %s263 = scalar_lea.vmem %s2, %s262
      %p264 = scmp.lt.s32.totalorder %s20, 1
      %s265 = scalar_select %p264, %s20, 1
      %p266 = scmp.lt.s32.totalorder %s21, 0
      %s267 = scalar_select %p266, %s21, 0
      %s268 = sadd.s32 %s267, %s265
      %s269 = smul.addr %s268, 8
      %s270 = scalar_lea.vmem %s5, %s269
      %v272 = vld [vmem:[%s256] sm:$0xff]
      %vm273 = vcmask 261120
      %v274 = vsel %vm273, %v272, 0.0
      %275 = vadd.xlane.f32.xlu0 %v274
      %v276 = vpop.xlane.xlu0 %275
      %v277 = vrcp.pop 32.0
      %v278 = vmul.f32 32.0, %v277
      %v279 = vsub.f32 1.0, %v278
      %v280 = vmul.f32 %v277, %v279
      %v281 = vadd.f32 %v277, %v280
      %vm282 = vweird.f32 %v277
      %v283 = vsel %vm282, %v277, %v281
      %v284 = vmul.f32 %v276, %v283
      %v285 = vsub.f32 %v272, %v284
      %v286 = vmul.f32 %v285, %v285
      %v287 = vsel %vm273, %v286, 0.0
      %288 = vadd.xlane.f32.xlu0 %v287
      %v289 = vpop.xlane.xlu0 %288
      %v290 = vmul.f32 %v289, 0.032258064
      %v291 = vld [vmem:[%s3] sm:$0x1]
      %v293 = vperm.slane %v291, 0
      %v295 = vmul.f32 %v293, %v285
      %v296 = vrsqrt.pop %v290
      %v297 = vmul.f32 %v296, %v290
      %v298 = vmul.f32 %v297, %v296
      %v299 = vmul.f32 0.5, %v298
      %v300 = vsub.f32 1.5, %v299
      %v301 = vmul.f32 %v296, %v300
      %v302 = vmul.f32 %v290, %v301
      %vm303 = vcmp.eq.f32.partialorder %v290, inf
      %v304 = vsel %vm303, %v290, %v302
      %vm305 = vcmp.eq.f32.partialorder %v290, 0.0
      %v306 = vand.u32 %v290, 2147483648
      %v307 = vsel %vm305, %v306, %v304
      %v308 = vadd.f32 %v307, 1e-06
      %v309 = vrcp.pop %v308
      %v310 = vmul.f32 %v308, %v309
      %v311 = vsub.f32 1.0, %v310
      %v312 = vmul.f32 %v309, %v311
      %v313 = vadd.f32 %v309, %v312
      %vm314 = vweird.f32 %v308
      %vm315 = vweird.f32 %v309
      %vm316 = vmor %vm314, %vm315
      %v317 = vsel %vm316, %v309, %v313
      %v318 = vand.u32 2147483647, %v308
      %vm319 = vcmp.eq.f32.partialorder %v318, 8.507059e+37
      %v320 = vand.u32 %v308, 2147483648
      %v321 = vor.u32 1.1754944e-38, %v320
      %v322 = vsel %vm319, %v321, %v317
      %v323 = vmul.f32 %v295, %v322
      %v324 = vld [vmem:[%s4] sm:$0x1]
      %v326 = vperm.slane %v324, 0
      %v328 = vadd.f32 %v323, %v326
      %v329 = vpack.c.bf16 %v328, %v328
      %v330 = vld [vmem:[%s260] sm:$0xf]
      %v331 = vld [vmem:[%s260 + $0x4] sm:$0xf]
      %v332 = vld [vmem:[%s260 + $0x8] sm:$0xf]
      %v333 = vld [vmem:[%s260 + $0xc] sm:$0xf]
      %v334 = vld [vmem:[%s263] sm:$0x1]
      %v336 = vperm.slane %v334, 0
      %v342 = vunpack.c.l.b16 %v330
      %v343 = vunpack.c.l.b16 %v331
      %v344 = vunpack.c.l.b16 %v332
      %v345 = vunpack.c.l.b16 %v333
      %v346 = vpack.c.b16 %v343, %v342
      %v347 = vpack.c.b16 %v345, %v344
      %v351 = vsel %vm273, %v329, 0
      %353 = vmatpush.bf16.msra.mxu0 0
      %354 = vmatpush.bf16.msra.mxu0 0
      %355 = vmatpush.bf16.msra.mxu0 0
      %356 = vmatpush.bf16.msra.mxu0 0
      %357 = vmatpush.bf16.msra.mxu0 0
      %358 = vmatpush.bf16.msra.mxu0 0
      %359 = vmatpush.bf16.msra.mxu0 %v347
      %360 = vmatpush.bf16.msra.mxu0 %v346
      %361 = vmatmul.bf16.gmra.mxu0 %v351
      %v362 = vpop.f32.mrf.mxu0
      %v363 = vadd.f32 %v336, %v362
      %v364 = vpop.f32.mrf.mxu0
      %365 = vdwg.mxu0
      %366 = vst.msk [vmem:[%s270] sm:$0xff] %vm273, %v363
      %p367 = scmp.lt.s32.totalorder %s20, 1
      %s368 = scalar_select %p367, %s20, 1
      %p369 = scmp.lt.s32.totalorder %s21, 0
      %s370 = scalar_select %p369, %s21, 0
      %s371 = sadd.s32 %s370, %s368
      %s372 = smul.addr %s371, 8
      %s373 = scalar_lea.vmem %s5, %s372
      // Predicated region
      $region41: #{encoder_decoder_forward.44} parent=39 // pred_check
        %p374 = pneg %p168
      $region42: #{encoder_decoder_forward.44} parent=39 // pred_check_branch
        %376 = sbr.rel (%p374) target = $region44
      $region43: #{encoder_decoder_forward.44} parent=39 // pred_region
        _
      $region44: #{encoder_decoder_forward.44} parent=39 // pred_fallthru
        _
    $region40: #{encoder_decoder_forward.44} parent=5 // pred_fallthru
      _
    %p377 = scmp.le.s32.totalorder 2, %s11
    // Predicated region
    $region45: #{encoder_decoder_forward.44} parent=5 // pred_check
      %p378 = pneg %p377
    $region46: #{encoder_decoder_forward.44} parent=5 // pred_check_branch
      %380 = sbr.rel (%p378) target = $region48
    $region47: #{encoder_decoder_forward.44} parent=5 // pred_region
      %s381 = ssub.s32 %s11, 2
      // Predicated region
      $region49: #{encoder_decoder_forward.44} parent=47 // pred_check
        %p382 = pneg %p174
      $region50: #{encoder_decoder_forward.44} parent=47 // pred_check_branch
        %384 = sbr.rel (%p382) target = $region52
      $region51: #{encoder_decoder_forward.44} parent=47 // pred_region
        %p385 = scmp.lt.s32.totalorder %s22, 1
        %s386 = scalar_select %p385, %s22, 1
        %p387 = scmp.lt.s32.totalorder %s23, 0
        %s388 = scalar_select %p387, %s23, 0
        %s389 = sadd.s32 %s388, %s386
        %s390 = smul.addr %s389, 8
        %s391 = scalar_lea.vmem %s5, %s390
      $region52: #{encoder_decoder_forward.44} parent=47 // pred_fallthru
        _
    $region48: #{encoder_decoder_forward.44} parent=5 // pred_fallthru
      _
  $region6: #{encoder_decoder_forward.44} parent=0 // loop_footer
    %s15 = sadd.s32 1, %s11
  $region7: #{encoder_decoder_forward.44} parent=0 // loop_footer_branch
    %10 = sbr.rel target = $region3
  $region8: #{encoder_decoder_forward.44} parent=0 // loop_exit
    _

// kernel: encoder_decoder_forward.42
$region0: #{encoder_decoder_forward.42}
  #allocation0 [shape = 'u32[]', space=smem, size = 0x4, offset = 0x4, fixed_abs, tag = 'smem constant byte address 0x4 - core index']
  #allocation1 [shape = 'u32[72,128]{1,0:T(1,128)}', space=vmem, size = 0x9000, scoped, tag = 'internal scratch']
  %s0 = inlined_call_operand.vmem [shape: f32[2,8,32], index: 0, kind: input, shape index: {}]
  %s1 = inlined_call_operand.vmem [shape: f32[2,8,32], index: 1, kind: input, shape index: {}]
  %s2 = inlined_call_operand.vmem [shape: f32[2,8,32], index: 2, kind: input, shape index: {}]
  %s3 = inlined_call_operand.vmem [shape: f32[2,8,8], index: 3, kind: input, shape index: {}]
  %s4 = inlined_call_operand.vmem [shape: f32[2,8,32], index: 4, kind: output, shape index: {}]
  %s5 = sld [smem:[#allocation0]]
  $region49: #{encoder_decoder_forward.42} parent=0
    _
  %s7 = ssub.s32 1, %s5
  %s8 = scalar_select 0, %s7, %s5
  loop: start=0, step=1, limit=4
  $region2: #{encoder_decoder_forward.42} parent=0 // loop_pre_header
    _
  $region3: #{encoder_decoder_forward.42} parent=0 // loop_header
    %s10 = sphi 0, %s14
    %p11 = scmp.ge.s32.totalorder %s10, 4
    %s20 = sphi 0, %s22
    %s23 = sphi 0, %s20
    %s24 = sphi 0, %s23
    %s40 = sphi 0, %s24
    %s46 = sphi 0, %s48
    %s49 = sphi 0, %s46
    %s50 = sphi 0, %s49
    %s66 = sphi 0, %s50
    %s72 = sphi 0, %s74
    %s75 = sphi 0, %s72
    %s76 = sphi 0, %s75
    %s92 = sphi 0, %s76
    %s98 = sphi 0, %s100
    %s101 = sphi 0, %s98
    %s102 = sphi 0, %s101
    %s118 = sphi 0, %s102
    %s124 = sphi 0, %s126
    %s127 = sphi 0, %s124
    %s128 = sphi 0, %s127
    %s144 = sphi 0, %s128
  $region4: #{encoder_decoder_forward.42} parent=0 // loop_header_branch
    %13 = sbr.rel (%p11) target = $region8
  $region5: #{encoder_decoder_forward.42} parent=0 // loop_body
    %s15 = ssub.s32 %s10, 1
    %s16 = ssub.s32 %s10, 2
    %s17 = sadd.s32 %s10, 1
    %s18 = ssub.s32 %s10, %s17
    %p19 = scmp.eq.s32.totalorder %s18, 0
    %s21 = sadd.s32 %s20, 1
    %s22 = scalar_select %p19, %s20, %s21
    %p25 = pneg %p19
    %p26 = scmp.eq.s32.totalorder %s10, 1
    %p27 = por %p25, %p26
    %p28 = scmp.ne.s32.totalorder %s20, %s23
    %p29 = scmp.eq.s32.totalorder %s10, 0
    %p30 = por %p28, %p29
    %p31 = scmp.ne.s32.totalorder %s20, %s23
    %p32 = scmp.eq.s32.totalorder %s15, 1
    %p33 = por %p31, %p32
    %p34 = scmp.ne.s32.totalorder %s23, %s24
    %p35 = scmp.eq.s32.totalorder %s15, 0
    %p36 = por %p34, %p35
    %p37 = scmp.ne.s32.totalorder %s23, %s24
    %p38 = scmp.eq.s32.totalorder %s16, 1
    %p39 = por %p37, %p38
    %p41 = scmp.ne.s32.totalorder %s24, %s40
    %p42 = scmp.eq.s32.totalorder %s16, 0
    %p43 = por %p41, %p42
    %s44 = ssub.s32 %s10, %s17
    %p45 = scmp.eq.s32.totalorder %s44, 0
    %s47 = sadd.s32 %s46, 1
    %s48 = scalar_select %p45, %s46, %s47
    %p51 = pneg %p45
    %p52 = scmp.eq.s32.totalorder %s10, 1
    %p53 = por %p51, %p52
    %p54 = scmp.ne.s32.totalorder %s46, %s49
    %p55 = scmp.eq.s32.totalorder %s10, 0
    %p56 = por %p54, %p55
    %p57 = scmp.ne.s32.totalorder %s46, %s49
    %p58 = scmp.eq.s32.totalorder %s15, 1
    %p59 = por %p57, %p58
    %p60 = scmp.ne.s32.totalorder %s49, %s50
    %p61 = scmp.eq.s32.totalorder %s15, 0
    %p62 = por %p60, %p61
    %p63 = scmp.ne.s32.totalorder %s49, %s50
    %p64 = scmp.eq.s32.totalorder %s16, 1
    %p65 = por %p63, %p64
    %p67 = scmp.ne.s32.totalorder %s50, %s66
    %p68 = scmp.eq.s32.totalorder %s16, 0
    %p69 = por %p67, %p68
    %s70 = ssub.s32 %s10, %s17
    %p71 = scmp.eq.s32.totalorder %s70, 0
    %s73 = sadd.s32 %s72, 1
    %s74 = scalar_select %p71, %s72, %s73
    %p77 = pneg %p71
    %p78 = scmp.eq.s32.totalorder %s10, 1
    %p79 = por %p77, %p78
    %p80 = scmp.ne.s32.totalorder %s72, %s75
    %p81 = scmp.eq.s32.totalorder %s10, 0
    %p82 = por %p80, %p81
    %p83 = scmp.ne.s32.totalorder %s72, %s75
    %p84 = scmp.eq.s32.totalorder %s15, 1
    %p85 = por %p83, %p84
    %p86 = scmp.ne.s32.totalorder %s75, %s76
    %p87 = scmp.eq.s32.totalorder %s15, 0
    %p88 = por %p86, %p87
    %p89 = scmp.ne.s32.totalorder %s75, %s76
    %p90 = scmp.eq.s32.totalorder %s16, 1
    %p91 = por %p89, %p90
    %p93 = scmp.ne.s32.totalorder %s76, %s92
    %p94 = scmp.eq.s32.totalorder %s16, 0
    %p95 = por %p93, %p94
    %s96 = ssub.s32 %s10, %s17
    %p97 = scmp.eq.s32.totalorder %s96, 0
    %s99 = sadd.s32 %s98, 1
    %s100 = scalar_select %p97, %s98, %s99
    %p103 = pneg %p97
    %p104 = scmp.eq.s32.totalorder %s10, 1
    %p105 = por %p103, %p104
    %p106 = scmp.ne.s32.totalorder %s98, %s101
    %p107 = scmp.eq.s32.totalorder %s10, 0
    %p108 = por %p106, %p107
    %p109 = scmp.ne.s32.totalorder %s98, %s101
    %p110 = scmp.eq.s32.totalorder %s15, 1
    %p111 = por %p109, %p110
    %p112 = scmp.ne.s32.totalorder %s101, %s102
    %p113 = scmp.eq.s32.totalorder %s15, 0
    %p114 = por %p112, %p113
    %p115 = scmp.ne.s32.totalorder %s101, %s102
    %p116 = scmp.eq.s32.totalorder %s16, 1
    %p117 = por %p115, %p116
    %p119 = scmp.ne.s32.totalorder %s102, %s118
    %p120 = scmp.eq.s32.totalorder %s16, 0
    %p121 = por %p119, %p120
    %s122 = ssub.s32 %s10, %s17
    %p123 = scmp.eq.s32.totalorder %s122, 0
    %s125 = sadd.s32 %s124, 1
    %s126 = scalar_select %p123, %s124, %s125
    %p129 = pneg %p123
    %p130 = scmp.eq.s32.totalorder %s10, 1
    %p131 = por %p129, %p130
    %p132 = scmp.ne.s32.totalorder %s124, %s127
    %p133 = scmp.eq.s32.totalorder %s10, 0
    %p134 = por %p132, %p133
    %p135 = scmp.ne.s32.totalorder %s124, %s127
    %p136 = scmp.eq.s32.totalorder %s15, 1
    %p137 = por %p135, %p136
    %p138 = scmp.ne.s32.totalorder %s127, %s128
    %p139 = scmp.eq.s32.totalorder %s15, 0
    %p140 = por %p138, %p139
    %p141 = scmp.ne.s32.totalorder %s127, %s128
    %p142 = scmp.eq.s32.totalorder %s16, 1
    %p143 = por %p141, %p142
    %p145 = scmp.ne.s32.totalorder %s128, %s144
    %p146 = scmp.eq.s32.totalorder %s16, 0
    %p147 = por %p145, %p146
    %p148 = scmp.le.s32.totalorder 1, %s10
    %p149 = scmp.lt.s32.totalorder %s10, 3
    %p150 = pnand %p148, %p149
    %p151 = pneg %p150
    // Predicated region
    $region9: #{encoder_decoder_forward.42} parent=5 // pred_check
      _
    $region10: #{encoder_decoder_forward.42} parent=5 // pred_check_branch
      %153 = sbr.rel (%p150) target = $region12
    $region11: #{encoder_decoder_forward.42} parent=5 // pred_region
      %s154 = ssub.s32 %s10, 1
    $region12: #{encoder_decoder_forward.42} parent=5 // pred_fallthru
      _
    %p155 = scmp.lt.s32.totalorder %s10, 2
    // Predicated region
    $region13: #{encoder_decoder_forward.42} parent=5 // pred_check
      %p156 = pneg %p155
    $region14: #{encoder_decoder_forward.42} parent=5 // pred_check_branch
      %158 = sbr.rel (%p156) target = $region16
    $region15: #{encoder_decoder_forward.42} parent=5 // pred_region
      // Predicated region
      $region17: #{encoder_decoder_forward.42} parent=15 // pred_check
        %p159 = pneg %p30
      $region18: #{encoder_decoder_forward.42} parent=15 // pred_check_branch
        %161 = sbr.rel (%p159) target = $region20
      $region19: #{encoder_decoder_forward.42} parent=15 // pred_region
        %p162 = scmp.lt.s32.totalorder %s10, 1
        %s163 = scalar_select %p162, %s10, 1
        %s164 = smul.addr %s163, 8
        %s165 = scalar_lea.vmem %s0, %s164
      $region20: #{encoder_decoder_forward.42} parent=15 // pred_fallthru
        _
      // Predicated region
      $region21: #{encoder_decoder_forward.42} parent=15 // pred_check
        %p166 = pneg %p56
      $region22: #{encoder_decoder_forward.42} parent=15 // pred_check_branch
        %168 = sbr.rel (%p166) target = $region24
      $region23: #{encoder_decoder_forward.42} parent=15 // pred_region
        %p169 = scmp.lt.s32.totalorder %s10, 1
        %s170 = scalar_select %p169, %s10, 1
        %s171 = smul.addr %s170, 8
        %s172 = scalar_lea.vmem %s1, %s171
      $region24: #{encoder_decoder_forward.42} parent=15 // pred_fallthru
        _
      // Predicated region
      $region25: #{encoder_decoder_forward.42} parent=15 // pred_check
        %p173 = pneg %p82
      $region26: #{encoder_decoder_forward.42} parent=15 // pred_check_branch
        %175 = sbr.rel (%p173) target = $region28
      $region27: #{encoder_decoder_forward.42} parent=15 // pred_region
        %p176 = scmp.lt.s32.totalorder %s10, 1
        %s177 = scalar_select %p176, %s10, 1
        %s178 = smul.addr %s177, 8
        %s179 = scalar_lea.vmem %s2, %s178
      $region28: #{encoder_decoder_forward.42} parent=15 // pred_fallthru
        _
      // Predicated region
      $region29: #{encoder_decoder_forward.42} parent=15 // pred_check
        %p180 = pneg %p108
      $region30: #{encoder_decoder_forward.42} parent=15 // pred_check_branch
        %182 = sbr.rel (%p180) target = $region32
      $region31: #{encoder_decoder_forward.42} parent=15 // pred_region
        %p183 = scmp.lt.s32.totalorder %s10, 1
        %s184 = scalar_select %p183, %s10, 1
        %s185 = smul.addr %s184, 8
        %s186 = scalar_lea.vmem %s3, %s185
      $region32: #{encoder_decoder_forward.42} parent=15 // pred_fallthru
        _
    $region16: #{encoder_decoder_forward.42} parent=5 // pred_fallthru
      _
    %p187 = scmp.le.s32.totalorder 1, %s10
    %p188 = scmp.lt.s32.totalorder %s10, 3
    %p189 = pnand %p187, %p188
    %p190 = pneg %p189
    // Predicated region
    $region33: #{encoder_decoder_forward.42} parent=5 // pred_check
      _
    $region34: #{encoder_decoder_forward.42} parent=5 // pred_check_branch
      %192 = sbr.rel (%p189) target = $region36
    $region35: #{encoder_decoder_forward.42} parent=5 // pred_region
      %s193 = ssub.s32 %s10, 1
      %p194 = scmp.lt.s32.totalorder %s15, 1
      %s195 = scalar_select %p194, %s15, 1
      %s196 = smul.addr %s195, 8
      %s197 = scalar_lea.vmem %s0, %s196
      %p198 = pneg %p36
      %p199 = pneg %p33
      %p200 = scmp.lt.s32.totalorder %s15, 1
      %s201 = scalar_select %p200, %s15, 1
      %s202 = smul.addr %s201, 8
      %s203 = scalar_lea.vmem %s1, %s202
      %p204 = pneg %p62
      %p205 = pneg %p59
      %p206 = scmp.lt.s32.totalorder %s15, 1
      %s207 = scalar_select %p206, %s15, 1
      %s208 = smul.addr %s207, 8
      %s209 = scalar_lea.vmem %s2, %s208
      %p210 = pneg %p88
      %p211 = pneg %p85
      %p212 = scmp.lt.s32.totalorder %s15, 1
      %s213 = scalar_select %p212, %s15, 1
      %s214 = smul.addr %s213, 8
      %s215 = scalar_lea.vmem %s3, %s214
      %p216 = pneg %p114
      %p217 = pneg %p111
      %p218 = pneg %p140
      %p219 = pneg %p137
      %p220 = scmp.lt.s32.totalorder %s15, 1
      %s221 = scalar_select %p220, %s15, 1
      %s222 = smul.addr %s221, 8
      %s223 = scalar_lea.vmem %s4, %s222
      %p224 = scmp.lt.s32.totalorder %s15, 1
      %s225 = scalar_select %p224, %s15, 1
      %s226 = smul.addr %s225, 8
      %s227 = scalar_lea.vmem %s0, %s226
      %p228 = scmp.lt.s32.totalorder %s15, 1
      %s229 = scalar_select %p228, %s15, 1
      %s230 = smul.addr %s229, 8
      %s231 = scalar_lea.vmem %s1, %s230
      %p232 = scmp.lt.s32.totalorder %s15, 1
      %s233 = scalar_select %p232, %s15, 1
      %s234 = smul.addr %s233, 8
      %s235 = scalar_lea.vmem %s2, %s234
      %p236 = scmp.lt.s32.totalorder %s15, 1
      %s237 = scalar_select %p236, %s15, 1
      %s238 = smul.addr %s237, 8
      %s239 = scalar_lea.vmem %s3, %s238
      %p240 = scmp.lt.s32.totalorder %s15, 1
      %s241 = scalar_select %p240, %s15, 1
      %s242 = smul.addr %s241, 8
      %s243 = scalar_lea.vmem %s4, %s242
      %v245 = vld [vmem:[%s227] sm:$0xff]
      %v246 = vpack.c.bf16 %v245, %v245
      %v247 = vld [vmem:[%s231] sm:$0xff]
      %v248 = vpack.c.bf16 %v247, %v247
      %v249 = vld [vmem:[%s235] sm:$0xff]
      %v250 = vpack.c.bf16 %v249, %v249
      %v251 = vld [vmem:[%s239] sm:$0xff]
      %vm252 = vcmask 64512
      %v254 = vsel %vm252, %v246, 0
      %v257 = vsel %vm252, %v248, 0
      %259 = vmatpush.bf16.xpose.msra.mxu0 0
      %260 = vmatpush.bf16.xpose.msra.mxu0 0
      %261 = vmatpush.bf16.xpose.msra.mxu0 0
      %262 = vmatpush.bf16.xpose.msra.mxu0 0
      %263 = vmatpush.bf16.xpose.msra.mxu0 0
      %264 = vmatpush.bf16.xpose.msra.mxu0 0
      %265 = vmatpush.bf16.xpose.msra.mxu0 0
      %266 = vmatpush.bf16.xpose.msra.mxu0 %v257
      %267 = vmatmul.bf16.gmra.mxu0 %v254
      %v268 = vpop.f32.mrf.mxu0
      %v269 = vadd.f32 0.0, %v268
      %v270 = vpop.f32.mrf.mxu0
      %271 = vdwg.mxu0
      %v272 = vmul.f32 %v269, 0.35355338
      %vm273 = vcmp.lt.f32.partialorder %v251, 0.5
      %v274 = vsel %vm273, -1e+09, %v272
      %v275 = vsel %vm252, %v274, -inf
      %276 = vmax.xlane.f32.xlu0 %v275
      %v277 = vpop.xlane.xlu0 %276
      %v278 = vsub.f32 %v274, %v277
      %v279 = vmul.f32 %v278, 1.442695
      %v280 = vpow.pop %v279
      %v281 = vsel %vm252, %v280, 0.0
      %282 = vadd.xlane.f32.xlu0 %v281
      %v283 = vpop.xlane.xlu0 %282
      %v284 = vrcp.pop %v283
      %v285 = vmul.f32 %v280, %v284
      %v286 = vpack.c.bf16 %v285, %v285
      %v288 = vsel %vm252, %v286, 0
      %vm290 = vcmask 1043456
      %v292 = vsel %vm290, %v250, 0
      %294 = vmatpush.bf16.msra.mxu0 0
      %295 = vmatpush.bf16.msra.mxu0 0
      %296 = vmatpush.bf16.msra.mxu0 0
      %297 = vmatpush.bf16.msra.mxu0 0
      %298 = vmatpush.bf16.msra.mxu0 0
      %299 = vmatpush.bf16.msra.mxu0 0
      %300 = vmatpush.bf16.msra.mxu0 0
      %301 = vmatpush.bf16.msra.mxu0 %v292
      %302 = vmatmul.bf16.gmra.mxu0 %v288
      %v303 = vpop.f32.mrf.mxu0
      %v304 = vadd.f32 0.0, %v303
      %v305 = vpop.f32.mrf.mxu0
      %306 = vdwg.mxu0
      %v308 = vunpack.c.l.b16 %v246
      %v309 = vpack.c.b16 %v308, %v308
      %310 = vrot.lane.b32.xlu0 %v309, 120
      %v311 = vpop.permute.xlu0 %310
      %v313 = vunpack.c.l.b16 %v248
      %v314 = vpack.c.b16 %v313, %v313
      %315 = vrot.lane.b32.xlu0 %v314, 120
      %v316 = vpop.permute.xlu0 %315
      %v318 = vsel %vm252, %v311, 0
      %v321 = vsel %vm252, %v316, 0
      %323 = vmatpush.bf16.xpose.msra.mxu0 0
      %324 = vmatpush.bf16.xpose.msra.mxu0 0
      %325 = vmatpush.bf16.xpose.msra.mxu0 0
      %326 = vmatpush.bf16.xpose.msra.mxu0 0
      %327 = vmatpush.bf16.xpose.msra.mxu0 0
      %328 = vmatpush.bf16.xpose.msra.mxu0 0
      %329 = vmatpush.bf16.xpose.msra.mxu0 0
      %330 = vmatpush.bf16.xpose.msra.mxu0 %v321
      %331 = vmatmul.bf16.gmra.mxu0 %v318
      %v332 = vpop.f32.mrf.mxu0
      %v333 = vadd.f32 0.0, %v332
      %v334 = vpop.f32.mrf.mxu0
      %335 = vdwg.mxu0
      %v336 = vmul.f32 %v333, 0.35355338
      %v337 = vsel %vm273, -1e+09, %v336
      %v338 = vsel %vm252, %v337, -inf
      %339 = vmax.xlane.f32.xlu0 %v338
      %v340 = vpop.xlane.xlu0 %339
      %v341 = vsub.f32 %v337, %v340
      %v342 = vmul.f32 %v341, 1.442695
      %v343 = vpow.pop %v342
      %v344 = vsel %vm252, %v343, 0.0
      %345 = vadd.xlane.f32.xlu0 %v344
      %v346 = vpop.xlane.xlu0 %345
      %v347 = vrcp.pop %v346
      %v348 = vmul.f32 %v343, %v347
      %v349 = vpack.c.bf16 %v348, %v348
      %v351 = vunpack.c.l.b16 %v250
      %v352 = vpack.c.b16 %v351, %v351
      %353 = vrot.lane.b32.xlu0 %v352, 120
      %v354 = vpop.permute.xlu0 %353
      %v356 = vsel %vm252, %v349, 0
      %v359 = vsel %vm290, %v354, 0
      %361 = vmatpush.bf16.msra.mxu0 0
      %362 = vmatpush.bf16.msra.mxu0 0
      %363 = vmatpush.bf16.msra.mxu0 0
      %364 = vmatpush.bf16.msra.mxu0 0
      %365 = vmatpush.bf16.msra.mxu0 0
      %366 = vmatpush.bf16.msra.mxu0 0
      %367 = vmatpush.bf16.msra.mxu0 0
      %368 = vmatpush.bf16.msra.mxu0 %v359
      %369 = vmatmul.bf16.gmra.mxu0 %v356
      %v370 = vpop.f32.mrf.mxu0
      %v371 = vadd.f32 0.0, %v370
      %v372 = vpop.f32.mrf.mxu0
      %373 = vdwg.mxu0
      %374 = vrot.lane.b32.xlu0 %v309, 112
      %v375 = vpop.permute.xlu0 %374
      %376 = vrot.lane.b32.xlu0 %v314, 112
      %v377 = vpop.permute.xlu0 %376
      %v379 = vsel %vm252, %v375, 0
      %v382 = vsel %vm252, %v377, 0
      %384 = vmatpush.bf16.xpose.msra.mxu0 0
      %385 = vmatpush.bf16.xpose.msra.mxu0 0
      %386 = vmatpush.bf16.xpose.msra.mxu0 0
      %387 = vmatpush.bf16.xpose.msra.mxu0 0
      %388 = vmatpush.bf16.xpose.msra.mxu0 0
      %389 = vmatpush.bf16.xpose.msra.mxu0 0
      %390 = vmatpush.bf16.xpose.msra.mxu0 0
      %391 = vmatpush.bf16.xpose.msra.mxu0 %v382
      %392 = vmatmul.bf16.gmra.mxu0 %v379
      %v393 = vpop.f32.mrf.mxu0
      %v394 = vadd.f32 0.0, %v393
      %v395 = vpop.f32.mrf.mxu0
      %396 = vdwg.mxu0
      %v397 = vmul.f32 %v394, 0.35355338
      %v398 = vsel %vm273, -1e+09, %v397
      %v399 = vsel %vm252, %v398, -inf
      %400 = vmax.xlane.f32.xlu0 %v399
      %v401 = vpop.xlane.xlu0 %400
      %v402 = vsub.f32 %v398, %v401
      %v403 = vmul.f32 %v402, 1.442695
      %v404 = vpow.pop %v403
      %v405 = vsel %vm252, %v404, 0.0
      %406 = vadd.xlane.f32.xlu0 %v405
      %v407 = vpop.xlane.xlu0 %406
      %v408 = vrcp.pop %v407
      %v409 = vmul.f32 %v404, %v408
      %v410 = vpack.c.bf16 %v409, %v409
      %411 = vrot.lane.b32.xlu0 %v352, 112
      %v412 = vpop.permute.xlu0 %411
      %v414 = vsel %vm252, %v410, 0
      %v417 = vsel %vm290, %v412, 0
      %419 = vmatpush.bf16.msra.mxu0 0
      %420 = vmatpush.bf16.msra.mxu0 0
      %421 = vmatpush.bf16.msra.mxu0 0
      %422 = vmatpush.bf16.msra.mxu0 0
      %423 = vmatpush.bf16.msra.mxu0 0
      %424 = vmatpush.bf16.msra.mxu0 0
      %425 = vmatpush.bf16.msra.mxu0 0
      %426 = vmatpush.bf16.msra.mxu0 %v417
      %427 = vmatmul.bf16.gmra.mxu0 %v414
      %v428 = vpop.f32.mrf.mxu0
      %v429 = vadd.f32 0.0, %v428
      %v430 = vpop.f32.mrf.mxu0
      %431 = vdwg.mxu0
      %432 = vrot.lane.b32.xlu0 %v309, 104
      %v433 = vpop.permute.xlu0 %432
      %434 = vrot.lane.b32.xlu0 %v314, 104
      %v435 = vpop.permute.xlu0 %434
      %v437 = vsel %vm252, %v433, 0
      %v440 = vsel %vm252, %v435, 0
      %442 = vmatpush.bf16.xpose.msra.mxu0 0
      %443 = vmatpush.bf16.xpose.msra.mxu0 0
      %444 = vmatpush.bf16.xpose.msra.mxu0 0
      %445 = vmatpush.bf16.xpose.msra.mxu0 0
      %446 = vmatpush.bf16.xpose.msra.mxu0 0
      %447 = vmatpush.bf16.xpose.msra.mxu0 0
      %448 = vmatpush.bf16.xpose.msra.mxu0 0
      %449 = vmatpush.bf16.xpose.msra.mxu0 %v440
      %450 = vmatmul.bf16.gmra.mxu0 %v437
      %v451 = vpop.f32.mrf.mxu0
      %v452 = vadd.f32 0.0, %v451
      %v453 = vpop.f32.mrf.mxu0
      %454 = vdwg.mxu0
      %v455 = vmul.f32 %v452, 0.35355338
      %v456 = vsel %vm273, -1e+09, %v455
      %v457 = vsel %vm252, %v456, -inf
      %458 = vmax.xlane.f32.xlu0 %v457
      %v459 = vpop.xlane.xlu0 %458
      %v460 = vsub.f32 %v456, %v459
      %v461 = vmul.f32 %v460, 1.442695
      %v462 = vpow.pop %v461
      %v463 = vsel %vm252, %v462, 0.0
      %464 = vadd.xlane.f32.xlu0 %v463
      %v465 = vpop.xlane.xlu0 %464
      %v466 = vrcp.pop %v465
      %v467 = vmul.f32 %v462, %v466
      %v468 = vpack.c.bf16 %v467, %v467
      %469 = vrot.lane.b32.xlu0 %v352, 104
      %v470 = vpop.permute.xlu0 %469
      %v472 = vsel %vm252, %v468, 0
      %v475 = vsel %vm290, %v470, 0
      %477 = vmatpush.bf16.msra.mxu0 0
      %478 = vmatpush.bf16.msra.mxu0 0
      %479 = vmatpush.bf16.msra.mxu0 0
      %480 = vmatpush.bf16.msra.mxu0 0
      %481 = vmatpush.bf16.msra.mxu0 0
      %482 = vmatpush.bf16.msra.mxu0 0
      %483 = vmatpush.bf16.msra.mxu0 0
      %484 = vmatpush.bf16.msra.mxu0 %v475
      %485 = vmatmul.bf16.gmra.mxu0 %v472
      %v486 = vpop.f32.mrf.mxu0
      %v487 = vadd.f32 0.0, %v486
      %v488 = vpop.f32.mrf.mxu0
      %489 = vdwg.mxu0
      %491 = vrot.lane.b32.xlu0 %v371, 8
      %v492 = vpop.permute.xlu0 %491
      %495 = vrot.lane.b32.xlu0 %v429, 16
      %v496 = vpop.permute.xlu0 %495
      %499 = vrot.lane.b32.xlu0 %v487, 24
      %v500 = vpop.permute.xlu0 %499
      %v502 = vsel %vm252, %v304, %v492
      %vm503 = vcmask 130048
      %v504 = vsel %vm503, %v502, %v496
      %vm505 = vcmask 195584
      %v506 = vsel %vm505, %v504, %v500
      %vm507 = vcmask 261120
      %508 = vst.msk [vmem:[%s243] sm:$0xff] %vm507, %v506
      %p509 = scmp.lt.s32.totalorder %s15, 1
      %s510 = scalar_select %p509, %s15, 1
      %s511 = smul.addr %s510, 8
      %s512 = scalar_lea.vmem %s4, %s511
      // Predicated region
      $region37: #{encoder_decoder_forward.42} parent=35 // pred_check
        %p513 = pneg %p137
      $region38: #{encoder_decoder_forward.42} parent=35 // pred_check_branch
        %515 = sbr.rel (%p513) target = $region40
      $region39: #{encoder_decoder_forward.42} parent=35 // pred_region
        _
      $region40: #{encoder_decoder_forward.42} parent=35 // pred_fallthru
        _
    $region36: #{encoder_decoder_forward.42} parent=5 // pred_fallthru
      _
    %p516 = scmp.le.s32.totalorder 2, %s10
    // Predicated region
    $region41: #{encoder_decoder_forward.42} parent=5 // pred_check
      %p517 = pneg %p516
    $region42: #{encoder_decoder_forward.42} parent=5 // pred_check_branch
      %519 = sbr.rel (%p517) target = $region44
    $region43: #{encoder_decoder_forward.42} parent=5 // pred_region
      %s520 = ssub.s32 %s10, 2
      // Predicated region
      $region45: #{encoder_decoder_forward.42} parent=43 // pred_check
        %p521 = pneg %p143
      $region46: #{encoder_decoder_forward.42} parent=43 // pred_check_branch
        %523 = sbr.rel (%p521) target = $region48
      $region47: #{encoder_decoder_forward.42} parent=43 // pred_region
        %p524 = scmp.lt.s32.totalorder %s16, 1
        %s525 = scalar_select %p524, %s16, 1
        %s526 = smul.addr %s525, 8
        %s527 = scalar_lea.vmem %s4, %s526
      $region48: #{encoder_decoder_forward.42} parent=43 // pred_fallthru
        _
    $region44: #{encoder_decoder_forward.42} parent=5 // pred_fallthru
      _
  $region6: #{encoder_decoder_forward.42} parent=0 // loop_footer
    %s14 = sadd.s32 1, %s10
  $region7: #{encoder_decoder_forward.42} parent=0 // loop_footer_branch
    %9 = sbr.rel target = $region3
  $region8: #{encoder_decoder_forward.42} parent=0 // loop_exit
    _

// kernel: encoder_decoder_forward.33
$region0: #{encoder_decoder_forward.33}
  #allocation0 [shape = 'u32[]', space=smem, size = 0x4, offset = 0x4, fixed_abs, tag = 'smem constant byte address 0x4 - core index']
  #allocation1 [shape = 'u32[72,128]{1,0:T(1,128)}', space=vmem, size = 0x9000, scoped, tag = 'internal scratch']
  %s0 = inlined_call_operand.vmem [shape: f32[16,32], index: 0, kind: input, shape index: {}]
  %s1 = inlined_call_operand.vmem [shape: bf16[32,64], index: 1, kind: input, shape index: {}]
  %s2 = inlined_call_operand.vmem [shape: f32[1,64], index: 2, kind: input, shape index: {}]
  %s3 = inlined_call_operand.vmem [shape: f32[1,32], index: 3, kind: input, shape index: {}]
  %s4 = inlined_call_operand.vmem [shape: f32[1,32], index: 4, kind: input, shape index: {}]
  %s5 = inlined_call_operand.vmem [shape: f32[16,64], index: 5, kind: output, shape index: {}]
  %s6 = sld [smem:[#allocation0]]
  $region53: #{encoder_decoder_forward.33} parent=0
    _
  %s8 = ssub.s32 1, %s6
  %s9 = scalar_select 0, %s8, %s6
  loop: start=0, step=1, limit=4
  $region2: #{encoder_decoder_forward.33} parent=0 // loop_pre_header
    _
  $region3: #{encoder_decoder_forward.33} parent=0 // loop_header
    %s11 = sphi 0, %s15
    %p12 = scmp.ge.s32.totalorder %s11, 4
    %s18 = sphi 0, %s30
    %s19 = sphi 0, %s26
    %s20 = sphi 0, %s18
    %s21 = sphi 0, %s19
    %s22 = sphi 0, %s20
    %s23 = sphi 0, %s21
    %s33 = sphi 0, %s35
    %s36 = sphi 0, %s33
    %s37 = sphi 0, %s36
    %s53 = sphi 0, %s37
    %s59 = sphi 0, %s61
    %s62 = sphi 0, %s59
    %s63 = sphi 0, %s62
    %s79 = sphi 0, %s63
    %s85 = sphi 0, %s87
    %s88 = sphi 0, %s85
    %s89 = sphi 0, %s88
    %s105 = sphi 0, %s89
    %s109 = sphi 0, %s109
    %s111 = sphi 0, %s109
    %s112 = sphi 0, %s111
    %s126 = sphi 0, %s112
    %s130 = sphi 0, %s130
    %s132 = sphi 0, %s130
    %s133 = sphi 0, %s132
    %s147 = sphi 0, %s133
    %s155 = sphi 0, %s157
    %s158 = sphi 0, %s155
    %s159 = sphi 0, %s158
    %s175 = sphi 0, %s159
  $region4: #{encoder_decoder_forward.33} parent=0 // loop_header_branch
    %14 = sbr.rel (%p12) target = $region8
  $region5: #{encoder_decoder_forward.33} parent=0 // loop_body
    %s16 = ssub.s32 %s11, 1
    %s17 = ssub.s32 %s11, 2
    %s24 = sadd.s32 1, %s19
    %p25 = scmp.ge.s32.totalorder %s24, 1
    %s26 = scalar_select %p25, 0, %s24
    %s27 = sadd.s32 1, %s18
    %s28 = scalar_select %p25, %s27, %s18
    %p29 = scmp.ge.s32.totalorder %s28, 2
    %s30 = scalar_select %p29, 0, %s28
    %s31 = ssub.s32 %s18, %s30
    %p32 = scmp.eq.s32.totalorder %s31, 0
    %s34 = sadd.s32 %s33, 1
    %s35 = scalar_select %p32, %s33, %s34
    %p38 = pneg %p32
    %p39 = scmp.eq.s32.totalorder %s11, 1
    %p40 = por %p38, %p39
    %p41 = scmp.ne.s32.totalorder %s33, %s36
    %p42 = scmp.eq.s32.totalorder %s11, 0
    %p43 = por %p41, %p42
    %p44 = scmp.ne.s32.totalorder %s33, %s36
    %p45 = scmp.eq.s32.totalorder %s16, 1
    %p46 = por %p44, %p45
    %p47 = scmp.ne.s32.totalorder %s36, %s37
    %p48 = scmp.eq.s32.totalorder %s16, 0
    %p49 = por %p47, %p48
    %p50 = scmp.ne.s32.totalorder %s36, %s37
    %p51 = scmp.eq.s32.totalorder %s17, 1
    %p52 = por %p50, %p51
    %p54 = scmp.ne.s32.totalorder %s37, %s53
    %p55 = scmp.eq.s32.totalorder %s17, 0
    %p56 = por %p54, %p55
    %s57 = ssub.s32 %s19, %s26
    %p58 = scmp.eq.s32.totalorder %s57, 0
    %s60 = sadd.s32 %s59, 1
    %s61 = scalar_select %p58, %s59, %s60
    %p64 = pneg %p58
    %p65 = scmp.eq.s32.totalorder %s11, 1
    %p66 = por %p64, %p65
    %p67 = scmp.ne.s32.totalorder %s59, %s62
    %p68 = scmp.eq.s32.totalorder %s11, 0
    %p69 = por %p67, %p68
    %p70 = scmp.ne.s32.totalorder %s59, %s62
    %p71 = scmp.eq.s32.totalorder %s16, 1
    %p72 = por %p70, %p71
    %p73 = scmp.ne.s32.totalorder %s62, %s63
    %p74 = scmp.eq.s32.totalorder %s16, 0
    %p75 = por %p73, %p74
    %p76 = scmp.ne.s32.totalorder %s62, %s63
    %p77 = scmp.eq.s32.totalorder %s17, 1
    %p78 = por %p76, %p77
    %p80 = scmp.ne.s32.totalorder %s63, %s79
    %p81 = scmp.eq.s32.totalorder %s17, 0
    %p82 = por %p80, %p81
    %s83 = ssub.s32 %s19, %s26
    %p84 = scmp.eq.s32.totalorder %s83, 0
    %s86 = sadd.s32 %s85, 1
    %s87 = scalar_select %p84, %s85, %s86
    %p90 = pneg %p84
    %p91 = scmp.eq.s32.totalorder %s11, 1
    %p92 = por %p90, %p91
    %p93 = scmp.ne.s32.totalorder %s85, %s88
    %p94 = scmp.eq.s32.totalorder %s11, 0
    %p95 = por %p93, %p94
    %p96 = scmp.ne.s32.totalorder %s85, %s88
    %p97 = scmp.eq.s32.totalorder %s16, 1
    %p98 = por %p96, %p97
    %p99 = scmp.ne.s32.totalorder %s88, %s89
    %p100 = scmp.eq.s32.totalorder %s16, 0
    %p101 = por %p99, %p100
    %p102 = scmp.ne.s32.totalorder %s88, %s89
    %p103 = scmp.eq.s32.totalorder %s17, 1
    %p104 = por %p102, %p103
    %p106 = scmp.ne.s32.totalorder %s89, %s105
    %p107 = scmp.eq.s32.totalorder %s17, 0
    %p108 = por %p106, %p107
    %s110 = sadd.s32 %s109, 1
    %p113 = scmp.eq.s32.totalorder %s11, 1
    %p114 = scmp.ne.s32.totalorder %s109, %s111
    %p115 = scmp.eq.s32.totalorder %s11, 0
    %p116 = por %p114, %p115
    %p117 = scmp.ne.s32.totalorder %s109, %s111
    %p118 = scmp.eq.s32.totalorder %s16, 1
    %p119 = por %p117, %p118
    %p120 = scmp.ne.s32.totalorder %s111, %s112
    %p121 = scmp.eq.s32.totalorder %s16, 0
    %p122 = por %p120, %p121
    %p123 = scmp.ne.s32.totalorder %s111, %s112
    %p124 = scmp.eq.s32.totalorder %s17, 1
    %p125 = por %p123, %p124
    %p127 = scmp.ne.s32.totalorder %s112, %s126
    %p128 = scmp.eq.s32.totalorder %s17, 0
    %p129 = por %p127, %p128
    %s131 = sadd.s32 %s130, 1
    %p134 = scmp.eq.s32.totalorder %s11, 1
    %p135 = scmp.ne.s32.totalorder %s130, %s132
    %p136 = scmp.eq.s32.totalorder %s11, 0
    %p137 = por %p135, %p136
    %p138 = scmp.ne.s32.totalorder %s130, %s132
    %p139 = scmp.eq.s32.totalorder %s16, 1
    %p140 = por %p138, %p139
    %p141 = scmp.ne.s32.totalorder %s132, %s133
    %p142 = scmp.eq.s32.totalorder %s16, 0
    %p143 = por %p141, %p142
    %p144 = scmp.ne.s32.totalorder %s132, %s133
    %p145 = scmp.eq.s32.totalorder %s17, 1
    %p146 = por %p144, %p145
    %p148 = scmp.ne.s32.totalorder %s133, %s147
    %p149 = scmp.eq.s32.totalorder %s17, 0
    %p150 = por %p148, %p149
    %s151 = ssub.s32 %s18, %s30
    %s152 = ssub.s32 %s19, %s26
    %s153 = sor.u32 %s151, %s152
    %p154 = scmp.eq.s32.totalorder %s153, 0
    %s156 = sadd.s32 %s155, 1
    %s157 = scalar_select %p154, %s155, %s156
    %p160 = pneg %p154
    %p161 = scmp.eq.s32.totalorder %s11, 1
    %p162 = por %p160, %p161
    %p163 = scmp.ne.s32.totalorder %s155, %s158
    %p164 = scmp.eq.s32.totalorder %s11, 0
    %p165 = por %p163, %p164
    %p166 = scmp.ne.s32.totalorder %s155, %s158
    %p167 = scmp.eq.s32.totalorder %s16, 1
    %p168 = por %p166, %p167
    %p169 = scmp.ne.s32.totalorder %s158, %s159
    %p170 = scmp.eq.s32.totalorder %s16, 0
    %p171 = por %p169, %p170
    %p172 = scmp.ne.s32.totalorder %s158, %s159
    %p173 = scmp.eq.s32.totalorder %s17, 1
    %p174 = por %p172, %p173
    %p176 = scmp.ne.s32.totalorder %s159, %s175
    %p177 = scmp.eq.s32.totalorder %s17, 0
    %p178 = por %p176, %p177
    %p179 = scmp.le.s32.totalorder 1, %s11
    %p180 = scmp.lt.s32.totalorder %s11, 3
    %p181 = pnand %p179, %p180
    %p182 = pneg %p181
    // Predicated region
    $region9: #{encoder_decoder_forward.33} parent=5 // pred_check
      _
    $region10: #{encoder_decoder_forward.33} parent=5 // pred_check_branch
      %184 = sbr.rel (%p181) target = $region12
    $region11: #{encoder_decoder_forward.33} parent=5 // pred_region
      %s185 = ssub.s32 %s11, 1
      // Predicated region
      $region13: #{encoder_decoder_forward.33} parent=11 // pred_check
        %p186 = pneg %p75
      $region14: #{encoder_decoder_forward.33} parent=11 // pred_check_branch
        %188 = sbr.rel (%p186) target = $region16
      $region15: #{encoder_decoder_forward.33} parent=11 // pred_region
        %p189 = scmp.lt.s32.totalorder %s21, 0
        %s190 = scalar_select %p189, %s21, 0
        %s191 = smul.addr %s190, 4
        %s192 = scalar_lea.vmem %s1, %s191
      $region16: #{encoder_decoder_forward.33} parent=11 // pred_fallthru
        _
      // Predicated region
      $region17: #{encoder_decoder_forward.33} parent=11 // pred_check
        %p193 = pneg %p101
      $region18: #{encoder_decoder_forward.33} parent=11 // pred_check_branch
        %195 = sbr.rel (%p193) target = $region20
      $region19: #{encoder_decoder_forward.33} parent=11 // pred_region
        %p196 = scmp.lt.s32.totalorder %s21, 0
        %s197 = scalar_select %p196, %s21, 0
        %s198 = scalar_lea.vmem %s2, %s197
      $region20: #{encoder_decoder_forward.33} parent=11 // pred_fallthru
        _
      // Predicated region
      $region21: #{encoder_decoder_forward.33} parent=11 // pred_check
        %p199 = pneg %p122
      $region22: #{encoder_decoder_forward.33} parent=11 // pred_check_branch
        %201 = sbr.rel (%p199) target = $region24
      $region23: #{encoder_decoder_forward.33} parent=11 // pred_region
        _
      $region24: #{encoder_decoder_forward.33} parent=11 // pred_fallthru
        _
      // Predicated region
      $region25: #{encoder_decoder_forward.33} parent=11 // pred_check
        %p202 = pneg %p143
      $region26: #{encoder_decoder_forward.33} parent=11 // pred_check_branch
        %204 = sbr.rel (%p202) target = $region28
      $region27: #{encoder_decoder_forward.33} parent=11 // pred_region
        _
      $region28: #{encoder_decoder_forward.33} parent=11 // pred_fallthru
        _
    $region12: #{encoder_decoder_forward.33} parent=5 // pred_fallthru
      _
    %p205 = scmp.lt.s32.totalorder %s11, 2
    // Predicated region
    $region29: #{encoder_decoder_forward.33} parent=5 // pred_check
      %p206 = pneg %p205
    $region30: #{encoder_decoder_forward.33} parent=5 // pred_check_branch
      %208 = sbr.rel (%p206) target = $region32
    $region31: #{encoder_decoder_forward.33} parent=5 // pred_region
      // Predicated region
      $region33: #{encoder_decoder_forward.33} parent=31 // pred_check
        %p209 = pneg %p43
      $region34: #{encoder_decoder_forward.33} parent=31 // pred_check_branch
        %211 = sbr.rel (%p209) target = $region36
      $region35: #{encoder_decoder_forward.33} parent=31 // pred_region
        %p212 = scmp.lt.s32.totalorder %s18, 1
        %s213 = scalar_select %p212, %s18, 1
        %s214 = smul.addr %s213, 8
        %s215 = scalar_lea.vmem %s0, %s214
      $region36: #{encoder_decoder_forward.33} parent=31 // pred_fallthru
        _
    $region32: #{encoder_decoder_forward.33} parent=5 // pred_fallthru
      _
    %p216 = scmp.le.s32.totalorder 1, %s11
    %p217 = scmp.lt.s32.totalorder %s11, 3
    %p218 = pnand %p216, %p217
    %p219 = pneg %p218
    // Predicated region
    $region37: #{encoder_decoder_forward.33} parent=5 // pred_check
      _
    $region38: #{encoder_decoder_forward.33} parent=5 // pred_check_branch
      %221 = sbr.rel (%p218) target = $region40
    $region39: #{encoder_decoder_forward.33} parent=5 // pred_region
      %s222 = ssub.s32 %s11, 1
      %p223 = scmp.lt.s32.totalorder %s20, 1
      %s224 = scalar_select %p223, %s20, 1
      %s225 = smul.addr %s224, 8
      %s226 = scalar_lea.vmem %s0, %s225
      %p227 = pneg %p49
      %p228 = pneg %p46
      %p229 = scmp.lt.s32.totalorder %s21, 0
      %s230 = scalar_select %p229, %s21, 0
      %s231 = smul.addr %s230, 4
      %s232 = scalar_lea.vmem %s1, %s231
      %p233 = pneg %p75
      %p234 = pneg %p72
      %p235 = scmp.lt.s32.totalorder %s21, 0
      %s236 = scalar_select %p235, %s21, 0
      %s237 = scalar_lea.vmem %s2, %s236
      %p238 = pneg %p101
      %p239 = pneg %p98
      %p240 = pneg %p122
      %p241 = pneg %p119
      %p242 = pneg %p143
      %p243 = pneg %p140
      %p244 = pneg %p171
      %p245 = pneg %p168
      %p246 = scmp.lt.s32.totalorder %s20, 1
      %s247 = scalar_select %p246, %s20, 1
      %p248 = scmp.lt.s32.totalorder %s21, 0
      %s249 = scalar_select %p248, %s21, 0
      %s250 = sadd.s32 %s249, %s247
      %s251 = smul.addr %s250, 8
      %s252 = scalar_lea.vmem %s5, %s251
      %p253 = scmp.lt.s32.totalorder %s20, 1
      %s254 = scalar_select %p253, %s20, 1
      %s255 = smul.addr %s254, 8
      %s256 = scalar_lea.vmem %s0, %s255
      %p257 = scmp.lt.s32.totalorder %s21, 0
      %s258 = scalar_select %p257, %s21, 0
      %s259 = smul.addr %s258, 4
      %s260 = scalar_lea.vmem %s1, %s259
      %p261 = scmp.lt.s32.totalorder %s21, 0
      %s262 = scalar_select %p261, %s21, 0
      %s263 = scalar_lea.vmem %s2, %s262
      %p264 = scmp.lt.s32.totalorder %s20, 1
      %s265 = scalar_select %p264, %s20, 1
      %p266 = scmp.lt.s32.totalorder %s21, 0
      %s267 = scalar_select %p266, %s21, 0
      %s268 = sadd.s32 %s267, %s265
      %s269 = smul.addr %s268, 8
      %s270 = scalar_lea.vmem %s5, %s269
      %v272 = vld [vmem:[%s256] sm:$0xff]
      %vm273 = vcmask 261120
      %v274 = vsel %vm273, %v272, 0.0
      %275 = vadd.xlane.f32.xlu0 %v274
      %v276 = vpop.xlane.xlu0 %275
      %v277 = vrcp.pop 32.0
      %v278 = vmul.f32 32.0, %v277
      %v279 = vsub.f32 1.0, %v278
      %v280 = vmul.f32 %v277, %v279
      %v281 = vadd.f32 %v277, %v280
      %vm282 = vweird.f32 %v277
      %v283 = vsel %vm282, %v277, %v281
      %v284 = vmul.f32 %v276, %v283
      %v285 = vsub.f32 %v272, %v284
      %v286 = vmul.f32 %v285, %v285
      %v287 = vsel %vm273, %v286, 0.0
      %288 = vadd.xlane.f32.xlu0 %v287
      %v289 = vpop.xlane.xlu0 %288
      %v290 = vmul.f32 %v289, 0.032258064
      %v291 = vld [vmem:[%s3] sm:$0x1]
      %v293 = vperm.slane %v291, 0
      %v295 = vmul.f32 %v293, %v285
      %v296 = vrsqrt.pop %v290
      %v297 = vmul.f32 %v296, %v290
      %v298 = vmul.f32 %v297, %v296
      %v299 = vmul.f32 0.5, %v298
      %v300 = vsub.f32 1.5, %v299
      %v301 = vmul.f32 %v296, %v300
      %v302 = vmul.f32 %v290, %v301
      %vm303 = vcmp.eq.f32.partialorder %v290, inf
      %v304 = vsel %vm303, %v290, %v302
      %vm305 = vcmp.eq.f32.partialorder %v290, 0.0
      %v306 = vand.u32 %v290, 2147483648
      %v307 = vsel %vm305, %v306, %v304
      %v308 = vadd.f32 %v307, 1e-06
      %v309 = vrcp.pop %v308
      %v310 = vmul.f32 %v308, %v309
      %v311 = vsub.f32 1.0, %v310
      %v312 = vmul.f32 %v309, %v311
      %v313 = vadd.f32 %v309, %v312
      %vm314 = vweird.f32 %v308
      %vm315 = vweird.f32 %v309
      %vm316 = vmor %vm314, %vm315
      %v317 = vsel %vm316, %v309, %v313
      %v318 = vand.u32 2147483647, %v308
      %vm319 = vcmp.eq.f32.partialorder %v318, 8.507059e+37
      %v320 = vand.u32 %v308, 2147483648
      %v321 = vor.u32 1.1754944e-38, %v320
      %v322 = vsel %vm319, %v321, %v317
      %v323 = vmul.f32 %v295, %v322
      %v324 = vld [vmem:[%s4] sm:$0x1]
      %v326 = vperm.slane %v324, 0
      %v328 = vadd.f32 %v323, %v326
      %v329 = vpack.c.bf16 %v328, %v328
      %v330 = vld [vmem:[%s260] sm:$0xf]
      %v331 = vld [vmem:[%s260 + $0x4] sm:$0xf]
      %v332 = vld [vmem:[%s260 + $0x8] sm:$0xf]
      %v333 = vld [vmem:[%s260 + $0xc] sm:$0xf]
      %v334 = vld [vmem:[%s263] sm:$0x1]
      %v336 = vperm.slane %v334, 0
      %v342 = vunpack.c.l.b16 %v330
      %v343 = vunpack.c.l.b16 %v331
      %v344 = vunpack.c.l.b16 %v332
      %v345 = vunpack.c.l.b16 %v333
      %v346 = vpack.c.b16 %v343, %v342
      %v347 = vpack.c.b16 %v345, %v344
      %v351 = vsel %vm273, %v329, 0
      %353 = vmatpush.bf16.msra.mxu0 0
      %354 = vmatpush.bf16.msra.mxu0 0
      %355 = vmatpush.bf16.msra.mxu0 0
      %356 = vmatpush.bf16.msra.mxu0 0
      %357 = vmatpush.bf16.msra.mxu0 0
      %358 = vmatpush.bf16.msra.mxu0 0
      %359 = vmatpush.bf16.msra.mxu0 %v347
      %360 = vmatpush.bf16.msra.mxu0 %v346
      %361 = vmatmul.bf16.gmra.mxu0 %v351
      %v362 = vpop.f32.mrf.mxu0
      %v363 = vadd.f32 %v336, %v362
      %v364 = vpop.f32.mrf.mxu0
      %365 = vdwg.mxu0
      %v366 = vmax.f32 %v363, 0.0
      %vm367 = vcmask 523264
      %368 = vst.msk [vmem:[%s270] sm:$0xff] %vm367, %v366
      %p369 = scmp.lt.s32.totalorder %s20, 1
      %s370 = scalar_select %p369, %s20, 1
      %p371 = scmp.lt.s32.totalorder %s21, 0
      %s372 = scalar_select %p371, %s21, 0
      %s373 = sadd.s32 %s372, %s370
      %s374 = smul.addr %s373, 8
      %s375 = scalar_lea.vmem %s5, %s374
      // Predicated region
      $region41: #{encoder_decoder_forward.33} parent=39 // pred_check
        %p376 = pneg %p168
      $region42: #{encoder_decoder_forward.33} parent=39 // pred_check_branch
        %378 = sbr.rel (%p376) target = $region44
      $region43: #{encoder_decoder_forward.33} parent=39 // pred_region
        _
      $region44: #{encoder_decoder_forward.33} parent=39 // pred_fallthru
        _
    $region40: #{encoder_decoder_forward.33} parent=5 // pred_fallthru
      _
    %p379 = scmp.le.s32.totalorder 2, %s11
    // Predicated region
    $region45: #{encoder_decoder_forward.33} parent=5 // pred_check
      %p380 = pneg %p379
    $region46: #{encoder_decoder_forward.33} parent=5 // pred_check_branch
      %382 = sbr.rel (%p380) target = $region48
    $region47: #{encoder_decoder_forward.33} parent=5 // pred_region
      %s383 = ssub.s32 %s11, 2
      // Predicated region
      $region49: #{encoder_decoder_forward.33} parent=47 // pred_check
        %p384 = pneg %p174
      $region50: #{encoder_decoder_forward.33} parent=47 // pred_check_branch
        %386 = sbr.rel (%p384) target = $region52
      $region51: #{encoder_decoder_forward.33} parent=47 // pred_region
        %p387 = scmp.lt.s32.totalorder %s22, 1
        %s388 = scalar_select %p387, %s22, 1
        %p389 = scmp.lt.s32.totalorder %s23, 0
        %s390 = scalar_select %p389, %s23, 0
        %s391 = sadd.s32 %s390, %s388
        %s392 = smul.addr %s391, 8
        %s393 = scalar_lea.vmem %s5, %s392
      $region52: #{encoder_decoder_forward.33} parent=47 // pred_fallthru
        _
    $region48: #{encoder_decoder_forward.33} parent=5 // pred_fallthru
      _
  $region6: #{encoder_decoder_forward.33} parent=0 // loop_footer
    %s15 = sadd.s32 1, %s11
  $region7: #{encoder_decoder_forward.33} parent=0 // loop_footer_branch
    %10 = sbr.rel target = $region3
  $region8: #{encoder_decoder_forward.33} parent=0 // loop_exit
    _

// kernel: encoder_decoder_forward.34
$region0: #{encoder_decoder_forward.34}
  #allocation0 [shape = 'u32[]', space=smem, size = 0x4, offset = 0x4, fixed_abs, tag = 'smem constant byte address 0x4 - core index']
  #allocation1 [shape = 'u32[72,128]{1,0:T(1,128)}', space=vmem, size = 0x9000, scoped, tag = 'internal scratch']
  %s0 = inlined_call_operand.vmem [shape: f32[16,64], index: 0, kind: input, shape index: {}]
  %s1 = inlined_call_operand.vmem [shape: bf16[64,32], index: 1, kind: input, shape index: {}]
  %s2 = inlined_call_operand.vmem [shape: f32[1,32], index: 2, kind: input, shape index: {}]
  %s3 = inlined_call_operand.vmem [shape: f32[16,32], index: 3, kind: input, shape index: {}]
  %s4 = inlined_call_operand.vmem [shape: f32[16,32], index: 4, kind: output, shape index: {}]
  %s5 = sld [smem:[#allocation0]]
  $region49: #{encoder_decoder_forward.34} parent=0
    _
  %s7 = ssub.s32 1, %s5
  %s8 = scalar_select 0, %s7, %s5
  loop: start=0, step=1, limit=4
  $region2: #{encoder_decoder_forward.34} parent=0 // loop_pre_header
    _
  $region3: #{encoder_decoder_forward.34} parent=0 // loop_header
    %s10 = sphi 0, %s14
    %p11 = scmp.ge.s32.totalorder %s10, 4
    %s17 = sphi 0, %s29
    %s18 = sphi 0, %s25
    %s19 = sphi 0, %s17
    %s20 = sphi 0, %s18
    %s21 = sphi 0, %s19
    %s22 = sphi 0, %s20
    %s32 = sphi 0, %s34
    %s35 = sphi 0, %s32
    %s36 = sphi 0, %s35
    %s52 = sphi 0, %s36
    %s58 = sphi 0, %s60
    %s61 = sphi 0, %s58
    %s62 = sphi 0, %s61
    %s78 = sphi 0, %s62
    %s84 = sphi 0, %s86
    %s87 = sphi 0, %s84
    %s88 = sphi 0, %s87
    %s104 = sphi 0, %s88
    %s112 = sphi 0, %s114
    %s115 = sphi 0, %s112
    %s116 = sphi 0, %s115
    %s132 = sphi 0, %s116
    %s140 = sphi 0, %s142
    %s143 = sphi 0, %s140
    %s144 = sphi 0, %s143
    %s160 = sphi 0, %s144
  $region4: #{encoder_decoder_forward.34} parent=0 // loop_header_branch
    %13 = sbr.rel (%p11) target = $region8
  $region5: #{encoder_decoder_forward.34} parent=0 // loop_body
    %s15 = ssub.s32 %s10, 1
    %s16 = ssub.s32 %s10, 2
    %s23 = sadd.s32 1, %s18
    %p24 = scmp.ge.s32.totalorder %s23, 1
    %s25 = scalar_select %p24, 0, %s23
    %s26 = sadd.s32 1, %s17
    %s27 = scalar_select %p24, %s26, %s17
    %p28 = scmp.ge.s32.totalorder %s27, 2
    %s29 = scalar_select %p28, 0, %s27
    %s30 = ssub.s32 %s17, %s29
    %p31 = scmp.eq.s32.totalorder %s30, 0
    %s33 = sadd.s32 %s32, 1
    %s34 = scalar_select %p31, %s32, %s33
    %p37 = pneg %p31
    %p38 = scmp.eq.s32.totalorder %s10, 1
    %p39 = por %p37, %p38
    %p40 = scmp.ne.s32.totalorder %s32, %s35
    %p41 = scmp.eq.s32.totalorder %s10, 0
    %p42 = por %p40, %p41
    %p43 = scmp.ne.s32.totalorder %s32, %s35
    %p44 = scmp.eq.s32.totalorder %s15, 1
    %p45 = por %p43, %p44
    %p46 = scmp.ne.s32.totalorder %s35, %s36
    %p47 = scmp.eq.s32.totalorder %s15, 0
    %p48 = por %p46, %p47
    %p49 = scmp.ne.s32.totalorder %s35, %s36
    %p50 = scmp.eq.s32.totalorder %s16, 1
    %p51 = por %p49, %p50
    %p53 = scmp.ne.s32.totalorder %s36, %s52
    %p54 = scmp.eq.s32.totalorder %s16, 0
    %p55 = por %p53, %p54
    %s56 = ssub.s32 %s18, %s25
    %p57 = scmp.eq.s32.totalorder %s56, 0
    %s59 = sadd.s32 %s58, 1
    %s60 = scalar_select %p57, %s58, %s59
    %p63 = pneg %p57
    %p64 = scmp.eq.s32.totalorder %s10, 1
    %p65 = por %p63, %p64
    %p66 = scmp.ne.s32.totalorder %s58, %s61
    %p67 = scmp.eq.s32.totalorder %s10, 0
    %p68 = por %p66, %p67
    %p69 = scmp.ne.s32.totalorder %s58, %s61
    %p70 = scmp.eq.s32.totalorder %s15, 1
    %p71 = por %p69, %p70
    %p72 = scmp.ne.s32.totalorder %s61, %s62
    %p73 = scmp.eq.s32.totalorder %s15, 0
    %p74 = por %p72, %p73
    %p75 = scmp.ne.s32.totalorder %s61, %s62
    %p76 = scmp.eq.s32.totalorder %s16, 1
    %p77 = por %p75, %p76
    %p79 = scmp.ne.s32.totalorder %s62, %s78
    %p80 = scmp.eq.s32.totalorder %s16, 0
    %p81 = por %p79, %p80
    %s82 = ssub.s32 %s18, %s25
    %p83 = scmp.eq.s32.totalorder %s82, 0
    %s85 = sadd.s32 %s84, 1
    %s86 = scalar_select %p83, %s84, %s85
    %p89 = pneg %p83
    %p90 = scmp.eq.s32.totalorder %s10, 1
    %p91 = por %p89, %p90
    %p92 = scmp.ne.s32.totalorder %s84, %s87
    %p93 = scmp.eq.s32.totalorder %s10, 0
    %p94 = por %p92, %p93
    %p95 = scmp.ne.s32.totalorder %s84, %s87
    %p96 = scmp.eq.s32.totalorder %s15, 1
    %p97 = por %p95, %p96
    %p98 = scmp.ne.s32.totalorder %s87, %s88
    %p99 = scmp.eq.s32.totalorder %s15, 0
    %p100 = por %p98, %p99
    %p101 = scmp.ne.s32.totalorder %s87, %s88
    %p102 = scmp.eq.s32.totalorder %s16, 1
    %p103 = por %p101, %p102
    %p105 = scmp.ne.s32.totalorder %s88, %s104
    %p106 = scmp.eq.s32.totalorder %s16, 0
    %p107 = por %p105, %p106
    %s108 = ssub.s32 %s17, %s29
    %s109 = ssub.s32 %s18, %s25
    %s110 = sor.u32 %s108, %s109
    %p111 = scmp.eq.s32.totalorder %s110, 0
    %s113 = sadd.s32 %s112, 1
    %s114 = scalar_select %p111, %s112, %s113
    %p117 = pneg %p111
    %p118 = scmp.eq.s32.totalorder %s10, 1
    %p119 = por %p117, %p118
    %p120 = scmp.ne.s32.totalorder %s112, %s115
    %p121 = scmp.eq.s32.totalorder %s10, 0
    %p122 = por %p120, %p121
    %p123 = scmp.ne.s32.totalorder %s112, %s115
    %p124 = scmp.eq.s32.totalorder %s15, 1
    %p125 = por %p123, %p124
    %p126 = scmp.ne.s32.totalorder %s115, %s116
    %p127 = scmp.eq.s32.totalorder %s15, 0
    %p128 = por %p126, %p127
    %p129 = scmp.ne.s32.totalorder %s115, %s116
    %p130 = scmp.eq.s32.totalorder %s16, 1
    %p131 = por %p129, %p130
    %p133 = scmp.ne.s32.totalorder %s116, %s132
    %p134 = scmp.eq.s32.totalorder %s16, 0
    %p135 = por %p133, %p134
    %s136 = ssub.s32 %s17, %s29
    %s137 = ssub.s32 %s18, %s25
    %s138 = sor.u32 %s136, %s137
    %p139 = scmp.eq.s32.totalorder %s138, 0
    %s141 = sadd.s32 %s140, 1
    %s142 = scalar_select %p139, %s140, %s141
    %p145 = pneg %p139
    %p146 = scmp.eq.s32.totalorder %s10, 1
    %p147 = por %p145, %p146
    %p148 = scmp.ne.s32.totalorder %s140, %s143
    %p149 = scmp.eq.s32.totalorder %s10, 0
    %p150 = por %p148, %p149
    %p151 = scmp.ne.s32.totalorder %s140, %s143
    %p152 = scmp.eq.s32.totalorder %s15, 1
    %p153 = por %p151, %p152
    %p154 = scmp.ne.s32.totalorder %s143, %s144
    %p155 = scmp.eq.s32.totalorder %s15, 0
    %p156 = por %p154, %p155
    %p157 = scmp.ne.s32.totalorder %s143, %s144
    %p158 = scmp.eq.s32.totalorder %s16, 1
    %p159 = por %p157, %p158
    %p161 = scmp.ne.s32.totalorder %s144, %s160
    %p162 = scmp.eq.s32.totalorder %s16, 0
    %p163 = por %p161, %p162
    %p164 = scmp.le.s32.totalorder 1, %s10
    %p165 = scmp.lt.s32.totalorder %s10, 3
    %p166 = pnand %p164, %p165
    %p167 = pneg %p166
    // Predicated region
    $region9: #{encoder_decoder_forward.34} parent=5 // pred_check
      _
    $region10: #{encoder_decoder_forward.34} parent=5 // pred_check_branch
      %169 = sbr.rel (%p166) target = $region12
    $region11: #{encoder_decoder_forward.34} parent=5 // pred_region
      %s170 = ssub.s32 %s10, 1
      // Predicated region
      $region13: #{encoder_decoder_forward.34} parent=11 // pred_check
        %p171 = pneg %p74
      $region14: #{encoder_decoder_forward.34} parent=11 // pred_check_branch
        %173 = sbr.rel (%p171) target = $region16
      $region15: #{encoder_decoder_forward.34} parent=11 // pred_region
        %p174 = scmp.lt.s32.totalorder %s20, 0
        %s175 = scalar_select %p174, %s20, 0
        %s176 = smul.addr %s175, 4
        %s177 = scalar_lea.vmem %s1, %s176
      $region16: #{encoder_decoder_forward.34} parent=11 // pred_fallthru
        _
      // Predicated region
      $region17: #{encoder_decoder_forward.34} parent=11 // pred_check
        %p178 = pneg %p100
      $region18: #{encoder_decoder_forward.34} parent=11 // pred_check_branch
        %180 = sbr.rel (%p178) target = $region20
      $region19: #{encoder_decoder_forward.34} parent=11 // pred_region
        %p181 = scmp.lt.s32.totalorder %s20, 0
        %s182 = scalar_select %p181, %s20, 0
        %s183 = scalar_lea.vmem %s2, %s182
      $region20: #{encoder_decoder_forward.34} parent=11 // pred_fallthru
        _
    $region12: #{encoder_decoder_forward.34} parent=5 // pred_fallthru
      _
    %p184 = scmp.lt.s32.totalorder %s10, 2
    // Predicated region
    $region21: #{encoder_decoder_forward.34} parent=5 // pred_check
      %p185 = pneg %p184
    $region22: #{encoder_decoder_forward.34} parent=5 // pred_check_branch
      %187 = sbr.rel (%p185) target = $region24
    $region23: #{encoder_decoder_forward.34} parent=5 // pred_region
      // Predicated region
      $region25: #{encoder_decoder_forward.34} parent=23 // pred_check
        %p188 = pneg %p42
      $region26: #{encoder_decoder_forward.34} parent=23 // pred_check_branch
        %190 = sbr.rel (%p188) target = $region28
      $region27: #{encoder_decoder_forward.34} parent=23 // pred_region
        %p191 = scmp.lt.s32.totalorder %s17, 1
        %s192 = scalar_select %p191, %s17, 1
        %s193 = smul.addr %s192, 8
        %s194 = scalar_lea.vmem %s0, %s193
      $region28: #{encoder_decoder_forward.34} parent=23 // pred_fallthru
        _
      // Predicated region
      $region29: #{encoder_decoder_forward.34} parent=23 // pred_check
        %p195 = pneg %p122
      $region30: #{encoder_decoder_forward.34} parent=23 // pred_check_branch
        %197 = sbr.rel (%p195) target = $region32
      $region31: #{encoder_decoder_forward.34} parent=23 // pred_region
        %p198 = scmp.lt.s32.totalorder %s17, 1
        %s199 = scalar_select %p198, %s17, 1
        %p200 = scmp.lt.s32.totalorder %s18, 0
        %s201 = scalar_select %p200, %s18, 0
        %s202 = sadd.s32 %s201, %s199
        %s203 = smul.addr %s202, 8
        %s204 = scalar_lea.vmem %s3, %s203
      $region32: #{encoder_decoder_forward.34} parent=23 // pred_fallthru
        _
    $region24: #{encoder_decoder_forward.34} parent=5 // pred_fallthru
      _
    %p205 = scmp.le.s32.totalorder 1, %s10
    %p206 = scmp.lt.s32.totalorder %s10, 3
    %p207 = pnand %p205, %p206
    %p208 = pneg %p207
    // Predicated region
    $region33: #{encoder_decoder_forward.34} parent=5 // pred_check
      _
    $region34: #{encoder_decoder_forward.34} parent=5 // pred_check_branch
      %210 = sbr.rel (%p207) target = $region36
    $region35: #{encoder_decoder_forward.34} parent=5 // pred_region
      %s211 = ssub.s32 %s10, 1
      %p212 = scmp.lt.s32.totalorder %s19, 1
      %s213 = scalar_select %p212, %s19, 1
      %s214 = smul.addr %s213, 8
      %s215 = scalar_lea.vmem %s0, %s214
      %p216 = pneg %p48
      %p217 = pneg %p45
      %p218 = scmp.lt.s32.totalorder %s20, 0
      %s219 = scalar_select %p218, %s20, 0
      %s220 = smul.addr %s219, 4
      %s221 = scalar_lea.vmem %s1, %s220
      %p222 = pneg %p74
      %p223 = pneg %p71
      %p224 = scmp.lt.s32.totalorder %s20, 0
      %s225 = scalar_select %p224, %s20, 0
      %s226 = scalar_lea.vmem %s2, %s225
      %p227 = pneg %p100
      %p228 = pneg %p97
      %p229 = scmp.lt.s32.totalorder %s19, 1
      %s230 = scalar_select %p229, %s19, 1
      %p231 = scmp.lt.s32.totalorder %s20, 0
      %s232 = scalar_select %p231, %s20, 0
      %s233 = sadd.s32 %s232, %s230
      %s234 = smul.addr %s233, 8
      %s235 = scalar_lea.vmem %s3, %s234
      %p236 = pneg %p128
      %p237 = pneg %p125
      %p238 = pneg %p156
      %p239 = pneg %p153
      %p240 = scmp.lt.s32.totalorder %s19, 1
      %s241 = scalar_select %p240, %s19, 1
      %p242 = scmp.lt.s32.totalorder %s20, 0
      %s243 = scalar_select %p242, %s20, 0
      %s244 = sadd.s32 %s243, %s241
      %s245 = smul.addr %s244, 8
      %s246 = scalar_lea.vmem %s4, %s245
      %p247 = scmp.lt.s32.totalorder %s19, 1
      %s248 = scalar_select %p247, %s19, 1
      %s249 = smul.addr %s248, 8
      %s250 = scalar_lea.vmem %s0, %s249
      %p251 = scmp.lt.s32.totalorder %s20, 0
      %s252 = scalar_select %p251, %s20, 0
      %s253 = smul.addr %s252, 4
      %s254 = scalar_lea.vmem %s1, %s253
      %p255 = scmp.lt.s32.totalorder %s20, 0
      %s256 = scalar_select %p255, %s20, 0
      %s257 = scalar_lea.vmem %s2, %s256
      %p258 = scmp.lt.s32.totalorder %s19, 1
      %s259 = scalar_select %p258, %s19, 1
      %p260 = scmp.lt.s32.totalorder %s20, 0
      %s261 = scalar_select %p260, %s20, 0
      %s262 = sadd.s32 %s261, %s259
      %s263 = smul.addr %s262, 8
      %s264 = scalar_lea.vmem %s3, %s263
      %p265 = scmp.lt.s32.totalorder %s19, 1
      %s266 = scalar_select %p265, %s19, 1
      %p267 = scmp.lt.s32.totalorder %s20, 0
      %s268 = scalar_select %p267, %s20, 0
      %s269 = sadd.s32 %s268, %s266
      %s270 = smul.addr %s269, 8
      %s271 = scalar_lea.vmem %s4, %s270
      %v273 = vld [vmem:[%s250] sm:$0xff]
      %v274 = vpack.c.bf16 %v273, %v273
      %v275 = vld [vmem:[%s254] sm:$0xf]
      %v276 = vld [vmem:[%s254 + $0x4] sm:$0xf]
      %v277 = vld [vmem:[%s254 + $0x8] sm:$0xf]
      %v278 = vld [vmem:[%s254 + $0xc] sm:$0xf]
      %v279 = vld [vmem:[%s254 + $0x10] sm:$0xf]
      %v280 = vld [vmem:[%s254 + $0x14] sm:$0xf]
      %v281 = vld [vmem:[%s254 + $0x18] sm:$0xf]
      %v282 = vld [vmem:[%s254 + $0x1c] sm:$0xf]
      %v283 = vld [vmem:[%s257] sm:$0x1]
      %v285 = vperm.slane %v283, 0
      %v295 = vunpack.c.l.b16 %v275
      %v296 = vunpack.c.l.b16 %v276
      %v297 = vunpack.c.l.b16 %v277
      %v298 = vunpack.c.l.b16 %v278
      %v299 = vunpack.c.l.b16 %v279
      %v300 = vunpack.c.l.b16 %v280
      %v301 = vunpack.c.l.b16 %v281
      %v302 = vunpack.c.l.b16 %v282
      %v303 = vpack.c.b16 %v296, %v295
      %v304 = vpack.c.b16 %v298, %v297
      %v305 = vpack.c.b16 %v300, %v299
      %v306 = vpack.c.b16 %v302, %v301
      %vm311 = vcmask 523264
      %v313 = vsel %vm311, %v274, 0
      %315 = vmatpush.bf16.msra.mxu0 0
      %316 = vmatpush.bf16.msra.mxu0 0
      %317 = vmatpush.bf16.msra.mxu0 0
      %318 = vmatpush.bf16.msra.mxu0 0
      %319 = vmatpush.bf16.msra.mxu0 %v306
      %320 = vmatpush.bf16.msra.mxu0 %v305
      %321 = vmatpush.bf16.msra.mxu0 %v304
      %322 = vmatpush.bf16.msra.mxu0 %v303
      %323 = vmatmul.bf16.gmra.mxu0 %v313
      %v324 = vpop.f32.mrf.mxu0
      %v325 = vadd.f32 %v285, %v324
      %v326 = vpop.f32.mrf.mxu0
      %327 = vdwg.mxu0
      %v328 = vld [vmem:[%s264] sm:$0xff]
      %v329 = vadd.f32 %v325, %v328
      %vm330 = vcmask 261120
      %331 = vst.msk [vmem:[%s271] sm:$0xff] %vm330, %v329
      %p332 = scmp.lt.s32.totalorder %s19, 1
      %s333 = scalar_select %p332, %s19, 1
      %p334 = scmp.lt.s32.totalorder %s20, 0
      %s335 = scalar_select %p334, %s20, 0
      %s336 = sadd.s32 %s335, %s333
      %s337 = smul.addr %s336, 8
      %s338 = scalar_lea.vmem %s4, %s337
      // Predicated region
      $region37: #{encoder_decoder_forward.34} parent=35 // pred_check
        %p339 = pneg %p153
      $region38: #{encoder_decoder_forward.34} parent=35 // pred_check_branch
        %341 = sbr.rel (%p339) target = $region40
      $region39: #{encoder_decoder_forward.34} parent=35 // pred_region
        _
      $region40: #{encoder_decoder_forward.34} parent=35 // pred_fallthru
        _
    $region36: #{encoder_decoder_forward.34} parent=5 // pred_fallthru
      _
    %p342 = scmp.le.s32.totalorder 2, %s10
    // Predicated region
    $region41: #{encoder_decoder_forward.34} parent=5 // pred_check
      %p343 = pneg %p342
    $region42: #{encoder_decoder_forward.34} parent=5 // pred_check_branch
      %345 = sbr.rel (%p343) target = $region44
    $region43: #{encoder_decoder_forward.34} parent=5 // pred_region
      %s346 = ssub.s32 %s10, 2
      // Predicated region
      $region45: #{encoder_decoder_forward.34} parent=43 // pred_check
        %p347 = pneg %p159
      $region46: #{encoder_decoder_forward.34} parent=43 // pred_check_branch
        %349 = sbr.rel (%p347) target = $region48
      $region47: #{encoder_decoder_forward.34} parent=43 // pred_region
        %p350 = scmp.lt.s32.totalorder %s21, 1
        %s351 = scalar_select %p350, %s21, 1
        %p352 = scmp.lt.s32.totalorder %s22, 0
        %s353 = scalar_select %p352, %s22, 0
        %s354 = sadd.s32 %s353, %s351
        %s355 = smul.addr %s354, 8
        %s356 = scalar_lea.vmem %s4, %s355
      $region48: #{encoder_decoder_forward.34} parent=43 // pred_fallthru
        _
    $region44: #{encoder_decoder_forward.34} parent=5 // pred_fallthru
      _
  $region6: #{encoder_decoder_forward.34} parent=0 // loop_footer
    %s14 = sadd.s32 1, %s10
  $region7: #{encoder_decoder_forward.34} parent=0 // loop_footer_branch
    %9 = sbr.rel target = $region3
  $region8: #{encoder_decoder_forward.34} parent=0 // loop_exit
    _

// kernel: encoder_decoder_forward.40
$region0: #{encoder_decoder_forward.40}
  #allocation0 [shape = 'u32[]', space=smem, size = 0x4, offset = 0x4, fixed_abs, tag = 'smem constant byte address 0x4 - core index']
  #allocation1 [shape = 'u32[72,128]{1,0:T(1,128)}', space=vmem, size = 0x9000, scoped, tag = 'internal scratch']
  %s0 = inlined_call_operand.vmem [shape: f32[16,32], index: 0, kind: input, shape index: {}]
  %s1 = inlined_call_operand.vmem [shape: f32[1,32], index: 1, kind: input, shape index: {}]
  %s2 = inlined_call_operand.vmem [shape: f32[1,32], index: 2, kind: input, shape index: {}]
  %s3 = inlined_call_operand.vmem [shape: f32[16,32], index: 3, kind: output, shape index: {}]
  %s4 = sld [smem:[#allocation0]]
  $region45: #{encoder_decoder_forward.40} parent=0
    _
  %s6 = ssub.s32 1, %s4
  %s7 = scalar_select 0, %s6, %s4
  loop: start=0, step=1, limit=4
  $region2: #{encoder_decoder_forward.40} parent=0 // loop_pre_header
    _
  $region3: #{encoder_decoder_forward.40} parent=0 // loop_header
    %s9 = sphi 0, %s13
    %p10 = scmp.ge.s32.totalorder %s9, 4
    %s19 = sphi 0, %s21
    %s22 = sphi 0, %s19
    %s23 = sphi 0, %s22
    %s39 = sphi 0, %s23
    %s43 = sphi 0, %s43
    %s45 = sphi 0, %s43
    %s46 = sphi 0, %s45
    %s60 = sphi 0, %s46
    %s64 = sphi 0, %s64
    %s66 = sphi 0, %s64
    %s67 = sphi 0, %s66
    %s81 = sphi 0, %s67
    %s87 = sphi 0, %s89
    %s90 = sphi 0, %s87
    %s91 = sphi 0, %s90
    %s107 = sphi 0, %s91
  $region4: #{encoder_decoder_forward.40} parent=0 // loop_header_branch
    %12 = sbr.rel (%p10) target = $region8
  $region5: #{encoder_decoder_forward.40} parent=0 // loop_body
    %s14 = ssub.s32 %s9, 1
    %s15 = ssub.s32 %s9, 2
    %s16 = sadd.s32 %s9, 1
    %s17 = ssub.s32 %s9, %s16
    %p18 = scmp.eq.s32.totalorder %s17, 0
    %s20 = sadd.s32 %s19, 1
    %s21 = scalar_select %p18, %s19, %s20
    %p24 = pneg %p18
    %p25 = scmp.eq.s32.totalorder %s9, 1
    %p26 = por %p24, %p25
    %p27 = scmp.ne.s32.totalorder %s19, %s22
    %p28 = scmp.eq.s32.totalorder %s9, 0
    %p29 = por %p27, %p28
    %p30 = scmp.ne.s32.totalorder %s19, %s22
    %p31 = scmp.eq.s32.totalorder %s14, 1
    %p32 = por %p30, %p31
    %p33 = scmp.ne.s32.totalorder %s22, %s23
    %p34 = scmp.eq.s32.totalorder %s14, 0
    %p35 = por %p33, %p34
    %p36 = scmp.ne.s32.totalorder %s22, %s23
    %p37 = scmp.eq.s32.totalorder %s15, 1
    %p38 = por %p36, %p37
    %p40 = scmp.ne.s32.totalorder %s23, %s39
    %p41 = scmp.eq.s32.totalorder %s15, 0
    %p42 = por %p40, %p41
    %s44 = sadd.s32 %s43, 1
    %p47 = scmp.eq.s32.totalorder %s9, 1
    %p48 = scmp.ne.s32.totalorder %s43, %s45
    %p49 = scmp.eq.s32.totalorder %s9, 0
    %p50 = por %p48, %p49
    %p51 = scmp.ne.s32.totalorder %s43, %s45
    %p52 = scmp.eq.s32.totalorder %s14, 1
    %p53 = por %p51, %p52
    %p54 = scmp.ne.s32.totalorder %s45, %s46
    %p55 = scmp.eq.s32.totalorder %s14, 0
    %p56 = por %p54, %p55
    %p57 = scmp.ne.s32.totalorder %s45, %s46
    %p58 = scmp.eq.s32.totalorder %s15, 1
    %p59 = por %p57, %p58
    %p61 = scmp.ne.s32.totalorder %s46, %s60
    %p62 = scmp.eq.s32.totalorder %s15, 0
    %p63 = por %p61, %p62
    %s65 = sadd.s32 %s64, 1
    %p68 = scmp.eq.s32.totalorder %s9, 1
    %p69 = scmp.ne.s32.totalorder %s64, %s66
    %p70 = scmp.eq.s32.totalorder %s9, 0
    %p71 = por %p69, %p70
    %p72 = scmp.ne.s32.totalorder %s64, %s66
    %p73 = scmp.eq.s32.totalorder %s14, 1
    %p74 = por %p72, %p73
    %p75 = scmp.ne.s32.totalorder %s66, %s67
    %p76 = scmp.eq.s32.totalorder %s14, 0
    %p77 = por %p75, %p76
    %p78 = scmp.ne.s32.totalorder %s66, %s67
    %p79 = scmp.eq.s32.totalorder %s15, 1
    %p80 = por %p78, %p79
    %p82 = scmp.ne.s32.totalorder %s67, %s81
    %p83 = scmp.eq.s32.totalorder %s15, 0
    %p84 = por %p82, %p83
    %s85 = ssub.s32 %s9, %s16
    %p86 = scmp.eq.s32.totalorder %s85, 0
    %s88 = sadd.s32 %s87, 1
    %s89 = scalar_select %p86, %s87, %s88
    %p92 = pneg %p86
    %p93 = scmp.eq.s32.totalorder %s9, 1
    %p94 = por %p92, %p93
    %p95 = scmp.ne.s32.totalorder %s87, %s90
    %p96 = scmp.eq.s32.totalorder %s9, 0
    %p97 = por %p95, %p96
    %p98 = scmp.ne.s32.totalorder %s87, %s90
    %p99 = scmp.eq.s32.totalorder %s14, 1
    %p100 = por %p98, %p99
    %p101 = scmp.ne.s32.totalorder %s90, %s91
    %p102 = scmp.eq.s32.totalorder %s14, 0
    %p103 = por %p101, %p102
    %p104 = scmp.ne.s32.totalorder %s90, %s91
    %p105 = scmp.eq.s32.totalorder %s15, 1
    %p106 = por %p104, %p105
    %p108 = scmp.ne.s32.totalorder %s91, %s107
    %p109 = scmp.eq.s32.totalorder %s15, 0
    %p110 = por %p108, %p109
    %p111 = scmp.le.s32.totalorder 1, %s9
    %p112 = scmp.lt.s32.totalorder %s9, 3
    %p113 = pnand %p111, %p112
    %p114 = pneg %p113
    // Predicated region
    $region9: #{encoder_decoder_forward.40} parent=5 // pred_check
      _
    $region10: #{encoder_decoder_forward.40} parent=5 // pred_check_branch
      %116 = sbr.rel (%p113) target = $region12
    $region11: #{encoder_decoder_forward.40} parent=5 // pred_region
      %s117 = ssub.s32 %s9, 1
      // Predicated region
      $region13: #{encoder_decoder_forward.40} parent=11 // pred_check
        %p118 = pneg %p56
      $region14: #{encoder_decoder_forward.40} parent=11 // pred_check_branch
        %120 = sbr.rel (%p118) target = $region16
      $region15: #{encoder_decoder_forward.40} parent=11 // pred_region
        _
      $region16: #{encoder_decoder_forward.40} parent=11 // pred_fallthru
        _
      // Predicated region
      $region17: #{encoder_decoder_forward.40} parent=11 // pred_check
        %p121 = pneg %p77
      $region18: #{encoder_decoder_forward.40} parent=11 // pred_check_branch
        %123 = sbr.rel (%p121) target = $region20
      $region19: #{encoder_decoder_forward.40} parent=11 // pred_region
        _
      $region20: #{encoder_decoder_forward.40} parent=11 // pred_fallthru
        _
    $region12: #{encoder_decoder_forward.40} parent=5 // pred_fallthru
      _
    %p124 = scmp.lt.s32.totalorder %s9, 2
    // Predicated region
    $region21: #{encoder_decoder_forward.40} parent=5 // pred_check
      %p125 = pneg %p124
    $region22: #{encoder_decoder_forward.40} parent=5 // pred_check_branch
      %127 = sbr.rel (%p125) target = $region24
    $region23: #{encoder_decoder_forward.40} parent=5 // pred_region
      // Predicated region
      $region25: #{encoder_decoder_forward.40} parent=23 // pred_check
        %p128 = pneg %p29
      $region26: #{encoder_decoder_forward.40} parent=23 // pred_check_branch
        %130 = sbr.rel (%p128) target = $region28
      $region27: #{encoder_decoder_forward.40} parent=23 // pred_region
        %p131 = scmp.lt.s32.totalorder %s9, 1
        %s132 = scalar_select %p131, %s9, 1
        %s133 = smul.addr %s132, 8
        %s134 = scalar_lea.vmem %s0, %s133
      $region28: #{encoder_decoder_forward.40} parent=23 // pred_fallthru
        _
    $region24: #{encoder_decoder_forward.40} parent=5 // pred_fallthru
      _
    %p135 = scmp.le.s32.totalorder 1, %s9
    %p136 = scmp.lt.s32.totalorder %s9, 3
    %p137 = pnand %p135, %p136
    %p138 = pneg %p137
    // Predicated region
    $region29: #{encoder_decoder_forward.40} parent=5 // pred_check
      _
    $region30: #{encoder_decoder_forward.40} parent=5 // pred_check_branch
      %140 = sbr.rel (%p137) target = $region32
    $region31: #{encoder_decoder_forward.40} parent=5 // pred_region
      %s141 = ssub.s32 %s9, 1
      %p142 = scmp.lt.s32.totalorder %s14, 1
      %s143 = scalar_select %p142, %s14, 1
      %s144 = smul.addr %s143, 8
      %s145 = scalar_lea.vmem %s0, %s144
      %p146 = pneg %p35
      %p147 = pneg %p32
      %p148 = pneg %p56
      %p149 = pneg %p53
      %p150 = pneg %p77
      %p151 = pneg %p74
      %p152 = pneg %p103
      %p153 = pneg %p100
      %p154 = scmp.lt.s32.totalorder %s14, 1
      %s155 = scalar_select %p154, %s14, 1
      %s156 = smul.addr %s155, 8
      %s157 = scalar_lea.vmem %s3, %s156
      %p158 = scmp.lt.s32.totalorder %s14, 1
      %s159 = scalar_select %p158, %s14, 1
      %s160 = smul.addr %s159, 8
      %s161 = scalar_lea.vmem %s0, %s160
      %p162 = scmp.lt.s32.totalorder %s14, 1
      %s163 = scalar_select %p162, %s14, 1
      %s164 = smul.addr %s163, 8
      %s165 = scalar_lea.vmem %s3, %s164
      %v166 = vld [vmem:[%s161] sm:$0xff]
      %vm167 = vcmask 261120
      %v168 = vsel %vm167, %v166, 0.0
      %169 = vadd.xlane.f32.xlu0 %v168
      %v170 = vpop.xlane.xlu0 %169
      %v171 = vrcp.pop 32.0
      %v172 = vmul.f32 32.0, %v171
      %v173 = vsub.f32 1.0, %v172
      %v174 = vmul.f32 %v171, %v173
      %v175 = vadd.f32 %v171, %v174
      %vm176 = vweird.f32 %v171
      %v177 = vsel %vm176, %v171, %v175
      %v178 = vmul.f32 %v170, %v177
      %v179 = vsub.f32 %v166, %v178
      %v180 = vmul.f32 %v179, %v179
      %v181 = vsel %vm167, %v180, 0.0
      %182 = vadd.xlane.f32.xlu0 %v181
      %v183 = vpop.xlane.xlu0 %182
      %v184 = vmul.f32 %v183, 0.032258064
      %v185 = vld [vmem:[%s1] sm:$0x1]
      %v187 = vperm.slane %v185, 0
      %v189 = vmul.f32 %v187, %v179
      %v190 = vrsqrt.pop %v184
      %v191 = vmul.f32 %v190, %v184
      %v192 = vmul.f32 %v191, %v190
      %v193 = vmul.f32 0.5, %v192
      %v194 = vsub.f32 1.5, %v193
      %v195 = vmul.f32 %v190, %v194
      %v196 = vmul.f32 %v184, %v195
      %vm197 = vcmp.eq.f32.partialorder %v184, inf
      %v198 = vsel %vm197, %v184, %v196
      %vm199 = vcmp.eq.f32.partialorder %v184, 0.0
      %v200 = vand.u32 %v184, 2147483648
      %v201 = vsel %vm199, %v200, %v198
      %v202 = vadd.f32 %v201, 1e-06
      %v203 = vrcp.pop %v202
      %v204 = vmul.f32 %v202, %v203
      %v205 = vsub.f32 1.0, %v204
      %v206 = vmul.f32 %v203, %v205
      %v207 = vadd.f32 %v203, %v206
      %vm208 = vweird.f32 %v202
      %vm209 = vweird.f32 %v203
      %vm210 = vmor %vm208, %vm209
      %v211 = vsel %vm210, %v203, %v207
      %v212 = vand.u32 2147483647, %v202
      %vm213 = vcmp.eq.f32.partialorder %v212, 8.507059e+37
      %v214 = vand.u32 %v202, 2147483648
      %v215 = vor.u32 1.1754944e-38, %v214
      %v216 = vsel %vm213, %v215, %v211
      %v217 = vmul.f32 %v189, %v216
      %v218 = vld [vmem:[%s2] sm:$0x1]
      %v220 = vperm.slane %v218, 0
      %v222 = vadd.f32 %v217, %v220
      %223 = vst.msk [vmem:[%s165] sm:$0xff] %vm167, %v222
      %p224 = scmp.lt.s32.totalorder %s14, 1
      %s225 = scalar_select %p224, %s14, 1
      %s226 = smul.addr %s225, 8
      %s227 = scalar_lea.vmem %s3, %s226
      // Predicated region
      $region33: #{encoder_decoder_forward.40} parent=31 // pred_check
        %p228 = pneg %p100
      $region34: #{encoder_decoder_forward.40} parent=31 // pred_check_branch
        %230 = sbr.rel (%p228) target = $region36
      $region35: #{encoder_decoder_forward.40} parent=31 // pred_region
        _
      $region36: #{encoder_decoder_forward.40} parent=31 // pred_fallthru
        _
    $region32: #{encoder_decoder_forward.40} parent=5 // pred_fallthru
      _
    %p231 = scmp.le.s32.totalorder 2, %s9
    // Predicated region
    $region37: #{encoder_decoder_forward.40} parent=5 // pred_check
      %p232 = pneg %p231
    $region38: #{encoder_decoder_forward.40} parent=5 // pred_check_branch
      %234 = sbr.rel (%p232) target = $region40
    $region39: #{encoder_decoder_forward.40} parent=5 // pred_region
      %s235 = ssub.s32 %s9, 2
      // Predicated region
      $region41: #{encoder_decoder_forward.40} parent=39 // pred_check
        %p236 = pneg %p106
      $region42: #{encoder_decoder_forward.40} parent=39 // pred_check_branch
        %238 = sbr.rel (%p236) target = $region44
      $region43: #{encoder_decoder_forward.40} parent=39 // pred_region
        %p239 = scmp.lt.s32.totalorder %s15, 1
        %s240 = scalar_select %p239, %s15, 1
        %s241 = smul.addr %s240, 8
        %s242 = scalar_lea.vmem %s3, %s241
      $region44: #{encoder_decoder_forward.40} parent=39 // pred_fallthru
        _
    $region40: #{encoder_decoder_forward.40} parent=5 // pred_fallthru
      _
  $region6: #{encoder_decoder_forward.40} parent=0 // loop_footer
    %s13 = sadd.s32 1, %s9
  $region7: #{encoder_decoder_forward.40} parent=0 // loop_footer_branch
    %8 = sbr.rel target = $region3
  $region8: #{encoder_decoder_forward.40} parent=0 // loop_exit
    _

// kernel: encoder_decoder_forward.45
$region0: #{encoder_decoder_forward.45}
  #allocation0 [shape = 'u32[]', space=smem, size = 0x4, offset = 0x4, fixed_abs, tag = 'smem constant byte address 0x4 - core index']
  #allocation1 [shape = 'u32[72,128]{1,0:T(1,128)}', space=vmem, size = 0x9000, scoped, tag = 'internal scratch']
  %s0 = inlined_call_operand.vmem [shape: f32[16,32], index: 0, kind: input, shape index: {}]
  %s1 = inlined_call_operand.vmem [shape: bf16[32,64], index: 1, kind: input, shape index: {}]
  %s2 = inlined_call_operand.vmem [shape: f32[1,64], index: 2, kind: input, shape index: {}]
  %s3 = inlined_call_operand.vmem [shape: f32[16,64], index: 3, kind: output, shape index: {}]
  %s4 = sld [smem:[#allocation0]]
  $region45: #{encoder_decoder_forward.45} parent=0
    _
  %s6 = ssub.s32 1, %s4
  %s7 = scalar_select 0, %s6, %s4
  loop: start=0, step=1, limit=4
  $region2: #{encoder_decoder_forward.45} parent=0 // loop_pre_header
    _
  $region3: #{encoder_decoder_forward.45} parent=0 // loop_header
    %s9 = sphi 0, %s13
    %p10 = scmp.ge.s32.totalorder %s9, 4
    %s16 = sphi 0, %s28
    %s17 = sphi 0, %s24
    %s18 = sphi 0, %s16
    %s19 = sphi 0, %s17
    %s20 = sphi 0, %s18
    %s21 = sphi 0, %s19
    %s31 = sphi 0, %s33
    %s34 = sphi 0, %s31
    %s35 = sphi 0, %s34
    %s51 = sphi 0, %s35
    %s57 = sphi 0, %s59
    %s60 = sphi 0, %s57
    %s61 = sphi 0, %s60
    %s77 = sphi 0, %s61
    %s83 = sphi 0, %s85
    %s86 = sphi 0, %s83
    %s87 = sphi 0, %s86
    %s103 = sphi 0, %s87
    %s111 = sphi 0, %s113
    %s114 = sphi 0, %s111
    %s115 = sphi 0, %s114
    %s131 = sphi 0, %s115
  $region4: #{encoder_decoder_forward.45} parent=0 // loop_header_branch
    %12 = sbr.rel (%p10) target = $region8
  $region5: #{encoder_decoder_forward.45} parent=0 // loop_body
    %s14 = ssub.s32 %s9, 1
    %s15 = ssub.s32 %s9, 2
    %s22 = sadd.s32 1, %s17
    %p23 = scmp.ge.s32.totalorder %s22, 1
    %s24 = scalar_select %p23, 0, %s22
    %s25 = sadd.s32 1, %s16
    %s26 = scalar_select %p23, %s25, %s16
    %p27 = scmp.ge.s32.totalorder %s26, 2
    %s28 = scalar_select %p27, 0, %s26
    %s29 = ssub.s32 %s16, %s28
    %p30 = scmp.eq.s32.totalorder %s29, 0
    %s32 = sadd.s32 %s31, 1
    %s33 = scalar_select %p30, %s31, %s32
    %p36 = pneg %p30
    %p37 = scmp.eq.s32.totalorder %s9, 1
    %p38 = por %p36, %p37
    %p39 = scmp.ne.s32.totalorder %s31, %s34
    %p40 = scmp.eq.s32.totalorder %s9, 0
    %p41 = por %p39, %p40
    %p42 = scmp.ne.s32.totalorder %s31, %s34
    %p43 = scmp.eq.s32.totalorder %s14, 1
    %p44 = por %p42, %p43
    %p45 = scmp.ne.s32.totalorder %s34, %s35
    %p46 = scmp.eq.s32.totalorder %s14, 0
    %p47 = por %p45, %p46
    %p48 = scmp.ne.s32.totalorder %s34, %s35
    %p49 = scmp.eq.s32.totalorder %s15, 1
    %p50 = por %p48, %p49
    %p52 = scmp.ne.s32.totalorder %s35, %s51
    %p53 = scmp.eq.s32.totalorder %s15, 0
    %p54 = por %p52, %p53
    %s55 = ssub.s32 %s17, %s24
    %p56 = scmp.eq.s32.totalorder %s55, 0
    %s58 = sadd.s32 %s57, 1
    %s59 = scalar_select %p56, %s57, %s58
    %p62 = pneg %p56
    %p63 = scmp.eq.s32.totalorder %s9, 1
    %p64 = por %p62, %p63
    %p65 = scmp.ne.s32.totalorder %s57, %s60
    %p66 = scmp.eq.s32.totalorder %s9, 0
    %p67 = por %p65, %p66
    %p68 = scmp.ne.s32.totalorder %s57, %s60
    %p69 = scmp.eq.s32.totalorder %s14, 1
    %p70 = por %p68, %p69
    %p71 = scmp.ne.s32.totalorder %s60, %s61
    %p72 = scmp.eq.s32.totalorder %s14, 0
    %p73 = por %p71, %p72
    %p74 = scmp.ne.s32.totalorder %s60, %s61
    %p75 = scmp.eq.s32.totalorder %s15, 1
    %p76 = por %p74, %p75
    %p78 = scmp.ne.s32.totalorder %s61, %s77
    %p79 = scmp.eq.s32.totalorder %s15, 0
    %p80 = por %p78, %p79
    %s81 = ssub.s32 %s17, %s24
    %p82 = scmp.eq.s32.totalorder %s81, 0
    %s84 = sadd.s32 %s83, 1
    %s85 = scalar_select %p82, %s83, %s84
    %p88 = pneg %p82
    %p89 = scmp.eq.s32.totalorder %s9, 1
    %p90 = por %p88, %p89
    %p91 = scmp.ne.s32.totalorder %s83, %s86
    %p92 = scmp.eq.s32.totalorder %s9, 0
    %p93 = por %p91, %p92
    %p94 = scmp.ne.s32.totalorder %s83, %s86
    %p95 = scmp.eq.s32.totalorder %s14, 1
    %p96 = por %p94, %p95
    %p97 = scmp.ne.s32.totalorder %s86, %s87
    %p98 = scmp.eq.s32.totalorder %s14, 0
    %p99 = por %p97, %p98
    %p100 = scmp.ne.s32.totalorder %s86, %s87
    %p101 = scmp.eq.s32.totalorder %s15, 1
    %p102 = por %p100, %p101
    %p104 = scmp.ne.s32.totalorder %s87, %s103
    %p105 = scmp.eq.s32.totalorder %s15, 0
    %p106 = por %p104, %p105
    %s107 = ssub.s32 %s16, %s28
    %s108 = ssub.s32 %s17, %s24
    %s109 = sor.u32 %s107, %s108
    %p110 = scmp.eq.s32.totalorder %s109, 0
    %s112 = sadd.s32 %s111, 1
    %s113 = scalar_select %p110, %s111, %s112
    %p116 = pneg %p110
    %p117 = scmp.eq.s32.totalorder %s9, 1
    %p118 = por %p116, %p117
    %p119 = scmp.ne.s32.totalorder %s111, %s114
    %p120 = scmp.eq.s32.totalorder %s9, 0
    %p121 = por %p119, %p120
    %p122 = scmp.ne.s32.totalorder %s111, %s114
    %p123 = scmp.eq.s32.totalorder %s14, 1
    %p124 = por %p122, %p123
    %p125 = scmp.ne.s32.totalorder %s114, %s115
    %p126 = scmp.eq.s32.totalorder %s14, 0
    %p127 = por %p125, %p126
    %p128 = scmp.ne.s32.totalorder %s114, %s115
    %p129 = scmp.eq.s32.totalorder %s15, 1
    %p130 = por %p128, %p129
    %p132 = scmp.ne.s32.totalorder %s115, %s131
    %p133 = scmp.eq.s32.totalorder %s15, 0
    %p134 = por %p132, %p133
    %p135 = scmp.le.s32.totalorder 1, %s9
    %p136 = scmp.lt.s32.totalorder %s9, 3
    %p137 = pnand %p135, %p136
    %p138 = pneg %p137
    // Predicated region
    $region9: #{encoder_decoder_forward.45} parent=5 // pred_check
      _
    $region10: #{encoder_decoder_forward.45} parent=5 // pred_check_branch
      %140 = sbr.rel (%p137) target = $region12
    $region11: #{encoder_decoder_forward.45} parent=5 // pred_region
      %s141 = ssub.s32 %s9, 1
      // Predicated region
      $region13: #{encoder_decoder_forward.45} parent=11 // pred_check
        %p142 = pneg %p73
      $region14: #{encoder_decoder_forward.45} parent=11 // pred_check_branch
        %144 = sbr.rel (%p142) target = $region16
      $region15: #{encoder_decoder_forward.45} parent=11 // pred_region
        %p145 = scmp.lt.s32.totalorder %s19, 0
        %s146 = scalar_select %p145, %s19, 0
        %s147 = smul.addr %s146, 4
        %s148 = scalar_lea.vmem %s1, %s147
      $region16: #{encoder_decoder_forward.45} parent=11 // pred_fallthru
        _
      // Predicated region
      $region17: #{encoder_decoder_forward.45} parent=11 // pred_check
        %p149 = pneg %p99
      $region18: #{encoder_decoder_forward.45} parent=11 // pred_check_branch
        %151 = sbr.rel (%p149) target = $region20
      $region19: #{encoder_decoder_forward.45} parent=11 // pred_region
        %p152 = scmp.lt.s32.totalorder %s19, 0
        %s153 = scalar_select %p152, %s19, 0
        %s154 = scalar_lea.vmem %s2, %s153
      $region20: #{encoder_decoder_forward.45} parent=11 // pred_fallthru
        _
    $region12: #{encoder_decoder_forward.45} parent=5 // pred_fallthru
      _
    %p155 = scmp.lt.s32.totalorder %s9, 2
    // Predicated region
    $region21: #{encoder_decoder_forward.45} parent=5 // pred_check
      %p156 = pneg %p155
    $region22: #{encoder_decoder_forward.45} parent=5 // pred_check_branch
      %158 = sbr.rel (%p156) target = $region24
    $region23: #{encoder_decoder_forward.45} parent=5 // pred_region
      // Predicated region
      $region25: #{encoder_decoder_forward.45} parent=23 // pred_check
        %p159 = pneg %p41
      $region26: #{encoder_decoder_forward.45} parent=23 // pred_check_branch
        %161 = sbr.rel (%p159) target = $region28
      $region27: #{encoder_decoder_forward.45} parent=23 // pred_region
        %p162 = scmp.lt.s32.totalorder %s16, 1
        %s163 = scalar_select %p162, %s16, 1
        %s164 = smul.addr %s163, 8
        %s165 = scalar_lea.vmem %s0, %s164
      $region28: #{encoder_decoder_forward.45} parent=23 // pred_fallthru
        _
    $region24: #{encoder_decoder_forward.45} parent=5 // pred_fallthru
      _
    %p166 = scmp.le.s32.totalorder 1, %s9
    %p167 = scmp.lt.s32.totalorder %s9, 3
    %p168 = pnand %p166, %p167
    %p169 = pneg %p168
    // Predicated region
    $region29: #{encoder_decoder_forward.45} parent=5 // pred_check
      _
    $region30: #{encoder_decoder_forward.45} parent=5 // pred_check_branch
      %171 = sbr.rel (%p168) target = $region32
    $region31: #{encoder_decoder_forward.45} parent=5 // pred_region
      %s172 = ssub.s32 %s9, 1
      %p173 = scmp.lt.s32.totalorder %s18, 1
      %s174 = scalar_select %p173, %s18, 1
      %s175 = smul.addr %s174, 8
      %s176 = scalar_lea.vmem %s0, %s175
      %p177 = pneg %p47
      %p178 = pneg %p44
      %p179 = scmp.lt.s32.totalorder %s19, 0
      %s180 = scalar_select %p179, %s19, 0
      %s181 = smul.addr %s180, 4
      %s182 = scalar_lea.vmem %s1, %s181
      %p183 = pneg %p73
      %p184 = pneg %p70
      %p185 = scmp.lt.s32.totalorder %s19, 0
      %s186 = scalar_select %p185, %s19, 0
      %s187 = scalar_lea.vmem %s2, %s186
      %p188 = pneg %p99
      %p189 = pneg %p96
      %p190 = pneg %p127
      %p191 = pneg %p124
      %p192 = scmp.lt.s32.totalorder %s18, 1
      %s193 = scalar_select %p192, %s18, 1
      %p194 = scmp.lt.s32.totalorder %s19, 0
      %s195 = scalar_select %p194, %s19, 0
      %s196 = sadd.s32 %s195, %s193
      %s197 = smul.addr %s196, 8
      %s198 = scalar_lea.vmem %s3, %s197
      %p199 = scmp.lt.s32.totalorder %s18, 1
      %s200 = scalar_select %p199, %s18, 1
      %s201 = smul.addr %s200, 8
      %s202 = scalar_lea.vmem %s0, %s201
      %p203 = scmp.lt.s32.totalorder %s19, 0
      %s204 = scalar_select %p203, %s19, 0
      %s205 = smul.addr %s204, 4
      %s206 = scalar_lea.vmem %s1, %s205
      %p207 = scmp.lt.s32.totalorder %s19, 0
      %s208 = scalar_select %p207, %s19, 0
      %s209 = scalar_lea.vmem %s2, %s208
      %p210 = scmp.lt.s32.totalorder %s18, 1
      %s211 = scalar_select %p210, %s18, 1
      %p212 = scmp.lt.s32.totalorder %s19, 0
      %s213 = scalar_select %p212, %s19, 0
      %s214 = sadd.s32 %s213, %s211
      %s215 = smul.addr %s214, 8
      %s216 = scalar_lea.vmem %s3, %s215
      %v218 = vld [vmem:[%s202] sm:$0xff]
      %v219 = vpack.c.bf16 %v218, %v218
      %v220 = vld [vmem:[%s206] sm:$0xf]
      %v221 = vld [vmem:[%s206 + $0x4] sm:$0xf]
      %v222 = vld [vmem:[%s206 + $0x8] sm:$0xf]
      %v223 = vld [vmem:[%s206 + $0xc] sm:$0xf]
      %v224 = vld [vmem:[%s209] sm:$0x1]
      %v226 = vperm.slane %v224, 0
      %v232 = vunpack.c.l.b16 %v220
      %v233 = vunpack.c.l.b16 %v221
      %v234 = vunpack.c.l.b16 %v222
      %v235 = vunpack.c.l.b16 %v223
      %v236 = vpack.c.b16 %v233, %v232
      %v237 = vpack.c.b16 %v235, %v234
      %vm240 = vcmask 261120
      %v242 = vsel %vm240, %v219, 0
      %244 = vmatpush.bf16.msra.mxu0 0
      %245 = vmatpush.bf16.msra.mxu0 0
      %246 = vmatpush.bf16.msra.mxu0 0
      %247 = vmatpush.bf16.msra.mxu0 0
      %248 = vmatpush.bf16.msra.mxu0 0
      %249 = vmatpush.bf16.msra.mxu0 0
      %250 = vmatpush.bf16.msra.mxu0 %v237
      %251 = vmatpush.bf16.msra.mxu0 %v236
      %252 = vmatmul.bf16.gmra.mxu0 %v242
      %v253 = vpop.f32.mrf.mxu0
      %v254 = vadd.f32 %v226, %v253
      %v255 = vpop.f32.mrf.mxu0
      %256 = vdwg.mxu0
      %vm257 = vcmask 523264
      %258 = vst.msk [vmem:[%s216] sm:$0xff] %vm257, %v254
      %p259 = scmp.lt.s32.totalorder %s18, 1
      %s260 = scalar_select %p259, %s18, 1
      %p261 = scmp.lt.s32.totalorder %s19, 0
      %s262 = scalar_select %p261, %s19, 0
      %s263 = sadd.s32 %s262, %s260
      %s264 = smul.addr %s263, 8
      %s265 = scalar_lea.vmem %s3, %s264
      // Predicated region
      $region33: #{encoder_decoder_forward.45} parent=31 // pred_check
        %p266 = pneg %p124
      $region34: #{encoder_decoder_forward.45} parent=31 // pred_check_branch
        %268 = sbr.rel (%p266) target = $region36
      $region35: #{encoder_decoder_forward.45} parent=31 // pred_region
        _
      $region36: #{encoder_decoder_forward.45} parent=31 // pred_fallthru
        _
    $region32: #{encoder_decoder_forward.45} parent=5 // pred_fallthru
      _
    %p269 = scmp.le.s32.totalorder 2, %s9
    // Predicated region
    $region37: #{encoder_decoder_forward.45} parent=5 // pred_check
      %p270 = pneg %p269
    $region38: #{encoder_decoder_forward.45} parent=5 // pred_check_branch
      %272 = sbr.rel (%p270) target = $region40
    $region39: #{encoder_decoder_forward.45} parent=5 // pred_region
      %s273 = ssub.s32 %s9, 2
      // Predicated region
      $region41: #{encoder_decoder_forward.45} parent=39 // pred_check
        %p274 = pneg %p130
      $region42: #{encoder_decoder_forward.45} parent=39 // pred_check_branch
        %276 = sbr.rel (%p274) target = $region44
      $region43: #{encoder_decoder_forward.45} parent=39 // pred_region
        %p277 = scmp.lt.s32.totalorder %s20, 1
        %s278 = scalar_select %p277, %s20, 1
        %p279 = scmp.lt.s32.totalorder %s21, 0
        %s280 = scalar_select %p279, %s21, 0
        %s281 = sadd.s32 %s280, %s278
        %s282 = smul.addr %s281, 8
        %s283 = scalar_lea.vmem %s3, %s282
      $region44: #{encoder_decoder_forward.45} parent=39 // pred_fallthru
        _
    $region40: #{encoder_decoder_forward.45} parent=5 // pred_fallthru
      _
  $region6: #{encoder_decoder_forward.45} parent=0 // loop_footer
    %s13 = sadd.s32 1, %s9
  $region7: #{encoder_decoder_forward.45} parent=0 // loop_footer_branch
    %8 = sbr.rel target = $region3
  $region8: #{encoder_decoder_forward.45} parent=0 // loop_exit
    _

// kernel: encoder_decoder_forward.59
$region0: #{encoder_decoder_forward.59}
  #allocation0 [shape = 'u32[]', space=smem, size = 0x4, offset = 0x4, fixed_abs, tag = 'smem constant byte address 0x4 - core index']
  #allocation1 [shape = 'u32[72,128]{1,0:T(1,128)}', space=vmem, size = 0x9000, scoped, tag = 'internal scratch']
  %s0 = inlined_call_operand.vmem [shape: f32[16,32], index: 0, kind: input, shape index: {}]
  %s1 = inlined_call_operand.vmem [shape: f32[1,32], index: 1, kind: input, shape index: {}]
  %s2 = inlined_call_operand.vmem [shape: f32[1,32], index: 2, kind: input, shape index: {}]
  %s3 = inlined_call_operand.hbm [shape: f32[16,32], index: 3, kind: output, shape index: {}]
  %s4 = sld [smem:[#allocation0]]
  $region45: #{encoder_decoder_forward.59} parent=0
    _
  %s6 = ssub.s32 1, %s4
  %s7 = scalar_select 0, %s6, %s4
  $region1: #{encoder_decoder_forward.59} parent=0
    #allocation2 [shape = 'u8[8192]{0}', space=vmem, size = 0x2000, scoped, tag = 'output window, operand 0']
    #allocation3 [shape = 's32[2]{0}', space=sflag, size = 0x8, scoped, tag = 'scoped memory for encoder_decoder_forward.59']
    %8 = vsyncpa [#allocation3], 0
    %s9 = scalar_lea.sflag [#allocation3], 1
    %10 = vsyncpa %s9, 0
    loop: start=0, step=1, limit=4
    $region2: #{encoder_decoder_forward.59} parent=1 // loop_pre_header
      _
    $region3: #{encoder_decoder_forward.59} parent=1 // loop_header
      %s12 = sphi 0, %s16
      %p13 = scmp.ge.s32.totalorder %s12, 4
      %s22 = sphi 0, %s24
      %s25 = sphi 0, %s22
      %s26 = sphi 0, %s25
      %s42 = sphi 0, %s26
      %s46 = sphi 0, %s46
      %s48 = sphi 0, %s46
      %s49 = sphi 0, %s48
      %s63 = sphi 0, %s49
      %s67 = sphi 0, %s67
      %s69 = sphi 0, %s67
      %s70 = sphi 0, %s69
      %s84 = sphi 0, %s70
      %s90 = sphi 0, %s92
      %s93 = sphi 0, %s90
      %s94 = sphi 0, %s93
      %s110 = sphi 0, %s94
    $region4: #{encoder_decoder_forward.59} parent=1 // loop_header_branch
      %15 = sbr.rel (%p13) target = $region8
    $region5: #{encoder_decoder_forward.59} parent=1 // loop_body
      %s17 = ssub.s32 %s12, 1
      %s18 = ssub.s32 %s12, 2
      %s19 = sadd.s32 %s12, 1
      %s20 = ssub.s32 %s12, %s19
      %p21 = scmp.eq.s32.totalorder %s20, 0
      %s23 = sadd.s32 %s22, 1
      %s24 = scalar_select %p21, %s22, %s23
      %p27 = pneg %p21
      %p28 = scmp.eq.s32.totalorder %s12, 1
      %p29 = por %p27, %p28
      %p30 = scmp.ne.s32.totalorder %s22, %s25
      %p31 = scmp.eq.s32.totalorder %s12, 0
      %p32 = por %p30, %p31
      %p33 = scmp.ne.s32.totalorder %s22, %s25
      %p34 = scmp.eq.s32.totalorder %s17, 1
      %p35 = por %p33, %p34
      %p36 = scmp.ne.s32.totalorder %s25, %s26
      %p37 = scmp.eq.s32.totalorder %s17, 0
      %p38 = por %p36, %p37
      %p39 = scmp.ne.s32.totalorder %s25, %s26
      %p40 = scmp.eq.s32.totalorder %s18, 1
      %p41 = por %p39, %p40
      %p43 = scmp.ne.s32.totalorder %s26, %s42
      %p44 = scmp.eq.s32.totalorder %s18, 0
      %p45 = por %p43, %p44
      %s47 = sadd.s32 %s46, 1
      %p50 = scmp.eq.s32.totalorder %s12, 1
      %p51 = scmp.ne.s32.totalorder %s46, %s48
      %p52 = scmp.eq.s32.totalorder %s12, 0
      %p53 = por %p51, %p52
      %p54 = scmp.ne.s32.totalorder %s46, %s48
      %p55 = scmp.eq.s32.totalorder %s17, 1
      %p56 = por %p54, %p55
      %p57 = scmp.ne.s32.totalorder %s48, %s49
      %p58 = scmp.eq.s32.totalorder %s17, 0
      %p59 = por %p57, %p58
      %p60 = scmp.ne.s32.totalorder %s48, %s49
      %p61 = scmp.eq.s32.totalorder %s18, 1
      %p62 = por %p60, %p61
      %p64 = scmp.ne.s32.totalorder %s49, %s63
      %p65 = scmp.eq.s32.totalorder %s18, 0
      %p66 = por %p64, %p65
      %s68 = sadd.s32 %s67, 1
      %p71 = scmp.eq.s32.totalorder %s12, 1
      %p72 = scmp.ne.s32.totalorder %s67, %s69
      %p73 = scmp.eq.s32.totalorder %s12, 0
      %p74 = por %p72, %p73
      %p75 = scmp.ne.s32.totalorder %s67, %s69
      %p76 = scmp.eq.s32.totalorder %s17, 1
      %p77 = por %p75, %p76
      %p78 = scmp.ne.s32.totalorder %s69, %s70
      %p79 = scmp.eq.s32.totalorder %s17, 0
      %p80 = por %p78, %p79
      %p81 = scmp.ne.s32.totalorder %s69, %s70
      %p82 = scmp.eq.s32.totalorder %s18, 1
      %p83 = por %p81, %p82
      %p85 = scmp.ne.s32.totalorder %s70, %s84
      %p86 = scmp.eq.s32.totalorder %s18, 0
      %p87 = por %p85, %p86
      %s88 = ssub.s32 %s12, %s19
      %p89 = scmp.eq.s32.totalorder %s88, 0
      %s91 = sadd.s32 %s90, 1
      %s92 = scalar_select %p89, %s90, %s91
      %p95 = pneg %p89
      %p96 = scmp.eq.s32.totalorder %s12, 1
      %p97 = por %p95, %p96
      %p98 = scmp.ne.s32.totalorder %s90, %s93
      %p99 = scmp.eq.s32.totalorder %s12, 0
      %p100 = por %p98, %p99
      %p101 = scmp.ne.s32.totalorder %s90, %s93
      %p102 = scmp.eq.s32.totalorder %s17, 1
      %p103 = por %p101, %p102
      %p104 = scmp.ne.s32.totalorder %s93, %s94
      %p105 = scmp.eq.s32.totalorder %s17, 0
      %p106 = por %p104, %p105
      %p107 = scmp.ne.s32.totalorder %s93, %s94
      %p108 = scmp.eq.s32.totalorder %s18, 1
      %p109 = por %p107, %p108
      %p111 = scmp.ne.s32.totalorder %s94, %s110
      %p112 = scmp.eq.s32.totalorder %s18, 0
      %p113 = por %p111, %p112
      %p114 = scmp.le.s32.totalorder 1, %s12
      %p115 = scmp.lt.s32.totalorder %s12, 3
      %p116 = pnand %p114, %p115
      %p117 = pneg %p116
      // Predicated region
      $region9: #{encoder_decoder_forward.59} parent=5 // pred_check
        _
      $region10: #{encoder_decoder_forward.59} parent=5 // pred_check_branch
        %119 = sbr.rel (%p116) target = $region12
      $region11: #{encoder_decoder_forward.59} parent=5 // pred_region
        %s120 = ssub.s32 %s12, 1
        // Predicated region
        $region13: #{encoder_decoder_forward.59} parent=11 // pred_check
          %p121 = pneg %p59
        $region14: #{encoder_decoder_forward.59} parent=11 // pred_check_branch
          %123 = sbr.rel (%p121) target = $region16
        $region15: #{encoder_decoder_forward.59} parent=11 // pred_region
          _
        $region16: #{encoder_decoder_forward.59} parent=11 // pred_fallthru
          _
        // Predicated region
        $region17: #{encoder_decoder_forward.59} parent=11 // pred_check
          %p124 = pneg %p80
        $region18: #{encoder_decoder_forward.59} parent=11 // pred_check_branch
          %126 = sbr.rel (%p124) target = $region20
        $region19: #{encoder_decoder_forward.59} parent=11 // pred_region
          _
        $region20: #{encoder_decoder_forward.59} parent=11 // pred_fallthru
          _
      $region12: #{encoder_decoder_forward.59} parent=5 // pred_fallthru
        _
      %p127 = scmp.lt.s32.totalorder %s12, 2
      // Predicated region
      $region21: #{encoder_decoder_forward.59} parent=5 // pred_check
        %p128 = pneg %p127
      $region22: #{encoder_decoder_forward.59} parent=5 // pred_check_branch
        %130 = sbr.rel (%p128) target = $region24
      $region23: #{encoder_decoder_forward.59} parent=5 // pred_region
        // Predicated region
        $region25: #{encoder_decoder_forward.59} parent=23 // pred_check
          %p131 = pneg %p32
        $region26: #{encoder_decoder_forward.59} parent=23 // pred_check_branch
          %133 = sbr.rel (%p131) target = $region28
        $region27: #{encoder_decoder_forward.59} parent=23 // pred_region
          %p134 = scmp.lt.s32.totalorder %s12, 1
          %s135 = scalar_select %p134, %s12, 1
          %s136 = smul.addr %s135, 8
          %s137 = scalar_lea.vmem %s0, %s136
        $region28: #{encoder_decoder_forward.59} parent=23 // pred_fallthru
          _
      $region24: #{encoder_decoder_forward.59} parent=5 // pred_fallthru
        _
      %p138 = scmp.le.s32.totalorder 1, %s12
      %p139 = scmp.lt.s32.totalorder %s12, 3
      %p140 = pnand %p138, %p139
      %p141 = pneg %p140
      // Predicated region
      $region29: #{encoder_decoder_forward.59} parent=5 // pred_check
        _
      $region30: #{encoder_decoder_forward.59} parent=5 // pred_check_branch
        %143 = sbr.rel (%p140) target = $region32
      $region31: #{encoder_decoder_forward.59} parent=5 // pred_region
        %s144 = ssub.s32 %s12, 1
        %p145 = scmp.lt.s32.totalorder %s17, 1
        %s146 = scalar_select %p145, %s17, 1
        %s147 = smul.addr %s146, 8
        %s148 = scalar_lea.vmem %s0, %s147
        %p149 = pneg %p38
        %p150 = pneg %p35
        %p151 = pneg %p59
        %p152 = pneg %p56
        %p153 = pneg %p80
        %p154 = pneg %p77
        %p155 = pneg %p106
        %p156 = pneg %p103
        %s157 = sand.u32 %s93, 1
        %s158 = scalar_lea.sflag [#allocation3], %s157
        %s159 = sand.u32 %s93, 1
        %s160 = smul.addr %s159, 8
        %s161 = scalar_lea.vmem [#allocation2], %s160
        %p162 = scmp.lt.s32.totalorder %s17, 1
        %s163 = scalar_select %p162, %s17, 1
        %s164 = smul.addr %s163, 8
        %s165 = scalar_lea.vmem %s0, %s164
        %v166 = vld [vmem:[%s165] sm:$0xff]
        %vm167 = vcmask 261120
        %v168 = vsel %vm167, %v166, 0.0
        %169 = vadd.xlane.f32.xlu0 %v168
        %v170 = vpop.xlane.xlu0 %169
        %v171 = vrcp.pop 32.0
        %v172 = vmul.f32 32.0, %v171
        %v173 = vsub.f32 1.0, %v172
        %v174 = vmul.f32 %v171, %v173
        %v175 = vadd.f32 %v171, %v174
        %vm176 = vweird.f32 %v171
        %v177 = vsel %vm176, %v171, %v175
        %v178 = vmul.f32 %v170, %v177
        %v179 = vsub.f32 %v166, %v178
        %v180 = vmul.f32 %v179, %v179
        %v181 = vsel %vm167, %v180, 0.0
        %182 = vadd.xlane.f32.xlu0 %v181
        %v183 = vpop.xlane.xlu0 %182
        %v184 = vmul.f32 %v183, 0.032258064
        %v185 = vld [vmem:[%s1] sm:$0x1]
        %v187 = vperm.slane %v185, 0
        %v189 = vmul.f32 %v187, %v179
        %v190 = vrsqrt.pop %v184
        %v191 = vmul.f32 %v190, %v184
        %v192 = vmul.f32 %v191, %v190
        %v193 = vmul.f32 0.5, %v192
        %v194 = vsub.f32 1.5, %v193
        %v195 = vmul.f32 %v190, %v194
        %v196 = vmul.f32 %v184, %v195
        %vm197 = vcmp.eq.f32.partialorder %v184, inf
        %v198 = vsel %vm197, %v184, %v196
        %vm199 = vcmp.eq.f32.partialorder %v184, 0.0
        %v200 = vand.u32 %v184, 2147483648
        %v201 = vsel %vm199, %v200, %v198
        %v202 = vadd.f32 %v201, 1e-06
        %v203 = vrcp.pop %v202
        %v204 = vmul.f32 %v202, %v203
        %v205 = vsub.f32 1.0, %v204
        %v206 = vmul.f32 %v203, %v205
        %v207 = vadd.f32 %v203, %v206
        %vm208 = vweird.f32 %v202
        %vm209 = vweird.f32 %v203
        %vm210 = vmor %vm208, %vm209
        %v211 = vsel %vm210, %v203, %v207
        %v212 = vand.u32 2147483647, %v202
        %vm213 = vcmp.eq.f32.partialorder %v212, 8.507059e+37
        %v214 = vand.u32 %v202, 2147483648
        %v215 = vor.u32 1.1754944e-38, %v214
        %v216 = vsel %vm213, %v215, %v211
        %v217 = vmul.f32 %v189, %v216
        %v218 = vld [vmem:[%s2] sm:$0x1]
        %v220 = vperm.slane %v218, 0
        %v222 = vadd.f32 %v217, %v220
        %223 = vst.msk [vmem:[%s161] sm:$0xff] %vm167, %v222
        %s224 = sand.u32 %s93, 1
        %s225 = scalar_lea.sflag [#allocation3], %s224
        %s226 = sand.u32 %s93, 1
        %s227 = smul.addr %s226, 8
        %s228 = scalar_lea.vmem [#allocation2], %s227
        // Predicated region
        $region33: #{encoder_decoder_forward.59} parent=31 // pred_check
          %p229 = pneg %p103
        $region34: #{encoder_decoder_forward.59} parent=31 // pred_check_branch
          %231 = sbr.rel (%p229) target = $region36
        $region35: #{encoder_decoder_forward.59} parent=31 // pred_region
          %233 = vsyncadd %s225, 0
          %s234 = smul.addr %s17, 8
          %s235 = scalar_lea.hbm %s3, %s234
          %s237 = sshll.u32 %s228, 4
          %s238 = int_to_ptr.vmem [resolvable:$true] %s237
          %s239 = sshll.u32 %s235, 4
          %s240 = int_to_ptr.hbm [resolvable:$true] %s239
          %242 = dma.vmem_to_hbm [thread:$0]  %s238, 128, %s240, %s225
        $region36: #{encoder_decoder_forward.59} parent=31 // pred_fallthru
          _
      $region32: #{encoder_decoder_forward.59} parent=5 // pred_fallthru
        _
      %p243 = scmp.le.s32.totalorder 2, %s12
      // Predicated region
      $region37: #{encoder_decoder_forward.59} parent=5 // pred_check
        %p244 = pneg %p243
      $region38: #{encoder_decoder_forward.59} parent=5 // pred_check_branch
        %246 = sbr.rel (%p244) target = $region40
      $region39: #{encoder_decoder_forward.59} parent=5 // pred_region
        %s247 = ssub.s32 %s12, 2
        // Predicated region
        $region41: #{encoder_decoder_forward.59} parent=39 // pred_check
          %p248 = pneg %p109
        $region42: #{encoder_decoder_forward.59} parent=39 // pred_check_branch
          %250 = sbr.rel (%p248) target = $region44
        $region43: #{encoder_decoder_forward.59} parent=39 // pred_region
          %s251 = sand.u32 %s94, 1
          %s252 = scalar_lea.sflag [#allocation3], %s251
          %s253 = sand.u32 %s94, 1
          %s254 = smul.addr %s253, 8
          %s255 = scalar_lea.vmem [#allocation2], %s254
          %257 = dma.done %s252, 128
        $region44: #{encoder_decoder_forward.59} parent=39 // pred_fallthru
          _
      $region40: #{encoder_decoder_forward.59} parent=5 // pred_fallthru
        _
    $region6: #{encoder_decoder_forward.59} parent=1 // loop_footer
      %s16 = sadd.s32 1, %s12
    $region7: #{encoder_decoder_forward.59} parent=1 // loop_footer_branch
      %11 = sbr.rel target = $region3
    $region8: #{encoder_decoder_forward.59} parent=1 // loop_exit
      _
    %258 = vsyncpa [#allocation3], 1
    %s259 = scalar_lea.sflag [#allocation3], 1
    %260 = vsyncpa %s259, 1

// kernel: encoder_decoder_forward.31
$region0: #{encoder_decoder_forward.31}
  #allocation0 [shape = 'u32[]', space=smem, size = 0x4, offset = 0x4, fixed_abs, tag = 'smem constant byte address 0x4 - core index']
  #allocation1 [shape = 'u32[72,128]{1,0:T(1,128)}', space=vmem, size = 0x9000, scoped, tag = 'internal scratch']
  %s0 = inlined_call_operand.vmem [shape: f32[2,8,32], index: 0, kind: input, shape index: {}]
  %s1 = inlined_call_operand.vmem [shape: f32[2,8,32], index: 1, kind: input, shape index: {}]
  %s2 = inlined_call_operand.vmem [shape: f32[2,8,32], index: 2, kind: input, shape index: {}]
  %s3 = inlined_call_operand.vmem [shape: f32[2,1,8], index: 3, kind: input, shape index: {}]
  %s4 = inlined_call_operand.vmem [shape: f32[2,8,32], index: 4, kind: output, shape index: {}]
  %s5 = sld [smem:[#allocation0]]
  $region49: #{encoder_decoder_forward.31} parent=0
    _
  %s7 = ssub.s32 1, %s5
  %s8 = scalar_select 0, %s7, %s5
  loop: start=0, step=1, limit=4
  $region2: #{encoder_decoder_forward.31} parent=0 // loop_pre_header
    _
  $region3: #{encoder_decoder_forward.31} parent=0 // loop_header
    %s10 = sphi 0, %s14
    %p11 = scmp.ge.s32.totalorder %s10, 4
    %s20 = sphi 0, %s22
    %s23 = sphi 0, %s20
    %s24 = sphi 0, %s23
    %s40 = sphi 0, %s24
    %s46 = sphi 0, %s48
    %s49 = sphi 0, %s46
    %s50 = sphi 0, %s49
    %s66 = sphi 0, %s50
    %s72 = sphi 0, %s74
    %s75 = sphi 0, %s72
    %s76 = sphi 0, %s75
    %s92 = sphi 0, %s76
    %s98 = sphi 0, %s100
    %s101 = sphi 0, %s98
    %s102 = sphi 0, %s101
    %s118 = sphi 0, %s102
    %s124 = sphi 0, %s126
    %s127 = sphi 0, %s124
    %s128 = sphi 0, %s127
    %s144 = sphi 0, %s128
  $region4: #{encoder_decoder_forward.31} parent=0 // loop_header_branch
    %13 = sbr.rel (%p11) target = $region8
  $region5: #{encoder_decoder_forward.31} parent=0 // loop_body
    %s15 = ssub.s32 %s10, 1
    %s16 = ssub.s32 %s10, 2
    %s17 = sadd.s32 %s10, 1
    %s18 = ssub.s32 %s10, %s17
    %p19 = scmp.eq.s32.totalorder %s18, 0
    %s21 = sadd.s32 %s20, 1
    %s22 = scalar_select %p19, %s20, %s21
    %p25 = pneg %p19
    %p26 = scmp.eq.s32.totalorder %s10, 1
    %p27 = por %p25, %p26
    %p28 = scmp.ne.s32.totalorder %s20, %s23
    %p29 = scmp.eq.s32.totalorder %s10, 0
    %p30 = por %p28, %p29
    %p31 = scmp.ne.s32.totalorder %s20, %s23
    %p32 = scmp.eq.s32.totalorder %s15, 1
    %p33 = por %p31, %p32
    %p34 = scmp.ne.s32.totalorder %s23, %s24
    %p35 = scmp.eq.s32.totalorder %s15, 0
    %p36 = por %p34, %p35
    %p37 = scmp.ne.s32.totalorder %s23, %s24
    %p38 = scmp.eq.s32.totalorder %s16, 1
    %p39 = por %p37, %p38
    %p41 = scmp.ne.s32.totalorder %s24, %s40
    %p42 = scmp.eq.s32.totalorder %s16, 0
    %p43 = por %p41, %p42
    %s44 = ssub.s32 %s10, %s17
    %p45 = scmp.eq.s32.totalorder %s44, 0
    %s47 = sadd.s32 %s46, 1
    %s48 = scalar_select %p45, %s46, %s47
    %p51 = pneg %p45
    %p52 = scmp.eq.s32.totalorder %s10, 1
    %p53 = por %p51, %p52
    %p54 = scmp.ne.s32.totalorder %s46, %s49
    %p55 = scmp.eq.s32.totalorder %s10, 0
    %p56 = por %p54, %p55
    %p57 = scmp.ne.s32.totalorder %s46, %s49
    %p58 = scmp.eq.s32.totalorder %s15, 1
    %p59 = por %p57, %p58
    %p60 = scmp.ne.s32.totalorder %s49, %s50
    %p61 = scmp.eq.s32.totalorder %s15, 0
    %p62 = por %p60, %p61
    %p63 = scmp.ne.s32.totalorder %s49, %s50
    %p64 = scmp.eq.s32.totalorder %s16, 1
    %p65 = por %p63, %p64
    %p67 = scmp.ne.s32.totalorder %s50, %s66
    %p68 = scmp.eq.s32.totalorder %s16, 0
    %p69 = por %p67, %p68
    %s70 = ssub.s32 %s10, %s17
    %p71 = scmp.eq.s32.totalorder %s70, 0
    %s73 = sadd.s32 %s72, 1
    %s74 = scalar_select %p71, %s72, %s73
    %p77 = pneg %p71
    %p78 = scmp.eq.s32.totalorder %s10, 1
    %p79 = por %p77, %p78
    %p80 = scmp.ne.s32.totalorder %s72, %s75
    %p81 = scmp.eq.s32.totalorder %s10, 0
    %p82 = por %p80, %p81
    %p83 = scmp.ne.s32.totalorder %s72, %s75
    %p84 = scmp.eq.s32.totalorder %s15, 1
    %p85 = por %p83, %p84
    %p86 = scmp.ne.s32.totalorder %s75, %s76
    %p87 = scmp.eq.s32.totalorder %s15, 0
    %p88 = por %p86, %p87
    %p89 = scmp.ne.s32.totalorder %s75, %s76
    %p90 = scmp.eq.s32.totalorder %s16, 1
    %p91 = por %p89, %p90
    %p93 = scmp.ne.s32.totalorder %s76, %s92
    %p94 = scmp.eq.s32.totalorder %s16, 0
    %p95 = por %p93, %p94
    %s96 = ssub.s32 %s10, %s17
    %p97 = scmp.eq.s32.totalorder %s96, 0
    %s99 = sadd.s32 %s98, 1
    %s100 = scalar_select %p97, %s98, %s99
    %p103 = pneg %p97
    %p104 = scmp.eq.s32.totalorder %s10, 1
    %p105 = por %p103, %p104
    %p106 = scmp.ne.s32.totalorder %s98, %s101
    %p107 = scmp.eq.s32.totalorder %s10, 0
    %p108 = por %p106, %p107
    %p109 = scmp.ne.s32.totalorder %s98, %s101
    %p110 = scmp.eq.s32.totalorder %s15, 1
    %p111 = por %p109, %p110
    %p112 = scmp.ne.s32.totalorder %s101, %s102
    %p113 = scmp.eq.s32.totalorder %s15, 0
    %p114 = por %p112, %p113
    %p115 = scmp.ne.s32.totalorder %s101, %s102
    %p116 = scmp.eq.s32.totalorder %s16, 1
    %p117 = por %p115, %p116
    %p119 = scmp.ne.s32.totalorder %s102, %s118
    %p120 = scmp.eq.s32.totalorder %s16, 0
    %p121 = por %p119, %p120
    %s122 = ssub.s32 %s10, %s17
    %p123 = scmp.eq.s32.totalorder %s122, 0
    %s125 = sadd.s32 %s124, 1
    %s126 = scalar_select %p123, %s124, %s125
    %p129 = pneg %p123
    %p130 = scmp.eq.s32.totalorder %s10, 1
    %p131 = por %p129, %p130
    %p132 = scmp.ne.s32.totalorder %s124, %s127
    %p133 = scmp.eq.s32.totalorder %s10, 0
    %p134 = por %p132, %p133
    %p135 = scmp.ne.s32.totalorder %s124, %s127
    %p136 = scmp.eq.s32.totalorder %s15, 1
    %p137 = por %p135, %p136
    %p138 = scmp.ne.s32.totalorder %s127, %s128
    %p139 = scmp.eq.s32.totalorder %s15, 0
    %p140 = por %p138, %p139
    %p141 = scmp.ne.s32.totalorder %s127, %s128
    %p142 = scmp.eq.s32.totalorder %s16, 1
    %p143 = por %p141, %p142
    %p145 = scmp.ne.s32.totalorder %s128, %s144
    %p146 = scmp.eq.s32.totalorder %s16, 0
    %p147 = por %p145, %p146
    %p148 = scmp.le.s32.totalorder 1, %s10
    %p149 = scmp.lt.s32.totalorder %s10, 3
    %p150 = pnand %p148, %p149
    %p151 = pneg %p150
    // Predicated region
    $region9: #{encoder_decoder_forward.31} parent=5 // pred_check
      _
    $region10: #{encoder_decoder_forward.31} parent=5 // pred_check_branch
      %153 = sbr.rel (%p150) target = $region12
    $region11: #{encoder_decoder_forward.31} parent=5 // pred_region
      %s154 = ssub.s32 %s10, 1
    $region12: #{encoder_decoder_forward.31} parent=5 // pred_fallthru
      _
    %p155 = scmp.lt.s32.totalorder %s10, 2
    // Predicated region
    $region13: #{encoder_decoder_forward.31} parent=5 // pred_check
      %p156 = pneg %p155
    $region14: #{encoder_decoder_forward.31} parent=5 // pred_check_branch
      %158 = sbr.rel (%p156) target = $region16
    $region15: #{encoder_decoder_forward.31} parent=5 // pred_region
      // Predicated region
      $region17: #{encoder_decoder_forward.31} parent=15 // pred_check
        %p159 = pneg %p30
      $region18: #{encoder_decoder_forward.31} parent=15 // pred_check_branch
        %161 = sbr.rel (%p159) target = $region20
      $region19: #{encoder_decoder_forward.31} parent=15 // pred_region
        %p162 = scmp.lt.s32.totalorder %s10, 1
        %s163 = scalar_select %p162, %s10, 1
        %s164 = smul.addr %s163, 8
        %s165 = scalar_lea.vmem %s0, %s164
      $region20: #{encoder_decoder_forward.31} parent=15 // pred_fallthru
        _
      // Predicated region
      $region21: #{encoder_decoder_forward.31} parent=15 // pred_check
        %p166 = pneg %p56
      $region22: #{encoder_decoder_forward.31} parent=15 // pred_check_branch
        %168 = sbr.rel (%p166) target = $region24
      $region23: #{encoder_decoder_forward.31} parent=15 // pred_region
        %p169 = scmp.lt.s32.totalorder %s10, 1
        %s170 = scalar_select %p169, %s10, 1
        %s171 = smul.addr %s170, 8
        %s172 = scalar_lea.vmem %s1, %s171
      $region24: #{encoder_decoder_forward.31} parent=15 // pred_fallthru
        _
      // Predicated region
      $region25: #{encoder_decoder_forward.31} parent=15 // pred_check
        %p173 = pneg %p82
      $region26: #{encoder_decoder_forward.31} parent=15 // pred_check_branch
        %175 = sbr.rel (%p173) target = $region28
      $region27: #{encoder_decoder_forward.31} parent=15 // pred_region
        %p176 = scmp.lt.s32.totalorder %s10, 1
        %s177 = scalar_select %p176, %s10, 1
        %s178 = smul.addr %s177, 8
        %s179 = scalar_lea.vmem %s2, %s178
      $region28: #{encoder_decoder_forward.31} parent=15 // pred_fallthru
        _
      // Predicated region
      $region29: #{encoder_decoder_forward.31} parent=15 // pred_check
        %p180 = pneg %p108
      $region30: #{encoder_decoder_forward.31} parent=15 // pred_check_branch
        %182 = sbr.rel (%p180) target = $region32
      $region31: #{encoder_decoder_forward.31} parent=15 // pred_region
        %p183 = scmp.lt.s32.totalorder %s10, 1
        %s184 = scalar_select %p183, %s10, 1
        %s185 = scalar_lea.vmem %s3, %s184
      $region32: #{encoder_decoder_forward.31} parent=15 // pred_fallthru
        _
    $region16: #{encoder_decoder_forward.31} parent=5 // pred_fallthru
      _
    %p186 = scmp.le.s32.totalorder 1, %s10
    %p187 = scmp.lt.s32.totalorder %s10, 3
    %p188 = pnand %p186, %p187
    %p189 = pneg %p188
    // Predicated region
    $region33: #{encoder_decoder_forward.31} parent=5 // pred_check
      _
    $region34: #{encoder_decoder_forward.31} parent=5 // pred_check_branch
      %191 = sbr.rel (%p188) target = $region36
    $region35: #{encoder_decoder_forward.31} parent=5 // pred_region
      %s192 = ssub.s32 %s10, 1
      %p193 = scmp.lt.s32.totalorder %s15, 1
      %s194 = scalar_select %p193, %s15, 1
      %s195 = smul.addr %s194, 8
      %s196 = scalar_lea.vmem %s0, %s195
      %p197 = pneg %p36
      %p198 = pneg %p33
      %p199 = scmp.lt.s32.totalorder %s15, 1
      %s200 = scalar_select %p199, %s15, 1
      %s201 = smul.addr %s200, 8
      %s202 = scalar_lea.vmem %s1, %s201
      %p203 = pneg %p62
      %p204 = pneg %p59
      %p205 = scmp.lt.s32.totalorder %s15, 1
      %s206 = scalar_select %p205, %s15, 1
      %s207 = smul.addr %s206, 8
      %s208 = scalar_lea.vmem %s2, %s207
      %p209 = pneg %p88
      %p210 = pneg %p85
      %p211 = scmp.lt.s32.totalorder %s15, 1
      %s212 = scalar_select %p211, %s15, 1
      %s213 = scalar_lea.vmem %s3, %s212
      %p214 = pneg %p114
      %p215 = pneg %p111
      %p216 = pneg %p140
      %p217 = pneg %p137
      %p218 = scmp.lt.s32.totalorder %s15, 1
      %s219 = scalar_select %p218, %s15, 1
      %s220 = smul.addr %s219, 8
      %s221 = scalar_lea.vmem %s4, %s220
      %p222 = scmp.lt.s32.totalorder %s15, 1
      %s223 = scalar_select %p222, %s15, 1
      %s224 = smul.addr %s223, 8
      %s225 = scalar_lea.vmem %s0, %s224
      %p226 = scmp.lt.s32.totalorder %s15, 1
      %s227 = scalar_select %p226, %s15, 1
      %s228 = smul.addr %s227, 8
      %s229 = scalar_lea.vmem %s1, %s228
      %p230 = scmp.lt.s32.totalorder %s15, 1
      %s231 = scalar_select %p230, %s15, 1
      %s232 = smul.addr %s231, 8
      %s233 = scalar_lea.vmem %s2, %s232
      %p234 = scmp.lt.s32.totalorder %s15, 1
      %s235 = scalar_select %p234, %s15, 1
      %s236 = scalar_lea.vmem %s3, %s235
      %p237 = scmp.lt.s32.totalorder %s15, 1
      %s238 = scalar_select %p237, %s15, 1
      %s239 = smul.addr %s238, 8
      %s240 = scalar_lea.vmem %s4, %s239
      %v242 = vld [vmem:[%s225] sm:$0xff]
      %v243 = vpack.c.bf16 %v242, %v242
      %v244 = vld [vmem:[%s229] sm:$0xff]
      %v245 = vpack.c.bf16 %v244, %v244
      %v246 = vld [vmem:[%s233] sm:$0xff]
      %v247 = vpack.c.bf16 %v246, %v246
      %v248 = vld [vmem:[%s236] sm:$0x1]
      %vm249 = vcmask 64512
      %v251 = vsel %vm249, %v243, 0
      %v254 = vsel %vm249, %v245, 0
      %256 = vmatpush.bf16.xpose.msra.mxu0 0
      %257 = vmatpush.bf16.xpose.msra.mxu0 0
      %258 = vmatpush.bf16.xpose.msra.mxu0 0
      %259 = vmatpush.bf16.xpose.msra.mxu0 0
      %260 = vmatpush.bf16.xpose.msra.mxu0 0
      %261 = vmatpush.bf16.xpose.msra.mxu0 0
      %262 = vmatpush.bf16.xpose.msra.mxu0 0
      %263 = vmatpush.bf16.xpose.msra.mxu0 %v254
      %264 = vmatmul.bf16.gmra.mxu0 %v251
      %v265 = vpop.f32.mrf.mxu0
      %v266 = vadd.f32 0.0, %v265
      %v267 = vpop.f32.mrf.mxu0
      %268 = vdwg.mxu0
      %v269 = vmul.f32 %v266, 0.35355338
      %vm270 = vcmp.lt.f32.partialorder %v248, 0.5
      %v271 = vsel %vm270, 1, 0
      %v272 = vperm.slane %v271, 0
      %vm273 = vcmp.eq.s32.totalorder %v272, 1
      %v274 = vsel %vm273, -1e+09, %v269
      %v275 = vsel %vm249, %v274, -inf
      %276 = vmax.xlane.f32.xlu0 %v275
      %v277 = vpop.xlane.xlu0 %276
      %v278 = vsub.f32 %v274, %v277
      %v279 = vmul.f32 %v278, 1.442695
      %v280 = vpow.pop %v279
      %v281 = vsel %vm249, %v280, 0.0
      %282 = vadd.xlane.f32.xlu0 %v281
      %v283 = vpop.xlane.xlu0 %282
      %v284 = vrcp.pop %v283
      %v285 = vmul.f32 %v280, %v284
      %v286 = vpack.c.bf16 %v285, %v285
      %v288 = vsel %vm249, %v286, 0
      %vm290 = vcmask 1043456
      %v292 = vsel %vm290, %v247, 0
      %294 = vmatpush.bf16.msra.mxu0 0
      %295 = vmatpush.bf16.msra.mxu0 0
      %296 = vmatpush.bf16.msra.mxu0 0
      %297 = vmatpush.bf16.msra.mxu0 0
      %298 = vmatpush.bf16.msra.mxu0 0
      %299 = vmatpush.bf16.msra.mxu0 0
      %300 = vmatpush.bf16.msra.mxu0 0
      %301 = vmatpush.bf16.msra.mxu0 %v292
      %302 = vmatmul.bf16.gmra.mxu0 %v288
      %v303 = vpop.f32.mrf.mxu0
      %v304 = vadd.f32 0.0, %v303
      %v305 = vpop.f32.mrf.mxu0
      %306 = vdwg.mxu0
      %v308 = vunpack.c.l.b16 %v243
      %v309 = vpack.c.b16 %v308, %v308
      %310 = vrot.lane.b32.xlu0 %v309, 120
      %v311 = vpop.permute.xlu0 %310
      %v313 = vunpack.c.l.b16 %v245
      %v314 = vpack.c.b16 %v313, %v313
      %315 = vrot.lane.b32.xlu0 %v314, 120
      %v316 = vpop.permute.xlu0 %315
      %v318 = vsel %vm249, %v311, 0
      %v321 = vsel %vm249, %v316, 0
      %323 = vmatpush.bf16.xpose.msra.mxu0 0
      %324 = vmatpush.bf16.xpose.msra.mxu0 0
      %325 = vmatpush.bf16.xpose.msra.mxu0 0
      %326 = vmatpush.bf16.xpose.msra.mxu0 0
      %327 = vmatpush.bf16.xpose.msra.mxu0 0
      %328 = vmatpush.bf16.xpose.msra.mxu0 0
      %329 = vmatpush.bf16.xpose.msra.mxu0 0
      %330 = vmatpush.bf16.xpose.msra.mxu0 %v321
      %331 = vmatmul.bf16.gmra.mxu0 %v318
      %v332 = vpop.f32.mrf.mxu0
      %v333 = vadd.f32 0.0, %v332
      %v334 = vpop.f32.mrf.mxu0
      %335 = vdwg.mxu0
      %v336 = vmul.f32 %v333, 0.35355338
      %v337 = vsel %vm273, -1e+09, %v336
      %v338 = vsel %vm249, %v337, -inf
      %339 = vmax.xlane.f32.xlu0 %v338
      %v340 = vpop.xlane.xlu0 %339
      %v341 = vsub.f32 %v337, %v340
      %v342 = vmul.f32 %v341, 1.442695
      %v343 = vpow.pop %v342
      %v344 = vsel %vm249, %v343, 0.0
      %345 = vadd.xlane.f32.xlu0 %v344
      %v346 = vpop.xlane.xlu0 %345
      %v347 = vrcp.pop %v346
      %v348 = vmul.f32 %v343, %v347
      %v349 = vpack.c.bf16 %v348, %v348
      %v351 = vunpack.c.l.b16 %v247
      %v352 = vpack.c.b16 %v351, %v351
      %353 = vrot.lane.b32.xlu0 %v352, 120
      %v354 = vpop.permute.xlu0 %353
      %v356 = vsel %vm249, %v349, 0
      %v359 = vsel %vm290, %v354, 0
      %361 = vmatpush.bf16.msra.mxu0 0
      %362 = vmatpush.bf16.msra.mxu0 0
      %363 = vmatpush.bf16.msra.mxu0 0
      %364 = vmatpush.bf16.msra.mxu0 0
      %365 = vmatpush.bf16.msra.mxu0 0
      %366 = vmatpush.bf16.msra.mxu0 0
      %367 = vmatpush.bf16.msra.mxu0 0
      %368 = vmatpush.bf16.msra.mxu0 %v359
      %369 = vmatmul.bf16.gmra.mxu0 %v356
      %v370 = vpop.f32.mrf.mxu0
      %v371 = vadd.f32 0.0, %v370
      %v372 = vpop.f32.mrf.mxu0
      %373 = vdwg.mxu0
      %374 = vrot.lane.b32.xlu0 %v309, 112
      %v375 = vpop.permute.xlu0 %374
      %376 = vrot.lane.b32.xlu0 %v314, 112
      %v377 = vpop.permute.xlu0 %376
      %v379 = vsel %vm249, %v375, 0
      %v382 = vsel %vm249, %v377, 0
      %384 = vmatpush.bf16.xpose.msra.mxu0 0
      %385 = vmatpush.bf16.xpose.msra.mxu0 0
      %386 = vmatpush.bf16.xpose.msra.mxu0 0
      %387 = vmatpush.bf16.xpose.msra.mxu0 0
      %388 = vmatpush.bf16.xpose.msra.mxu0 0
      %389 = vmatpush.bf16.xpose.msra.mxu0 0
      %390 = vmatpush.bf16.xpose.msra.mxu0 0
      %391 = vmatpush.bf16.xpose.msra.mxu0 %v382
      %392 = vmatmul.bf16.gmra.mxu0 %v379
      %v393 = vpop.f32.mrf.mxu0
      %v394 = vadd.f32 0.0, %v393
      %v395 = vpop.f32.mrf.mxu0
      %396 = vdwg.mxu0
      %v397 = vmul.f32 %v394, 0.35355338
      %v398 = vsel %vm273, -1e+09, %v397
      %v399 = vsel %vm249, %v398, -inf
      %400 = vmax.xlane.f32.xlu0 %v399
      %v401 = vpop.xlane.xlu0 %400
      %v402 = vsub.f32 %v398, %v401
      %v403 = vmul.f32 %v402, 1.442695
      %v404 = vpow.pop %v403
      %v405 = vsel %vm249, %v404, 0.0
      %406 = vadd.xlane.f32.xlu0 %v405
      %v407 = vpop.xlane.xlu0 %406
      %v408 = vrcp.pop %v407
      %v409 = vmul.f32 %v404, %v408
      %v410 = vpack.c.bf16 %v409, %v409
      %411 = vrot.lane.b32.xlu0 %v352, 112
      %v412 = vpop.permute.xlu0 %411
      %v414 = vsel %vm249, %v410, 0
      %v417 = vsel %vm290, %v412, 0
      %419 = vmatpush.bf16.msra.mxu0 0
      %420 = vmatpush.bf16.msra.mxu0 0
      %421 = vmatpush.bf16.msra.mxu0 0
      %422 = vmatpush.bf16.msra.mxu0 0
      %423 = vmatpush.bf16.msra.mxu0 0
      %424 = vmatpush.bf16.msra.mxu0 0
      %425 = vmatpush.bf16.msra.mxu0 0
      %426 = vmatpush.bf16.msra.mxu0 %v417
      %427 = vmatmul.bf16.gmra.mxu0 %v414
      %v428 = vpop.f32.mrf.mxu0
      %v429 = vadd.f32 0.0, %v428
      %v430 = vpop.f32.mrf.mxu0
      %431 = vdwg.mxu0
      %432 = vrot.lane.b32.xlu0 %v309, 104
      %v433 = vpop.permute.xlu0 %432
      %434 = vrot.lane.b32.xlu0 %v314, 104
      %v435 = vpop.permute.xlu0 %434
      %v437 = vsel %vm249, %v433, 0
      %v440 = vsel %vm249, %v435, 0
      %442 = vmatpush.bf16.xpose.msra.mxu0 0
      %443 = vmatpush.bf16.xpose.msra.mxu0 0
      %444 = vmatpush.bf16.xpose.msra.mxu0 0
      %445 = vmatpush.bf16.xpose.msra.mxu0 0
      %446 = vmatpush.bf16.xpose.msra.mxu0 0
      %447 = vmatpush.bf16.xpose.msra.mxu0 0
      %448 = vmatpush.bf16.xpose.msra.mxu0 0
      %449 = vmatpush.bf16.xpose.msra.mxu0 %v440
      %450 = vmatmul.bf16.gmra.mxu0 %v437
      %v451 = vpop.f32.mrf.mxu0
      %v452 = vadd.f32 0.0, %v451
      %v453 = vpop.f32.mrf.mxu0
      %454 = vdwg.mxu0
      %v455 = vmul.f32 %v452, 0.35355338
      %v456 = vsel %vm273, -1e+09, %v455
      %v457 = vsel %vm249, %v456, -inf
      %458 = vmax.xlane.f32.xlu0 %v457
      %v459 = vpop.xlane.xlu0 %458
      %v460 = vsub.f32 %v456, %v459
      %v461 = vmul.f32 %v460, 1.442695
      %v462 = vpow.pop %v461
      %v463 = vsel %vm249, %v462, 0.0
      %464 = vadd.xlane.f32.xlu0 %v463
      %v465 = vpop.xlane.xlu0 %464
      %v466 = vrcp.pop %v465
      %v467 = vmul.f32 %v462, %v466
      %v468 = vpack.c.bf16 %v467, %v467
      %469 = vrot.lane.b32.xlu0 %v352, 104
      %v470 = vpop.permute.xlu0 %469
      %v472 = vsel %vm249, %v468, 0
      %v475 = vsel %vm290, %v470, 0
      %477 = vmatpush.bf16.msra.mxu0 0
      %478 = vmatpush.bf16.msra.mxu0 0
      %479 = vmatpush.bf16.msra.mxu0 0
      %480 = vmatpush.bf16.msra.mxu0 0
      %481 = vmatpush.bf16.msra.mxu0 0
      %482 = vmatpush.bf16.msra.mxu0 0
      %483 = vmatpush.bf16.msra.mxu0 0
      %484 = vmatpush.bf16.msra.mxu0 %v475
      %485 = vmatmul.bf16.gmra.mxu0 %v472
      %v486 = vpop.f32.mrf.mxu0
      %v487 = vadd.f32 0.0, %v486
      %v488 = vpop.f32.mrf.mxu0
      %489 = vdwg.mxu0
      %491 = vrot.lane.b32.xlu0 %v371, 8
      %v492 = vpop.permute.xlu0 %491
      %495 = vrot.lane.b32.xlu0 %v429, 16
      %v496 = vpop.permute.xlu0 %495
      %499 = vrot.lane.b32.xlu0 %v487, 24
      %v500 = vpop.permute.xlu0 %499
      %v502 = vsel %vm249, %v304, %v492
      %vm503 = vcmask 130048
      %v504 = vsel %vm503, %v502, %v496
      %vm505 = vcmask 195584
      %v506 = vsel %vm505, %v504, %v500
      %vm507 = vcmask 261120
      %508 = vst.msk [vmem:[%s240] sm:$0xff] %vm507, %v506
      %p509 = scmp.lt.s32.totalorder %s15, 1
      %s510 = scalar_select %p509, %s15, 1
      %s511 = smul.addr %s510, 8
      %s512 = scalar_lea.vmem %s4, %s511
      // Predicated region
      $region37: #{encoder_decoder_forward.31} parent=35 // pred_check
        %p513 = pneg %p137
      $region38: #{encoder_decoder_forward.31} parent=35 // pred_check_branch
        %515 = sbr.rel (%p513) target = $region40
      $region39: #{encoder_decoder_forward.31} parent=35 // pred_region
        _
      $region40: #{encoder_decoder_forward.31} parent=35 // pred_fallthru
        _
    $region36: #{encoder_decoder_forward.31} parent=5 // pred_fallthru
      _
    %p516 = scmp.le.s32.totalorder 2, %s10
    // Predicated region
    $region41: #{encoder_decoder_forward.31} parent=5 // pred_check
      %p517 = pneg %p516
    $region42: #{encoder_decoder_forward.31} parent=5 // pred_check_branch
      %519 = sbr.rel (%p517) target = $region44
    $region43: #{encoder_decoder_forward.31} parent=5 // pred_region
      %s520 = ssub.s32 %s10, 2
      // Predicated region
      $region45: #{encoder_decoder_forward.31} parent=43 // pred_check
        %p521 = pneg %p143
      $region46: #{encoder_decoder_forward.31} parent=43 // pred_check_branch
        %523 = sbr.rel (%p521) target = $region48
      $region47: #{encoder_decoder_forward.31} parent=43 // pred_region
        %p524 = scmp.lt.s32.totalorder %s16, 1
        %s525 = scalar_select %p524, %s16, 1
        %s526 = smul.addr %s525, 8
        %s527 = scalar_lea.vmem %s4, %s526
      $region48: #{encoder_decoder_forward.31} parent=43 // pred_fallthru
        _
    $region44: #{encoder_decoder_forward.31} parent=5 // pred_fallthru
      _
  $region6: #{encoder_decoder_forward.31} parent=0 // loop_footer
    %s14 = sadd.s32 1, %s10
  $region7: #{encoder_decoder_forward.31} parent=0 // loop_footer_branch
    %9 = sbr.rel target = $region3
  $region8: #{encoder_decoder_forward.31} parent=0 // loop_exit
    _

</llo_original>
